<compile_context>
chip_gen: v7x
topology: tpu7x:2x2x1
jax: 0.10.0
libtpu: 0.0.40
codegen_flags: <defaults>
</compile_context>

<pallas_src>
import math

import jax
import jax.numpy as jnp
from jax.experimental import pallas as pl
from jax.experimental.pallas import tpu as pltpu

HIDDEN = 256
HEADS = 4
HEAD_DIM = HIDDEN // HEADS
INTERMEDIATE = 1024
LAYERS = 2
VOCAB = 8684
TYPE_VOCAB = 3
MAX_POS = 512
LN_EPS = 1e-7
NUM_CLASSES = 3
FC_PAD = 128            # pad classifier output to a full lane width

_SQRT1_2 = 1.0 / math.sqrt(2.0)
_ATTN_SCALE = 1.0 / math.sqrt(HEAD_DIM)
_PARALLEL = pltpu.CompilerParams(dimension_semantics=("parallel",))


# ----------------------------------------------------------------------------
# in-kernel math helpers (all f32)
# ----------------------------------------------------------------------------
def _gelu(x):
  # exact (erf) GELU, matching HF BERT hidden_act="gelu"
  return 0.5 * x * (1.0 + jax.lax.erf(x * _SQRT1_2))


def _ln(h, g, b):
  mean = jnp.mean(h, axis=-1, keepdims=True)
  var = jnp.mean(jnp.square(h - mean), axis=-1, keepdims=True)
  return (h - mean) * jax.lax.rsqrt(var + LN_EPS) * g + b


# ----------------------------------------------------------------------------
# Pallas kernels
# ----------------------------------------------------------------------------
def _embed_ln(we, te, pe, gamma, beta):
  """LayerNorm(word_emb + type_emb + pos_emb); sum fused into the LN kernel."""
  B, S, H = we.shape

  def kernel(we_ref, te_ref, pe_ref, g_ref, b_ref, o_ref):
    x = we_ref[0] + te_ref[0] + pe_ref[0]          # (S, H) f32
    o_ref[0] = _ln(x, g_ref[...], b_ref[...])

  return pl.pallas_call(
      kernel,
      grid=(B,),
      out_shape=jax.ShapeDtypeStruct((B, S, H), jnp.float32),
      in_specs=[
          pl.BlockSpec((1, S, H), lambda b: (b, 0, 0)),
          pl.BlockSpec((1, S, H), lambda b: (b, 0, 0)),
          pl.BlockSpec((1, S, H), lambda b: (0, 0, 0)),
          pl.BlockSpec((1, H), lambda b: (0, 0)),
          pl.BlockSpec((1, H), lambda b: (0, 0)),
      ],
      out_specs=pl.BlockSpec((1, S, H), lambda b: (b, 0, 0)),
      compiler_params=_PARALLEL,
  )(we, te, pe, gamma, beta)


def _encoder_layer(h, mask_bias, lw):
  """One full BERT encoder layer, fused into a single pallas_call.

  h:         (B, S, HIDDEN) f32 hidden states
  mask_bias: (B, 1, S) additive attention bias ((1-mask) * -10000)
  lw:        per-layer prepared weights (bf16 matmul weights, f32 bias/LN)
  """
  B, S, H = h.shape
  bf16 = jnp.bfloat16

  def kernel(h_ref, bias_ref, qkvw_ref, qkvb_ref, aow_ref, aob_ref,
             ln1g_ref, ln1b_ref, iw_ref, ib_ref, ow_ref, ob_ref,
             ln2g_ref, ln2b_ref, o_ref):
    x = h_ref[0]                                    # (S, H) f32
    bias = bias_ref[0]                              # (1, S) f32

    # ---- fused QKV projection: one (S,256)x(256,768) MXU matmul in VMEM ----
    qkv = jnp.dot(x.astype(bf16), qkvw_ref[...],
                  preferred_element_type=jnp.float32) + qkvb_ref[...]
    q = qkv[:, 0 * H:1 * H]                         # (S, H)
    k = qkv[:, 1 * H:2 * H]
    v = qkv[:, 2 * H:3 * H]

    # ---- per-head attention (HEADS=4 unrolled), temporaries stay in VMEM ----
    ctx_parts = []
    for hh in range(HEADS):
      lo = hh * HEAD_DIM
      qh = q[:, lo:lo + HEAD_DIM].astype(bf16)      # (S, D)
      kh = k[:, lo:lo + HEAD_DIM].astype(bf16)
      vh = v[:, lo:lo + HEAD_DIM].astype(bf16)
      # contract head_dim of both operands (no kh.T materialization)
      s = jax.lax.dot_general(qh, kh, (((1,), (1,)), ((), ())),
                              preferred_element_type=jnp.float32)
      s = s * _ATTN_SCALE + bias                    # (S,S) + (1,S) broadcast
      m = jnp.max(s, axis=-1, keepdims=True)
      e = jnp.exp(s - m)
      p = e / jnp.sum(e, axis=-1, keepdims=True)    # f32 softmax
      # attention_probs dropout (p=0.2) is identity in eval mode
      ctx_parts.append(jnp.dot(p.astype(bf16), vh,
                               preferred_element_type=jnp.float32))
    ctx = jnp.concatenate(ctx_parts, axis=1)        # (S, H) lane-dense

    # ---- attn output proj + residual + LayerNorm1 ----
    a = jnp.dot(ctx.astype(bf16), aow_ref[...],
                preferred_element_type=jnp.float32) + aob_ref[...]
    h1 = _ln(a + x, ln1g_ref[...], ln1b_ref[...])
    # hidden dropout (p=0.2) is identity in eval mode

    # ---- FFN: matmul -> gelu -> matmul; (S,1024) intermediate stays in VMEM
    inter = jnp.dot(h1.astype(bf16), iw_ref[...],
                    preferred_element_type=jnp.float32) + ib_ref[...]
    inter = _gelu(inter)
    y = jnp.dot(inter.astype(bf16), ow_ref[...],
                preferred_element_type=jnp.float32) + ob_ref[...]
    o_ref[0] = _ln(y + h1, ln2g_ref[...], ln2b_ref[...])

  # TODO(synk): for very long S, switch the attention section to a flash-style
  # (q-tile, kv-tile) online-softmax loop instead of full (S,S) scores per head.
  return pl.pallas_call(
      kernel,
      grid=(B,),
      out_shape=jax.ShapeDtypeStruct((B, S, H), jnp.float32),
      in_specs=[
          pl.BlockSpec((1, S, H), lambda b: (b, 0, 0)),
          pl.BlockSpec((1, 1, S), lambda b: (b, 0, 0)),
          pl.BlockSpec((H, 3 * H), lambda b: (0, 0)),
          pl.BlockSpec((1, 3 * H), lambda b: (0, 0)),
          pl.BlockSpec((H, H), lambda b: (0, 0)),
          pl.BlockSpec((1, H), lambda b: (0, 0)),
          pl.BlockSpec((1, H), lambda b: (0, 0)),
          pl.BlockSpec((1, H), lambda b: (0, 0)),
          pl.BlockSpec((H, INTERMEDIATE), lambda b: (0, 0)),
          pl.BlockSpec((1, INTERMEDIATE), lambda b: (0, 0)),
          pl.BlockSpec((INTERMEDIATE, H), lambda b: (0, 0)),
          pl.BlockSpec((1, H), lambda b: (0, 0)),
          pl.BlockSpec((1, H), lambda b: (0, 0)),
          pl.BlockSpec((1, H), lambda b: (0, 0)),
      ],
      out_specs=pl.BlockSpec((1, S, H), lambda b: (b, 0, 0)),
      compiler_params=_PARALLEL,
  )(h, mask_bias, lw["qkv_w"], lw["qkv_b"], lw["ao_w"], lw["ao_b"],
    lw["ln1_g"], lw["ln1_b"], lw["i_w"], lw["i_b"], lw["o_w"], lw["o_b"],
    lw["ln2_g"], lw["ln2_b"])


def _pooler_fc(cls_h, pool_w, pool_b, fc_w_pad, fc_b_pad):
  """pooled = tanh(cls @ pool_w + pool_b); logits = pooled @ fc_w + fc_b.

  Microscopic, one fused kernel in plain f32.  Classifier output is padded to
  a full 128-lane width (lane-dense store); caller slices back to num_classes.
  """
  B, H = cls_h.shape
  CP = fc_w_pad.shape[1]

  def kernel(x_ref, pw_ref, pb_ref, fw_ref, fb_ref, o_ref):
    pooled = jnp.tanh(jnp.dot(x_ref[...], pw_ref[...],
                              preferred_element_type=jnp.float32) + pb_ref[...])
    # classifier dropout (p=0.1) is identity in eval mode
    o_ref[...] = jnp.dot(pooled, fw_ref[...],
                         preferred_element_type=jnp.float32) + fb_ref[...]

  return pl.pallas_call(
      kernel,
      grid=(1,),
      out_shape=jax.ShapeDtypeStruct((B, CP), jnp.float32),
      in_specs=[
          pl.BlockSpec((B, H), lambda i: (0, 0)),
          pl.BlockSpec((H, H), lambda i: (0, 0)),
          pl.BlockSpec((1, H), lambda i: (0, 0)),
          pl.BlockSpec((H, CP), lambda i: (0, 0)),
          pl.BlockSpec((1, CP), lambda i: (0, 0)),
      ],
      out_specs=pl.BlockSpec((B, CP), lambda i: (0, 0)),
  )(cls_h, pool_w, pool_b, fc_w_pad, fc_b_pad)


# ----------------------------------------------------------------------------
# Parameter init (deterministic, matches module shapes; HF init: N(0, 0.02),
# LN weight=1/bias=0, linear biases=0; fc: xavier_normal, bias=0).
# NOTE: weights are stored (in, out) and used as x @ w; porting real PyTorch
# nn.Linear weights (stored (out, in)) requires a transpose.
# ----------------------------------------------------------------------------
def init_params(key, num_classes):
  keys = iter(jax.random.split(key, 64))

  def normal(shape, std=0.02):
    return (std * jax.random.normal(next(keys), shape)).astype(jnp.float32)

  params = {
      "word_emb": normal((VOCAB, HIDDEN)),
      "pos_emb": normal((MAX_POS, HIDDEN)),
      "type_emb": normal((TYPE_VOCAB, HIDDEN)),
      "emb_ln_g": jnp.ones((HIDDEN,), jnp.float32),
      "emb_ln_b": jnp.zeros((HIDDEN,), jnp.float32),
      "layers": [],
      "pool_w": normal((HIDDEN, HIDDEN)),
      "pool_b": jnp.zeros((HIDDEN,), jnp.float32),
  }
  for _ in range(LAYERS):
    lp = {
        "q_w": normal((HIDDEN, HIDDEN)), "q_b": jnp.zeros((HIDDEN,), jnp.float32),
        "k_w": normal((HIDDEN, HIDDEN)), "k_b": jnp.zeros((HIDDEN,), jnp.float32),
        "v_w": normal((HIDDEN, HIDDEN)), "v_b": jnp.zeros((HIDDEN,), jnp.float32),
        "ao_w": normal((HIDDEN, HIDDEN)), "ao_b": jnp.zeros((HIDDEN,), jnp.float32),
        "ln1_g": jnp.ones((HIDDEN,), jnp.float32),
        "ln1_b": jnp.zeros((HIDDEN,), jnp.float32),
        "i_w": normal((HIDDEN, INTERMEDIATE)),
        "i_b": jnp.zeros((INTERMEDIATE,), jnp.float32),
        "o_w": normal((INTERMEDIATE, HIDDEN)),
        "o_b": jnp.zeros((HIDDEN,), jnp.float32),
        "ln2_g": jnp.ones((HIDDEN,), jnp.float32),
        "ln2_b": jnp.zeros((HIDDEN,), jnp.float32),
    }
    params["layers"].append(lp)

  xavier_std = math.sqrt(2.0 / (HIDDEN + num_classes))
  params["fc_w"] = normal((HIDDEN, num_classes), std=xavier_std)
  params["fc_b"] = jnp.zeros((num_classes,), jnp.float32)
  return params


def prepare_params(params):
  """One-time weight prep: concat QKV, cast MXU weights to bf16, reshape
  biases/LN params to (1, N), pad classifier to 128 lanes."""
  bf16 = jnp.bfloat16
  prep = {
      "word_emb": params["word_emb"],
      "pos_emb": params["pos_emb"],
      "type_emb": params["type_emb"],
      "emb_ln_g": params["emb_ln_g"].reshape(1, HIDDEN),
      "emb_ln_b": params["emb_ln_b"].reshape(1, HIDDEN),
      "layers": [],
      "pool_w": params["pool_w"],
      "pool_b": params["pool_b"].reshape(1, HIDDEN),
  }
  for lp in params["layers"]:
    prep["layers"].append({
        "qkv_w": jnp.concatenate([lp["q_w"], lp["k_w"], lp["v_w"]],
                                 axis=1).astype(bf16),
        "qkv_b": jnp.concatenate([lp["q_b"], lp["k_b"], lp["v_b"]]
                                 ).reshape(1, 3 * HIDDEN),
        "ao_w": lp["ao_w"].astype(bf16),
        "ao_b": lp["ao_b"].reshape(1, HIDDEN),
        "ln1_g": lp["ln1_g"].reshape(1, HIDDEN),
        "ln1_b": lp["ln1_b"].reshape(1, HIDDEN),
        "i_w": lp["i_w"].astype(bf16),
        "i_b": lp["i_b"].reshape(1, INTERMEDIATE),
        "o_w": lp["o_w"].astype(bf16),
        "o_b": lp["o_b"].reshape(1, HIDDEN),
        "ln2_g": lp["ln2_g"].reshape(1, HIDDEN),
        "ln2_b": lp["ln2_b"].reshape(1, HIDDEN),
    })
  c = params["fc_w"].shape[1]
  cp = max(FC_PAD, c)
  prep["fc_w"] = jnp.zeros((HIDDEN, cp), jnp.float32).at[:, :c].set(params["fc_w"])
  prep["fc_b"] = jnp.zeros((1, cp), jnp.float32).at[0, :c].set(params["fc_b"])
  return prep


# ----------------------------------------------------------------------------
# Forward pass (gathers are glue in JAX; everything else in fused Pallas)
# ----------------------------------------------------------------------------
def bert_classifier(prep, input_ids, attention_mask, token_type_ids):
  B, S = input_ids.shape

  # ---- embeddings: table gathers in plain JAX, sum+LN fused in Pallas ----
  # TODO(synk): embedding-table gathers have no clean Pallas equivalent at
  # this size; they stay as XLA ops.
  we = jnp.take(prep["word_emb"], input_ids, axis=0)            # (B, S, H)
  te = jnp.take(prep["type_emb"], token_type_ids, axis=0)       # (B, S, H)
  pe = prep["pos_emb"][:S][None, :, :]                          # (1, S, H)
  h = _embed_ln(we, te, pe, prep["emb_ln_g"], prep["emb_ln_b"])  # (B, S, H)
  # hidden_dropout (p=0.2) is identity in eval mode

  # HF extended attention mask: (1 - mask) * -10000 added to raw scores
  mask_bias = ((1.0 - attention_mask.astype(jnp.float32)) * -10000.0
               ).reshape(B, 1, S)

  for lw in prep["layers"]:
    h = _encoder_layer(h, mask_bias, lw)                        # (B, S, H)

  # ---- pooler (first token -> dense -> tanh) + classifier, one kernel ----
  cls = h[:, 0, :]                                              # (B, H)
  logits_pad = _pooler_fc(cls, prep["pool_w"], prep["pool_b"],
                          prep["fc_w"], prep["fc_b"])           # (B, 128)
  return logits_pad[:, :NUM_CLASSES]


if __name__ == "__main__":
  root = jax.random.PRNGKey(0)
  k_param, k_ids, k_type = jax.random.split(root, 3)

  B, S = 2, 8
  params = init_params(k_param, NUM_CLASSES)
  prep = prepare_params(params)                                 # one-time prep

  input_ids = jax.random.randint(k_ids, (B, S), 0, VOCAB, dtype=jnp.int32)
  token_type_ids = jax.random.randint(k_type, (B, S), 0, TYPE_VOCAB,
                                      dtype=jnp.int32)
  attention_mask = jnp.ones((B, S), jnp.int32).at[1, -2:].set(0)  # pad 2 tokens

  fwd = jax.jit(bert_classifier)
  logits = fwd(prep, input_ids, attention_mask, token_type_ids)
  jax.block_until_ready(logits)

  assert logits.shape == (B, NUM_CLASSES) and logits.dtype == jnp.float32
  assert bool(jnp.all(jnp.isfinite(logits)))
  print("KERNEL_OK")
</pallas_src>

<mosaic_0001>
module attributes {stable_mosaic.version = 11 : i64} {
  func.func @kernel(%arg0: i32, %arg1: memref<2x256xf32, #tpu.memory_space<vmem>>, %arg2: memref<256x256xf32, #tpu.memory_space<vmem>>, %arg3: memref<1x256xf32, #tpu.memory_space<vmem>>, %arg4: memref<256x128xf32, #tpu.memory_space<vmem>>, %arg5: memref<1x128xf32, #tpu.memory_space<vmem>>, %arg6: memref<2x128xf32, #tpu.memory_space<vmem>>) attributes {dimension_semantics = [#tpu.dimension_semantics<arbitrary>], iteration_bounds = array<i64: 1>, scalar_prefetch = 0 : i64, scratch_operands = 0 : i64, tpu.core_type = #tpu.core_type<tc>, window_params = [{pipeline_mode = #tpu.pipeline_mode<synchronous>, transform_indices = @transform_0, window_bounds = array<i64: 2, 256>}, {pipeline_mode = #tpu.pipeline_mode<synchronous>, transform_indices = @transform_1, window_bounds = array<i64: 256, 256>}, {pipeline_mode = #tpu.pipeline_mode<synchronous>, transform_indices = @transform_2, window_bounds = array<i64: 1, 256>}, {pipeline_mode = #tpu.pipeline_mode<synchronous>, transform_indices = @transform_3, window_bounds = array<i64: 256, 128>}, {pipeline_mode = #tpu.pipeline_mode<synchronous>, transform_indices = @transform_4, window_bounds = array<i64: 1, 128>}, {pipeline_mode = #tpu.pipeline_mode<synchronous>, transform_indices = @transform_5, window_bounds = array<i64: 2, 128>}]} {
    %c0 = arith.constant 0 : index
    %c0_0 = arith.constant 0 : index
    %0 = vector.load %arg1[%c0, %c0_0] : memref<2x256xf32, #tpu.memory_space<vmem>>, vector<2x256xf32>
    %c0_1 = arith.constant 0 : index
    %c0_2 = arith.constant 0 : index
    %1 = vector.load %arg2[%c0_1, %c0_2] : memref<256x256xf32, #tpu.memory_space<vmem>>, vector<256x256xf32>
    %cst = arith.constant dense<0.000000e+00> : vector<2x256xf32>
    %2 = tpu.matmul %0, %1, %cst {dimension_numbers = #tpu.dot_dimension_numbers<[1], [0], [0], [1], [0, 0, 1, 1], [], []>} : vector<2x256xf32>, vector<256x256xf32>, vector<2x256xf32> -> vector<2x256xf32>
    %c0_3 = arith.constant 0 : index
    %c0_4 = arith.constant 0 : index
    %3 = vector.load %arg3[%c0_3, %c0_4] : memref<1x256xf32, #tpu.memory_space<vmem>>, vector<1x256xf32>
    %4 = vector.broadcast %3 : vector<1x256xf32> to vector<2x256xf32>
    %5 = arith.addf %2, %4 : vector<2x256xf32>
    %6 = math.tanh %5 : vector<2x256xf32>
    %c0_5 = arith.constant 0 : index
    %c0_6 = arith.constant 0 : index
    %7 = vector.load %arg4[%c0_5, %c0_6] : memref<256x128xf32, #tpu.memory_space<vmem>>, vector<256x128xf32>
    %cst_7 = arith.constant dense<0.000000e+00> : vector<2x128xf32>
    %8 = tpu.matmul %6, %7, %cst_7 {dimension_numbers = #tpu.dot_dimension_numbers<[1], [0], [0], [1], [0, 0, 1, 1], [], []>} : vector<2x256xf32>, vector<256x128xf32>, vector<2x128xf32> -> vector<2x128xf32>
    %c0_8 = arith.constant 0 : index
    %c0_9 = arith.constant 0 : index
    %9 = vector.load %arg5[%c0_8, %c0_9] : memref<1x128xf32, #tpu.memory_space<vmem>>, vector<1x128xf32>
    %10 = vector.broadcast %9 : vector<1x128xf32> to vector<2x128xf32>
    %11 = arith.addf %8, %10 : vector<2x128xf32>
    %c0_10 = arith.constant 0 : index
    %c0_11 = arith.constant 0 : index
    %12 = vector.load %arg6[%c0_10, %c0_11] : memref<2x128xf32, #tpu.memory_space<vmem>>, vector<2x128xf32>
    tpu.vector_store %arg6[%c0_10, %c0_11], %11 {strides = array<i32>} : memref<2x128xf32, #tpu.memory_space<vmem>>, vector<2x128xf32>,
    return
  }
  func.func @transform_0(%arg0: i32) -> (i32, i32) {
    %c0_i32 = arith.constant 0 : i32
    %c0_i32_0 = arith.constant 0 : i32
    %c0_i32_1 = arith.constant 0 : i32
    return %c0_i32, %c0_i32_0 : i32, i32
  }
  func.func @transform_1(%arg0: i32) -> (i32, i32) {
    %c0_i32 = arith.constant 0 : i32
    %c0_i32_0 = arith.constant 0 : i32
    %c0_i32_1 = arith.constant 0 : i32
    return %c0_i32, %c0_i32_0 : i32, i32
  }
  func.func @transform_2(%arg0: i32) -> (i32, i32) {
    %c0_i32 = arith.constant 0 : i32
    %c0_i32_0 = arith.constant 0 : i32
    %c0_i32_1 = arith.constant 0 : i32
    return %c0_i32, %c0_i32_0 : i32, i32
  }
  func.func @transform_3(%arg0: i32) -> (i32, i32) {
    %c0_i32 = arith.constant 0 : i32
    %c0_i32_0 = arith.constant 0 : i32
    %c0_i32_1 = arith.constant 0 : i32
    return %c0_i32, %c0_i32_0 : i32, i32
  }
  func.func @transform_4(%arg0: i32) -> (i32, i32) {
    %c0_i32 = arith.constant 0 : i32
    %c0_i32_0 = arith.constant 0 : i32
    %c0_i32_1 = arith.constant 0 : i32
    return %c0_i32, %c0_i32_0 : i32, i32
  }
  func.func @transform_5(%arg0: i32) -> (i32, i32) {
    %c0_i32 = arith.constant 0 : i32
    %c0_i32_0 = arith.constant 0 : i32
    %c0_i32_1 = arith.constant 0 : i32
    return %c0_i32, %c0_i32_0 : i32, i32
  }
}

module attributes {stable_mosaic.version = 11 : i64} {
  func.func @kernel(%arg0: i32, %arg1: memref<1x8x256xf32, #tpu.memory_space<vmem>>, %arg2: memref<1x1x8xf32, #tpu.memory_space<vmem>>, %arg3: memref<256x768xbf16, #tpu.memory_space<vmem>>, %arg4: memref<1x768xf32, #tpu.memory_space<vmem>>, %arg5: memref<256x256xbf16, #tpu.memory_space<vmem>>, %arg6: memref<1x256xf32, #tpu.memory_space<vmem>>, %arg7: memref<1x256xf32, #tpu.memory_space<vmem>>, %arg8: memref<1x256xf32, #tpu.memory_space<vmem>>, %arg9: memref<256x1024xbf16, #tpu.memory_space<vmem>>, %arg10: memref<1x1024xf32, #tpu.memory_space<vmem>>, %arg11: memref<1024x256xbf16, #tpu.memory_space<vmem>>, %arg12: memref<1x256xf32, #tpu.memory_space<vmem>>, %arg13: memref<1x256xf32, #tpu.memory_space<vmem>>, %arg14: memref<1x256xf32, #tpu.memory_space<vmem>>, %arg15: memref<1x8x256xf32, #tpu.memory_space<vmem>>) attributes {dimension_semantics = [#tpu.dimension_semantics<parallel>], iteration_bounds = array<i64: 2>, scalar_prefetch = 0 : i64, scratch_operands = 0 : i64, tpu.core_type = #tpu.core_type<tc>, window_params = [{transform_indices = @transform_0, window_bounds = array<i64: 1, 8, 256>}, {transform_indices = @transform_1, window_bounds = array<i64: 1, 1, 8>}, {pipeline_mode = #tpu.pipeline_mode<synchronous>, transform_indices = @transform_2, window_bounds = array<i64: 256, 768>}, {pipeline_mode = #tpu.pipeline_mode<synchronous>, transform_indices = @transform_3, window_bounds = array<i64: 1, 768>}, {pipeline_mode = #tpu.pipeline_mode<synchronous>, transform_indices = @transform_4, window_bounds = array<i64: 256, 256>}, {pipeline_mode = #tpu.pipeline_mode<synchronous>, transform_indices = @transform_5, window_bounds = array<i64: 1, 256>}, {pipeline_mode = #tpu.pipeline_mode<synchronous>, transform_indices = @transform_6, window_bounds = array<i64: 1, 256>}, {pipeline_mode = #tpu.pipeline_mode<synchronous>, transform_indices = @transform_7, window_bounds = array<i64: 1, 256>}, {pipeline_mode = #tpu.pipeline_mode<synchronous>, transform_indices = @transform_8, window_bounds = array<i64: 256, 1024>}, {pipeline_mode = #tpu.pipeline_mode<synchronous>, transform_indices = @transform_9, window_bounds = array<i64: 1, 1024>}, {pipeline_mode = #tpu.pipeline_mode<synchronous>, transform_indices = @transform_10, window_bounds = array<i64: 1024, 256>}, {pipeline_mode = #tpu.pipeline_mode<synchronous>, transform_indices = @transform_11, window_bounds = array<i64: 1, 256>}, {pipeline_mode = #tpu.pipeline_mode<synchronous>, transform_indices = @transform_12, window_bounds = array<i64: 1, 256>}, {pipeline_mode = #tpu.pipeline_mode<synchronous>, transform_indices = @transform_13, window_bounds = array<i64: 1, 256>}, {transform_indices = @transform_14, window_bounds = array<i64: 1, 8, 256>}]} {
    %c0 = arith.constant 0 : index
    %c0_0 = arith.constant 0 : index
    %c0_1 = arith.constant 0 : index
    %0 = vector.load %arg1[%c0, %c0_0, %c0_1] : memref<1x8x256xf32, #tpu.memory_space<vmem>>, vector<1x8x256xf32>
    %1 = vector.shape_cast %0 : vector<1x8x256xf32> to vector<8x256xf32>
    %c0_2 = arith.constant 0 : index
    %c0_3 = arith.constant 0 : index
    %c0_4 = arith.constant 0 : index
    %2 = vector.load %arg2[%c0_2, %c0_3, %c0_4] : memref<1x1x8xf32, #tpu.memory_space<vmem>>, vector<1x1x8xf32>
    %3 = vector.shape_cast %2 : vector<1x1x8xf32> to vector<1x8xf32>
    %4 = arith.truncf %1 : vector<8x256xf32> to vector<8x256xbf16>
    %c0_5 = arith.constant 0 : index
    %c0_6 = arith.constant 0 : index
    %5 = vector.load %arg3[%c0_5, %c0_6] : memref<256x768xbf16, #tpu.memory_space<vmem>>, vector<256x768xbf16>
    %cst = arith.constant dense<0.000000e+00> : vector<8x768xf32>
    %6 = tpu.matmul %4, %5, %cst {dimension_numbers = #tpu.dot_dimension_numbers<[1], [0], [0], [1], [0, 0, 1, 1], [], []>} : vector<8x256xbf16>, vector<256x768xbf16>, vector<8x768xf32> -> vector<8x768xf32>
    %c0_7 = arith.constant 0 : index
    %c0_8 = arith.constant 0 : index
    %7 = vector.load %arg4[%c0_7, %c0_8] : memref<1x768xf32, #tpu.memory_space<vmem>>, vector<1x768xf32>
    %8 = vector.broadcast %7 : vector<1x768xf32> to vector<8x768xf32>
    %9 = arith.addf %6, %8 : vector<8x768xf32>
    %10 = vector.extract_strided_slice %9 {offsets = [0, 0], sizes = [8, 256], strides = [1, 1]} : vector<8x768xf32> to vector<8x256xf32>
    %11 = vector.extract_strided_slice %9 {offsets = [0, 256], sizes = [8, 256], strides = [1, 1]} : vector<8x768xf32> to vector<8x256xf32>
    %12 = vector.extract_strided_slice %9 {offsets = [0, 512], sizes = [8, 256], strides = [1, 1]} : vector<8x768xf32> to vector<8x256xf32>
    %13 = vector.extract_strided_slice %10 {offsets = [0, 0], sizes = [8, 64], strides = [1, 1]} : vector<8x256xf32> to vector<8x64xf32>
    %14 = arith.truncf %13 : vector<8x64xf32> to vector<8x64xbf16>
    %15 = vector.extract_strided_slice %11 {offsets = [0, 0], sizes = [8, 64], strides = [1, 1]} : vector<8x256xf32> to vector<8x64xf32>
    %16 = arith.truncf %15 : vector<8x64xf32> to vector<8x64xbf16>
    %17 = vector.extract_strided_slice %12 {offsets = [0, 0], sizes = [8, 64], strides = [1, 1]} : vector<8x256xf32> to vector<8x64xf32>
    %18 = arith.truncf %17 : vector<8x64xf32> to vector<8x64xbf16>
    %cst_9 = arith.constant dense<0.000000e+00> : vector<8x8xf32>
    %19 = tpu.matmul %14, %16, %cst_9 {dimension_numbers = #tpu.dot_dimension_numbers<[1], [1], [0], [0], [0, 0, 1, 0], [], []>} : vector<8x64xbf16>, vector<8x64xbf16>, vector<8x8xf32> -> vector<8x8xf32>
    %cst_10 = arith.constant 1.250000e-01 : f32
    %20 = vector.broadcast %cst_10 : f32 to vector<8x8xf32>
    %21 = arith.mulf %19, %20 : vector<8x8xf32>
    %22 = vector.broadcast %3 : vector<1x8xf32> to vector<8x8xf32>
    %23 = arith.addf %21, %22 : vector<8x8xf32>
    %cst_11 = arith.constant dense<0xFF800000> : vector<8xf32>
    %24 = vector.multi_reduction <maximumf>, %23, %cst_11 [1] : vector<8x8xf32> to vector<8xf32>
    %25 = vector.shape_cast %24 : vector<8xf32> to vector<8x1xf32>
    %26 = vector.broadcast %25 : vector<8x1xf32> to vector<8x8xf32>
    %27 = arith.subf %23, %26 : vector<8x8xf32>
    %28 = math.exp %27 : vector<8x8xf32>
    %cst_12 = arith.constant dense<0.000000e+00> : vector<8xf32>
    %29 = vector.multi_reduction <add>, %28, %cst_12 [1] : vector<8x8xf32> to vector<8xf32>
    %30 = vector.shape_cast %29 : vector<8xf32> to vector<8x1xf32>
    %31 = vector.broadcast %30 : vector<8x1xf32> to vector<8x8xf32>
    %32 = arith.divf %28, %31 : vector<8x8xf32>
    %33 = arith.truncf %32 : vector<8x8xf32> to vector<8x8xbf16>
    %cst_13 = arith.constant dense<0.000000e+00> : vector<8x64xf32>
    %34 = tpu.matmul %33, %18, %cst_13 {dimension_numbers = #tpu.dot_dimension_numbers<[1], [0], [0], [1], [0, 0, 1, 1], [], []>} : vector<8x8xbf16>, vector<8x64xbf16>, vector<8x64xf32> -> vector<8x64xf32>
    %35 = vector.extract_strided_slice %10 {offsets = [0, 64], sizes = [8, 64], strides = [1, 1]} : vector<8x256xf32> to vector<8x64xf32>
    %36 = arith.truncf %35 : vector<8x64xf32> to vector<8x64xbf16>
    %37 = vector.extract_strided_slice %11 {offsets = [0, 64], sizes = [8, 64], strides = [1, 1]} : vector<8x256xf32> to vector<8x64xf32>
    %38 = arith.truncf %37 : vector<8x64xf32> to vector<8x64xbf16>
    %39 = vector.extract_strided_slice %12 {offsets = [0, 64], sizes = [8, 64], strides = [1, 1]} : vector<8x256xf32> to vector<8x64xf32>
    %40 = arith.truncf %39 : vector<8x64xf32> to vector<8x64xbf16>
    %cst_14 = arith.constant dense<0.000000e+00> : vector<8x8xf32>
    %41 = tpu.matmul %36, %38, %cst_14 {dimension_numbers = #tpu.dot_dimension_numbers<[1], [1], [0], [0], [0, 0, 1, 0], [], []>} : vector<8x64xbf16>, vector<8x64xbf16>, vector<8x8xf32> -> vector<8x8xf32>
    %cst_15 = arith.constant 1.250000e-01 : f32
    %42 = vector.broadcast %cst_15 : f32 to vector<8x8xf32>
    %43 = arith.mulf %41, %42 : vector<8x8xf32>
    %44 = vector.broadcast %3 : vector<1x8xf32> to vector<8x8xf32>
    %45 = arith.addf %43, %44 : vector<8x8xf32>
    %cst_16 = arith.constant dense<0xFF800000> : vector<8xf32>
    %46 = vector.multi_reduction <maximumf>, %45, %cst_16 [1] : vector<8x8xf32> to vector<8xf32>
    %47 = vector.shape_cast %46 : vector<8xf32> to vector<8x1xf32>
    %48 = vector.broadcast %47 : vector<8x1xf32> to vector<8x8xf32>
    %49 = arith.subf %45, %48 : vector<8x8xf32>
    %50 = math.exp %49 : vector<8x8xf32>
    %cst_17 = arith.constant dense<0.000000e+00> : vector<8xf32>
    %51 = vector.multi_reduction <add>, %50, %cst_17 [1] : vector<8x8xf32> to vector<8xf32>
    %52 = vector.shape_cast %51 : vector<8xf32> to vector<8x1xf32>
    %53 = vector.broadcast %52 : vector<8x1xf32> to vector<8x8xf32>
    %54 = arith.divf %50, %53 : vector<8x8xf32>
    %55 = arith.truncf %54 : vector<8x8xf32> to vector<8x8xbf16>
    %cst_18 = arith.constant dense<0.000000e+00> : vector<8x64xf32>
    %56 = tpu.matmul %55, %40, %cst_18 {dimension_numbers = #tpu.dot_dimension_numbers<[1], [0], [0], [1], [0, 0, 1, 1], [], []>} : vector<8x8xbf16>, vector<8x64xbf16>, vector<8x64xf32> -> vector<8x64xf32>
    %57 = vector.extract_strided_slice %10 {offsets = [0, 128], sizes = [8, 64], strides = [1, 1]} : vector<8x256xf32> to vector<8x64xf32>
    %58 = arith.truncf %57 : vector<8x64xf32> to vector<8x64xbf16>
    %59 = vector.extract_strided_slice %11 {offsets = [0, 128], sizes = [8, 64], strides = [1, 1]} : vector<8x256xf32> to vector<8x64xf32>
    %60 = arith.truncf %59 : vector<8x64xf32> to vector<8x64xbf16>
    %61 = vector.extract_strided_slice %12 {offsets = [0, 128], sizes = [8, 64], strides = [1, 1]} : vector<8x256xf32> to vector<8x64xf32>
    %62 = arith.truncf %61 : vector<8x64xf32> to vector<8x64xbf16>
    %cst_19 = arith.constant dense<0.000000e+00> : vector<8x8xf32>
    %63 = tpu.matmul %58, %60, %cst_19 {dimension_numbers = #tpu.dot_dimension_numbers<[1], [1], [0], [0], [0, 0, 1, 0], [], []>} : vector<8x64xbf16>, vector<8x64xbf16>, vector<8x8xf32> -> vector<8x8xf32>
    %cst_20 = arith.constant 1.250000e-01 : f32
    %64 = vector.broadcast %cst_20 : f32 to vector<8x8xf32>
    %65 = arith.mulf %63, %64 : vector<8x8xf32>
    %66 = vector.broadcast %3 : vector<1x8xf32> to vector<8x8xf32>
    %67 = arith.addf %65, %66 : vector<8x8xf32>
    %cst_21 = arith.constant dense<0xFF800000> : vector<8xf32>
    %68 = vector.multi_reduction <maximumf>, %67, %cst_21 [1] : vector<8x8xf32> to vector<8xf32>
    %69 = vector.shape_cast %68 : vector<8xf32> to vector<8x1xf32>
    %70 = vector.broadcast %69 : vector<8x1xf32> to vector<8x8xf32>
    %71 = arith.subf %67, %70 : vector<8x8xf32>
    %72 = math.exp %71 : vector<8x8xf32>
    %cst_22 = arith.constant dense<0.000000e+00> : vector<8xf32>
    %73 = vector.multi_reduction <add>, %72, %cst_22 [1] : vector<8x8xf32> to vector<8xf32>
    %74 = vector.shape_cast %73 : vector<8xf32> to vector<8x1xf32>
    %75 = vector.broadcast %74 : vector<8x1xf32> to vector<8x8xf32>
    %76 = arith.divf %72, %75 : vector<8x8xf32>
    %77 = arith.truncf %76 : vector<8x8xf32> to vector<8x8xbf16>
    %cst_23 = arith.constant dense<0.000000e+00> : vector<8x64xf32>
    %78 = tpu.matmul %77, %62, %cst_23 {dimension_numbers = #tpu.dot_dimension_numbers<[1], [0], [0], [1], [0, 0, 1, 1], [], []>} : vector<8x8xbf16>, vector<8x64xbf16>, vector<8x64xf32> -> vector<8x64xf32>
    %79 = vector.extract_strided_slice %10 {offsets = [0, 192], sizes = [8, 64], strides = [1, 1]} : vector<8x256xf32> to vector<8x64xf32>
    %80 = arith.truncf %79 : vector<8x64xf32> to vector<8x64xbf16>
    %81 = vector.extract_strided_slice %11 {offsets = [0, 192], sizes = [8, 64], strides = [1, 1]} : vector<8x256xf32> to vector<8x64xf32>
    %82 = arith.truncf %81 : vector<8x64xf32> to vector<8x64xbf16>
    %83 = vector.extract_strided_slice %12 {offsets = [0, 192], sizes = [8, 64], strides = [1, 1]} : vector<8x256xf32> to vector<8x64xf32>
    %84 = arith.truncf %83 : vector<8x64xf32> to vector<8x64xbf16>
    %cst_24 = arith.constant dense<0.000000e+00> : vector<8x8xf32>
    %85 = tpu.matmul %80, %82, %cst_24 {dimension_numbers = #tpu.dot_dimension_numbers<[1], [1], [0], [0], [0, 0, 1, 0], [], []>} : vector<8x64xbf16>, vector<8x64xbf16>, vector<8x8xf32> -> vector<8x8xf32>
    %cst_25 = arith.constant 1.250000e-01 : f32
    %86 = vector.broadcast %cst_25 : f32 to vector<8x8xf32>
    %87 = arith.mulf %85, %86 : vector<8x8xf32>
    %88 = vector.broadcast %3 : vector<1x8xf32> to vector<8x8xf32>
    %89 = arith.addf %87, %88 : vector<8x8xf32>
    %cst_26 = arith.constant dense<0xFF800000> : vector<8xf32>
    %90 = vector.multi_reduction <maximumf>, %89, %cst_26 [1] : vector<8x8xf32> to vector<8xf32>
    %91 = vector.shape_cast %90 : vector<8xf32> to vector<8x1xf32>
    %92 = vector.broadcast %91 : vector<8x1xf32> to vector<8x8xf32>
    %93 = arith.subf %89, %92 : vector<8x8xf32>
    %94 = math.exp %93 : vector<8x8xf32>
    %cst_27 = arith.constant dense<0.000000e+00> : vector<8xf32>
    %95 = vector.multi_reduction <add>, %94, %cst_27 [1] : vector<8x8xf32> to vector<8xf32>
    %96 = vector.shape_cast %95 : vector<8xf32> to vector<8x1xf32>
    %97 = vector.broadcast %96 : vector<8x1xf32> to vector<8x8xf32>
    %98 = arith.divf %94, %97 : vector<8x8xf32>
    %99 = arith.truncf %98 : vector<8x8xf32> to vector<8x8xbf16>
    %cst_28 = arith.constant dense<0.000000e+00> : vector<8x64xf32>
    %100 = tpu.matmul %99, %84, %cst_28 {dimension_numbers = #tpu.dot_dimension_numbers<[1], [0], [0], [1], [0, 0, 1, 1], [], []>} : vector<8x8xbf16>, vector<8x64xbf16>, vector<8x64xf32> -> vector<8x64xf32>
    %101 = tpu.concatenate %34, %56, %78, %100 in 1 : vector<8x64xf32>, vector<8x64xf32>, vector<8x64xf32>, vector<8x64xf32> -> vector<8x256xf32>
    %102 = arith.truncf %101 : vector<8x256xf32> to vector<8x256xbf16>
    %c0_29 = arith.constant 0 : index
    %c0_30 = arith.constant 0 : index
    %103 = vector.load %arg5[%c0_29, %c0_30] : memref<256x256xbf16, #tpu.memory_space<vmem>>, vector<256x256xbf16>
    %cst_31 = arith.constant dense<0.000000e+00> : vector<8x256xf32>
    %104 = tpu.matmul %102, %103, %cst_31 {dimension_numbers = #tpu.dot_dimension_numbers<[1], [0], [0], [1], [0, 0, 1, 1], [], []>} : vector<8x256xbf16>, vector<256x256xbf16>, vector<8x256xf32> -> vector<8x256xf32>
    %c0_32 = arith.constant 0 : index
    %c0_33 = arith.constant 0 : index
    %105 = vector.load %arg6[%c0_32, %c0_33] : memref<1x256xf32, #tpu.memory_space<vmem>>, vector<1x256xf32>
    %106 = vector.broadcast %105 : vector<1x256xf32> to vector<8x256xf32>
    %107 = arith.addf %104, %106 : vector<8x256xf32>
    %108 = arith.addf %107, %1 : vector<8x256xf32>
    %c0_34 = arith.constant 0 : index
    %c0_35 = arith.constant 0 : index
    %109 = vector.load %arg7[%c0_34, %c0_35] : memref<1x256xf32, #tpu.memory_space<vmem>>, vector<1x256xf32>
    %c0_36 = arith.constant 0 : index
    %c0_37 = arith.constant 0 : index
    %110 = vector.load %arg8[%c0_36, %c0_37] : memref<1x256xf32, #tpu.memory_space<vmem>>, vector<1x256xf32>
    %cst_38 = arith.constant dense<0.000000e+00> : vector<8xf32>
    %111 = vector.multi_reduction <add>, %108, %cst_38 [1] : vector<8x256xf32> to vector<8xf32>
    %112 = vector.shape_cast %111 : vector<8xf32> to vector<8x1xf32>
    %cst_39 = arith.constant 2.560000e+02 : f32
    %113 = vector.broadcast %cst_39 : f32 to vector<8x1xf32>
    %114 = arith.divf %112, %113 : vector<8x1xf32>
    %115 = vector.broadcast %114 : vector<8x1xf32> to vector<8x256xf32>
    %116 = arith.subf %108, %115 : vector<8x256xf32>
    %117 = arith.mulf %116, %116 : vector<8x256xf32>
    %cst_40 = arith.constant dense<0.000000e+00> : vector<8xf32>
    %118 = vector.multi_reduction <add>, %117, %cst_40 [1] : vector<8x256xf32> to vector<8xf32>
    %119 = vector.shape_cast %118 : vector<8xf32> to vector<8x1xf32>
    %cst_41 = arith.constant 2.560000e+02 : f32
    %120 = vector.broadcast %cst_41 : f32 to vector<8x1xf32>
    %121 = arith.divf %119, %120 : vector<8x1xf32>
    %122 = vector.broadcast %114 : vector<8x1xf32> to vector<8x256xf32>
    %123 = arith.subf %108, %122 : vector<8x256xf32>
    %cst_42 = arith.constant 1.000000e-07 : f32
    %124 = vector.broadcast %cst_42 : f32 to vector<8x1xf32>
    %125 = arith.addf %121, %124 : vector<8x1xf32>
    %126 = math.rsqrt %125 : vector<8x1xf32>
    %127 = vector.broadcast %126 : vector<8x1xf32> to vector<8x256xf32>
    %128 = arith.mulf %123, %127 : vector<8x256xf32>
    %129 = vector.broadcast %109 : vector<1x256xf32> to vector<8x256xf32>
    %130 = arith.mulf %128, %129 : vector<8x256xf32>
    %131 = vector.broadcast %110 : vector<1x256xf32> to vector<8x256xf32>
    %132 = arith.addf %130, %131 : vector<8x256xf32>
    %133 = arith.truncf %132 : vector<8x256xf32> to vector<8x256xbf16>
    %c0_43 = arith.constant 0 : index
    %c0_44 = arith.constant 0 : index
    %134 = vector.load %arg9[%c0_43, %c0_44] : memref<256x1024xbf16, #tpu.memory_space<vmem>>, vector<256x1024xbf16>
    %cst_45 = arith.constant dense<0.000000e+00> : vector<8x1024xf32>
    %135 = tpu.matmul %133, %134, %cst_45 {dimension_numbers = #tpu.dot_dimension_numbers<[1], [0], [0], [1], [0, 0, 1, 1], [], []>} : vector<8x256xbf16>, vector<256x1024xbf16>, vector<8x1024xf32> -> vector<8x1024xf32>
    %c0_46 = arith.constant 0 : index
    %c0_47 = arith.constant 0 : index
    %136 = vector.load %arg10[%c0_46, %c0_47] : memref<1x1024xf32, #tpu.memory_space<vmem>>, vector<1x1024xf32>
    %137 = vector.broadcast %136 : vector<1x1024xf32> to vector<8x1024xf32>
    %138 = arith.addf %135, %137 : vector<8x1024xf32>
    %cst_48 = arith.constant 5.000000e-01 : f32
    %139 = vector.broadcast %cst_48 : f32 to vector<8x1024xf32>
    %140 = arith.mulf %139, %138 : vector<8x1024xf32>
    %cst_49 = arith.constant 0.707106769 : f32
    %141 = vector.broadcast %cst_49 : f32 to vector<8x1024xf32>
    %142 = arith.mulf %138, %141 : vector<8x1024xf32>
    %143 = math.erf %142 : vector<8x1024xf32>
    %cst_50 = arith.constant 1.000000e+00 : f32
    %144 = vector.broadcast %cst_50 : f32 to vector<8x1024xf32>
    %145 = arith.addf %144, %143 : vector<8x1024xf32>
    %146 = arith.mulf %140, %145 : vector<8x1024xf32>
    %147 = arith.truncf %146 : vector<8x1024xf32> to vector<8x1024xbf16>
    %c0_51 = arith.constant 0 : index
    %c0_52 = arith.constant 0 : index
    %148 = vector.load %arg11[%c0_51, %c0_52] : memref<1024x256xbf16, #tpu.memory_space<vmem>>, vector<1024x256xbf16>
    %cst_53 = arith.constant dense<0.000000e+00> : vector<8x256xf32>
    %149 = tpu.matmul %147, %148, %cst_53 {dimension_numbers = #tpu.dot_dimension_numbers<[1], [0], [0], [1], [0, 0, 1, 1], [], []>} : vector<8x1024xbf16>, vector<1024x256xbf16>, vector<8x256xf32> -> vector<8x256xf32>
    %c0_54 = arith.constant 0 : index
    %c0_55 = arith.constant 0 : index
    %150 = vector.load %arg12[%c0_54, %c0_55] : memref<1x256xf32, #tpu.memory_space<vmem>>, vector<1x256xf32>
    %151 = vector.broadcast %150 : vector<1x256xf32> to vector<8x256xf32>
    %152 = arith.addf %149, %151 : vector<8x256xf32>
    %153 = arith.addf %152, %132 : vector<8x256xf32>
    %c0_56 = arith.constant 0 : index
    %c0_57 = arith.constant 0 : index
    %154 = vector.load %arg13[%c0_56, %c0_57] : memref<1x256xf32, #tpu.memory_space<vmem>>, vector<1x256xf32>
    %c0_58 = arith.constant 0 : index
    %c0_59 = arith.constant 0 : index
    %155 = vector.load %arg14[%c0_58, %c0_59] : memref<1x256xf32, #tpu.memory_space<vmem>>, vector<1x256xf32>
    %cst_60 = arith.constant dense<0.000000e+00> : vector<8xf32>
    %156 = vector.multi_reduction <add>, %153, %cst_60 [1] : vector<8x256xf32> to vector<8xf32>
    %157 = vector.shape_cast %156 : vector<8xf32> to vector<8x1xf32>
    %cst_61 = arith.constant 2.560000e+02 : f32
    %158 = vector.broadcast %cst_61 : f32 to vector<8x1xf32>
    %159 = arith.divf %157, %158 : vector<8x1xf32>
    %160 = vector.broadcast %159 : vector<8x1xf32> to vector<8x256xf32>
    %161 = arith.subf %153, %160 : vector<8x256xf32>
    %162 = arith.mulf %161, %161 : vector<8x256xf32>
    %cst_62 = arith.constant dense<0.000000e+00> : vector<8xf32>
    %163 = vector.multi_reduction <add>, %162, %cst_62 [1] : vector<8x256xf32> to vector<8xf32>
    %164 = vector.shape_cast %163 : vector<8xf32> to vector<8x1xf32>
    %cst_63 = arith.constant 2.560000e+02 : f32
    %165 = vector.broadcast %cst_63 : f32 to vector<8x1xf32>
    %166 = arith.divf %164, %165 : vector<8x1xf32>
    %167 = vector.broadcast %159 : vector<8x1xf32> to vector<8x256xf32>
    %168 = arith.subf %153, %167 : vector<8x256xf32>
    %cst_64 = arith.constant 1.000000e-07 : f32
    %169 = vector.broadcast %cst_64 : f32 to vector<8x1xf32>
    %170 = arith.addf %166, %169 : vector<8x1xf32>
    %171 = math.rsqrt %170 : vector<8x1xf32>
    %172 = vector.broadcast %171 : vector<8x1xf32> to vector<8x256xf32>
    %173 = arith.mulf %168, %172 : vector<8x256xf32>
    %174 = vector.broadcast %154 : vector<1x256xf32> to vector<8x256xf32>
    %175 = arith.mulf %173, %174 : vector<8x256xf32>
    %176 = vector.broadcast %155 : vector<1x256xf32> to vector<8x256xf32>
    %177 = arith.addf %175, %176 : vector<8x256xf32>
    %c0_65 = arith.constant 0 : index
    %c0_66 = arith.constant 0 : index
    %c0_67 = arith.constant 0 : index
    %178 = vector.load %arg15[%c0_65, %c0_66, %c0_67] : memref<1x8x256xf32, #tpu.memory_space<vmem>>, vector<1x8x256xf32>
    %179 = vector.shape_cast %178 : vector<1x8x256xf32> to vector<8x256xf32>
    %180 = vector.shape_cast %177 : vector<8x256xf32> to vector<1x8x256xf32>
    tpu.vector_store %arg15[%c0_65, %c0_66, %c0_67], %180 {strides = array<i32>} : memref<1x8x256xf32, #tpu.memory_space<vmem>>, vector<1x8x256xf32>,
    return
  }
  func.func @transform_0(%arg0: i32) -> (i32, i32, i32) {
    %c0_i32 = arith.constant 0 : i32
    %c0_i32_0 = arith.constant 0 : i32
    %c0_i32_1 = arith.constant 0 : i32
    return %arg0, %c0_i32, %c0_i32_0 : i32, i32, i32
  }
  func.func @transform_1(%arg0: i32) -> (i32, i32, i32) {
    %c0_i32 = arith.constant 0 : i32
    %c0_i32_0 = arith.constant 0 : i32
    %c0_i32_1 = arith.constant 0 : i32
    return %arg0, %c0_i32, %c0_i32_0 : i32, i32, i32
  }
  func.func @transform_2(%arg0: i32) -> (i32, i32) {
    %c0_i32 = arith.constant 0 : i32
    %c0_i32_0 = arith.constant 0 : i32
    %c0_i32_1 = arith.constant 0 : i32
    return %c0_i32, %c0_i32_0 : i32, i32
  }
  func.func @transform_3(%arg0: i32) -> (i32, i32) {
    %c0_i32 = arith.constant 0 : i32
    %c0_i32_0 = arith.constant 0 : i32
    %c0_i32_1 = arith.constant 0 : i32
    return %c0_i32, %c0_i32_0 : i32, i32
  }
  func.func @transform_4(%arg0: i32) -> (i32, i32) {
    %c0_i32 = arith.constant 0 : i32
    %c0_i32_0 = arith.constant 0 : i32
    %c0_i32_1 = arith.constant 0 : i32
    return %c0_i32, %c0_i32_0 : i32, i32
  }
  func.func @transform_5(%arg0: i32) -> (i32, i32) {
    %c0_i32 = arith.constant 0 : i32
    %c0_i32_0 = arith.constant 0 : i32
    %c0_i32_1 = arith.constant 0 : i32
    return %c0_i32, %c0_i32_0 : i32, i32
  }
  func.func @transform_6(%arg0: i32) -> (i32, i32) {
    %c0_i32 = arith.constant 0 : i32
    %c0_i32_0 = arith.constant 0 : i32
    %c0_i32_1 = arith.constant 0 : i32
    return %c0_i32, %c0_i32_0 : i32, i32
  }
  func.func @transform_7(%arg0: i32) -> (i32, i32) {
    %c0_i32 = arith.constant 0 : i32
    %c0_i32_0 = arith.constant 0 : i32
    %c0_i32_1 = arith.constant 0 : i32
    return %c0_i32, %c0_i32_0 : i32, i32
  }
  func.func @transform_8(%arg0: i32) -> (i32, i32) {
    %c0_i32 = arith.constant 0 : i32
    %c0_i32_0 = arith.constant 0 : i32
    %c0_i32_1 = arith.constant 0 : i32
    return %c0_i32, %c0_i32_0 : i32, i32
  }
  func.func @transform_9(%arg0: i32) -> (i32, i32) {
    %c0_i32 = arith.constant 0 : i32
    %c0_i32_0 = arith.constant 0 : i32
    %c0_i32_1 = arith.constant 0 : i32
    return %c0_i32, %c0_i32_0 : i32, i32
  }
  func.func @transform_10(%arg0: i32) -> (i32, i32) {
    %c0_i32 = arith.constant 0 : i32
    %c0_i32_0 = arith.constant 0 : i32
    %c0_i32_1 = arith.constant 0 : i32
    return %c0_i32, %c0_i32_0 : i32, i32
  }
  func.func @transform_11(%arg0: i32) -> (i32, i32) {
    %c0_i32 = arith.constant 0 : i32
    %c0_i32_0 = arith.constant 0 : i32
    %c0_i32_1 = arith.constant 0 : i32
    return %c0_i32, %c0_i32_0 : i32, i32
  }
  func.func @transform_12(%arg0: i32) -> (i32, i32) {
    %c0_i32 = arith.constant 0 : i32
    %c0_i32_0 = arith.constant 0 : i32
    %c0_i32_1 = arith.constant 0 : i32
    return %c0_i32, %c0_i32_0 : i32, i32
  }
  func.func @transform_13(%arg0: i32) -> (i32, i32) {
    %c0_i32 = arith.constant 0 : i32
    %c0_i32_0 = arith.constant 0 : i32
    %c0_i32_1 = arith.constant 0 : i32
    return %c0_i32, %c0_i32_0 : i32, i32
  }
  func.func @transform_14(%arg0: i32) -> (i32, i32, i32) {
    %c0_i32 = arith.constant 0 : i32
    %c0_i32_0 = arith.constant 0 : i32
    %c0_i32_1 = arith.constant 0 : i32
    return %arg0, %c0_i32, %c0_i32_0 : i32, i32, i32
  }
}

module attributes {stable_mosaic.version = 11 : i64} {
  func.func @kernel(%arg0: i32, %arg1: memref<1x8x256xf32, #tpu.memory_space<vmem>>, %arg2: memref<1x8x256xf32, #tpu.memory_space<vmem>>, %arg3: memref<1x8x256xf32, #tpu.memory_space<vmem>>, %arg4: memref<1x256xf32, #tpu.memory_space<vmem>>, %arg5: memref<1x256xf32, #tpu.memory_space<vmem>>, %arg6: memref<1x8x256xf32, #tpu.memory_space<vmem>>) attributes {dimension_semantics = [#tpu.dimension_semantics<parallel>], iteration_bounds = array<i64: 2>, scalar_prefetch = 0 : i64, scratch_operands = 0 : i64, tpu.core_type = #tpu.core_type<tc>, window_params = [{transform_indices = @transform_0, window_bounds = array<i64: 1, 8, 256>}, {transform_indices = @transform_1, window_bounds = array<i64: 1, 8, 256>}, {pipeline_mode = #tpu.pipeline_mode<synchronous>, transform_indices = @transform_2, window_bounds = array<i64: 1, 8, 256>}, {pipeline_mode = #tpu.pipeline_mode<synchronous>, transform_indices = @transform_3, window_bounds = array<i64: 1, 256>}, {pipeline_mode = #tpu.pipeline_mode<synchronous>, transform_indices = @transform_4, window_bounds = array<i64: 1, 256>}, {transform_indices = @transform_5, window_bounds = array<i64: 1, 8, 256>}]} {
    %c0 = arith.constant 0 : index
    %c0_0 = arith.constant 0 : index
    %c0_1 = arith.constant 0 : index
    %0 = vector.load %arg1[%c0, %c0_0, %c0_1] : memref<1x8x256xf32, #tpu.memory_space<vmem>>, vector<1x8x256xf32>
    %1 = vector.shape_cast %0 : vector<1x8x256xf32> to vector<8x256xf32>
    %c0_2 = arith.constant 0 : index
    %c0_3 = arith.constant 0 : index
    %c0_4 = arith.constant 0 : index
    %2 = vector.load %arg2[%c0_2, %c0_3, %c0_4] : memref<1x8x256xf32, #tpu.memory_space<vmem>>, vector<1x8x256xf32>
    %3 = vector.shape_cast %2 : vector<1x8x256xf32> to vector<8x256xf32>
    %4 = arith.addf %1, %3 : vector<8x256xf32>
    %c0_5 = arith.constant 0 : index
    %c0_6 = arith.constant 0 : index
    %c0_7 = arith.constant 0 : index
    %5 = vector.load %arg3[%c0_5, %c0_6, %c0_7] : memref<1x8x256xf32, #tpu.memory_space<vmem>>, vector<1x8x256xf32>
    %6 = vector.shape_cast %5 : vector<1x8x256xf32> to vector<8x256xf32>
    %7 = arith.addf %4, %6 : vector<8x256xf32>
    %c0_8 = arith.constant 0 : index
    %c0_9 = arith.constant 0 : index
    %8 = vector.load %arg4[%c0_8, %c0_9] : memref<1x256xf32, #tpu.memory_space<vmem>>, vector<1x256xf32>
    %c0_10 = arith.constant 0 : index
    %c0_11 = arith.constant 0 : index
    %9 = vector.load %arg5[%c0_10, %c0_11] : memref<1x256xf32, #tpu.memory_space<vmem>>, vector<1x256xf32>
    %cst = arith.constant dense<0.000000e+00> : vector<8xf32>
    %10 = vector.multi_reduction <add>, %7, %cst [1] : vector<8x256xf32> to vector<8xf32>
    %11 = vector.shape_cast %10 : vector<8xf32> to vector<8x1xf32>
    %cst_12 = arith.constant 2.560000e+02 : f32
    %12 = vector.broadcast %cst_12 : f32 to vector<8x1xf32>
    %13 = arith.divf %11, %12 : vector<8x1xf32>
    %14 = vector.broadcast %13 : vector<8x1xf32> to vector<8x256xf32>
    %15 = arith.subf %7, %14 : vector<8x256xf32>
    %16 = arith.mulf %15, %15 : vector<8x256xf32>
    %cst_13 = arith.constant dense<0.000000e+00> : vector<8xf32>
    %17 = vector.multi_reduction <add>, %16, %cst_13 [1] : vector<8x256xf32> to vector<8xf32>
    %18 = vector.shape_cast %17 : vector<8xf32> to vector<8x1xf32>
    %cst_14 = arith.constant 2.560000e+02 : f32
    %19 = vector.broadcast %cst_14 : f32 to vector<8x1xf32>
    %20 = arith.divf %18, %19 : vector<8x1xf32>
    %21 = vector.broadcast %13 : vector<8x1xf32> to vector<8x256xf32>
    %22 = arith.subf %7, %21 : vector<8x256xf32>
    %cst_15 = arith.constant 1.000000e-07 : f32
    %23 = vector.broadcast %cst_15 : f32 to vector<8x1xf32>
    %24 = arith.addf %20, %23 : vector<8x1xf32>
    %25 = math.rsqrt %24 : vector<8x1xf32>
    %26 = vector.broadcast %25 : vector<8x1xf32> to vector<8x256xf32>
    %27 = arith.mulf %22, %26 : vector<8x256xf32>
    %28 = vector.broadcast %8 : vector<1x256xf32> to vector<8x256xf32>
    %29 = arith.mulf %27, %28 : vector<8x256xf32>
    %30 = vector.broadcast %9 : vector<1x256xf32> to vector<8x256xf32>
    %31 = arith.addf %29, %30 : vector<8x256xf32>
    %c0_16 = arith.constant 0 : index
    %c0_17 = arith.constant 0 : index
    %c0_18 = arith.constant 0 : index
    %32 = vector.load %arg6[%c0_16, %c0_17, %c0_18] : memref<1x8x256xf32, #tpu.memory_space<vmem>>, vector<1x8x256xf32>
    %33 = vector.shape_cast %32 : vector<1x8x256xf32> to vector<8x256xf32>
    %34 = vector.shape_cast %31 : vector<8x256xf32> to vector<1x8x256xf32>
    tpu.vector_store %arg6[%c0_16, %c0_17, %c0_18], %34 {strides = array<i32>} : memref<1x8x256xf32, #tpu.memory_space<vmem>>, vector<1x8x256xf32>,
    return
  }
  func.func @transform_0(%arg0: i32) -> (i32, i32, i32) {
    %c0_i32 = arith.constant 0 : i32
    %c0_i32_0 = arith.constant 0 : i32
    %c0_i32_1 = arith.constant 0 : i32
    return %arg0, %c0_i32, %c0_i32_0 : i32, i32, i32
  }
  func.func @transform_1(%arg0: i32) -> (i32, i32, i32) {
    %c0_i32 = arith.constant 0 : i32
    %c0_i32_0 = arith.constant 0 : i32
    %c0_i32_1 = arith.constant 0 : i32
    return %arg0, %c0_i32, %c0_i32_0 : i32, i32, i32
  }
  func.func @transform_2(%arg0: i32) -> (i32, i32, i32) {
    %c0_i32 = arith.constant 0 : i32
    %c0_i32_0 = arith.constant 0 : i32
    %c0_i32_1 = arith.constant 0 : i32
    %c0_i32_2 = arith.constant 0 : i32
    return %c0_i32, %c0_i32_0, %c0_i32_1 : i32, i32, i32
  }
  func.func @transform_3(%arg0: i32) -> (i32, i32) {
    %c0_i32 = arith.constant 0 : i32
    %c0_i32_0 = arith.constant 0 : i32
    %c0_i32_1 = arith.constant 0 : i32
    return %c0_i32, %c0_i32_0 : i32, i32
  }
  func.func @transform_4(%arg0: i32) -> (i32, i32) {
    %c0_i32 = arith.constant 0 : i32
    %c0_i32_0 = arith.constant 0 : i32
    %c0_i32_1 = arith.constant 0 : i32
    return %c0_i32, %c0_i32_0 : i32, i32
  }
  func.func @transform_5(%arg0: i32) -> (i32, i32, i32) {
    %c0_i32 = arith.constant 0 : i32
    %c0_i32_0 = arith.constant 0 : i32
    %c0_i32_1 = arith.constant 0 : i32
    return %arg0, %c0_i32, %c0_i32_0 : i32, i32, i32
  }
}

</mosaic_0001>

<llo_original>
// kernel: bert_classifier.4
$region0: #{bert_classifier.4}
  #allocation0 [shape = 'u32[]', space=smem, size = 0x4, offset = 0x4, fixed_abs, tag = 'smem constant byte address 0x4 - core index']
  #allocation1 [shape = 'u32[144,128]{1,0:T(1,128)}', space=vmem, size = 0x12000, scoped, tag = 'internal scratch']
  %s0 = inlined_call_operand.vmem [shape: f32[2,8,256], index: 0, kind: input, shape index: {}]
  %s1 = inlined_call_operand.vmem [shape: f32[2,8,256], index: 1, kind: input, shape index: {}]
  %s2 = inlined_call_operand.vmem [shape: f32[1,8,256], index: 2, kind: input, shape index: {}]
  %s3 = inlined_call_operand.hbm [shape: f32[1,256], index: 3, kind: input, shape index: {}]
  %s4 = inlined_call_operand.hbm [shape: f32[1,256], index: 4, kind: input, shape index: {}]
  %s5 = inlined_call_operand.vmem [shape: f32[2,8,256], index: 5, kind: output, shape index: {}]
  %s6 = sld [smem:[#allocation0]]
  $region61: #{bert_classifier.4} parent=0
    _
  %s8 = ssub.s32 1, %s6
  %s9 = scalar_select 0, %s8, %s6
  $region1: #{bert_classifier.4} parent=0
    #allocation2 [shape = 'u8[1024]{0}', space=vmem, size = 0x400, scoped, tag = 'input window, operand 3, single buffered']
    #allocation3 [shape = 's32[2]{0}', space=sflag, size = 0x8, scoped, tag = 'scoped memory for bert_classifier.4']
    #allocation4 [shape = 'u8[1024]{0}', space=vmem, size = 0x400, scoped, tag = 'input window, operand 4, single buffered']
    #allocation5 [shape = 's32[1]{0}', space=sflag, size = 0x4, scoped, tag = 'scoped memory for bert_classifier.4']
    %10 = vsyncpa [#allocation3], 0
    %11 = vsyncpa [#allocation5], 0
    loop: start=0, step=1, limit=4
    $region2: #{bert_classifier.4} parent=1 // loop_pre_header
      _
    $region3: #{bert_classifier.4} parent=1 // loop_header
      %s13 = sphi 0, %s17
      %p14 = scmp.ge.s32.totalorder %s13, 4
      %s23 = sphi 0, %s25
      %s26 = sphi 0, %s23
      %s27 = sphi 0, %s26
      %s43 = sphi 0, %s27
      %s49 = sphi 0, %s51
      %s52 = sphi 0, %s49
      %s53 = sphi 0, %s52
      %s69 = sphi 0, %s53
      %s73 = sphi 0, %s73
      %s75 = sphi 0, %s73
      %s76 = sphi 0, %s75
      %s90 = sphi 0, %s76
      %s94 = sphi 0, %s94
      %s96 = sphi 0, %s94
      %s97 = sphi 0, %s96
      %s111 = sphi 0, %s97
      %s115 = sphi 0, %s115
      %s117 = sphi 0, %s115
      %s118 = sphi 0, %s117
      %s132 = sphi 0, %s118
      %s138 = sphi 0, %s140
      %s141 = sphi 0, %s138
      %s142 = sphi 0, %s141
      %s158 = sphi 0, %s142
    $region4: #{bert_classifier.4} parent=1 // loop_header_branch
      %16 = sbr.rel (%p14) target = $region8
    $region5: #{bert_classifier.4} parent=1 // loop_body
      %s18 = ssub.s32 %s13, 1
      %s19 = ssub.s32 %s13, 2
      %s20 = sadd.s32 %s13, 1
      %s21 = ssub.s32 %s13, %s20
      %p22 = scmp.eq.s32.totalorder %s21, 0
      %s24 = sadd.s32 %s23, 1
      %s25 = scalar_select %p22, %s23, %s24
      %p28 = pneg %p22
      %p29 = scmp.eq.s32.totalorder %s13, 1
      %p30 = por %p28, %p29
      %p31 = scmp.ne.s32.totalorder %s23, %s26
      %p32 = scmp.eq.s32.totalorder %s13, 0
      %p33 = por %p31, %p32
      %p34 = scmp.ne.s32.totalorder %s23, %s26
      %p35 = scmp.eq.s32.totalorder %s18, 1
      %p36 = por %p34, %p35
      %p37 = scmp.ne.s32.totalorder %s26, %s27
      %p38 = scmp.eq.s32.totalorder %s18, 0
      %p39 = por %p37, %p38
      %p40 = scmp.ne.s32.totalorder %s26, %s27
      %p41 = scmp.eq.s32.totalorder %s19, 1
      %p42 = por %p40, %p41
      %p44 = scmp.ne.s32.totalorder %s27, %s43
      %p45 = scmp.eq.s32.totalorder %s19, 0
      %p46 = por %p44, %p45
      %s47 = ssub.s32 %s13, %s20
      %p48 = scmp.eq.s32.totalorder %s47, 0
      %s50 = sadd.s32 %s49, 1
      %s51 = scalar_select %p48, %s49, %s50
      %p54 = pneg %p48
      %p55 = scmp.eq.s32.totalorder %s13, 1
      %p56 = por %p54, %p55
      %p57 = scmp.ne.s32.totalorder %s49, %s52
      %p58 = scmp.eq.s32.totalorder %s13, 0
      %p59 = por %p57, %p58
      %p60 = scmp.ne.s32.totalorder %s49, %s52
      %p61 = scmp.eq.s32.totalorder %s18, 1
      %p62 = por %p60, %p61
      %p63 = scmp.ne.s32.totalorder %s52, %s53
      %p64 = scmp.eq.s32.totalorder %s18, 0
      %p65 = por %p63, %p64
      %p66 = scmp.ne.s32.totalorder %s52, %s53
      %p67 = scmp.eq.s32.totalorder %s19, 1
      %p68 = por %p66, %p67
      %p70 = scmp.ne.s32.totalorder %s53, %s69
      %p71 = scmp.eq.s32.totalorder %s19, 0
      %p72 = por %p70, %p71
      %s74 = sadd.s32 %s73, 1
      %p77 = scmp.eq.s32.totalorder %s13, 1
      %p78 = scmp.ne.s32.totalorder %s73, %s75
      %p79 = scmp.eq.s32.totalorder %s13, 0
      %p80 = por %p78, %p79
      %p81 = scmp.ne.s32.totalorder %s73, %s75
      %p82 = scmp.eq.s32.totalorder %s18, 1
      %p83 = por %p81, %p82
      %p84 = scmp.ne.s32.totalorder %s75, %s76
      %p85 = scmp.eq.s32.totalorder %s18, 0
      %p86 = por %p84, %p85
      %p87 = scmp.ne.s32.totalorder %s75, %s76
      %p88 = scmp.eq.s32.totalorder %s19, 1
      %p89 = por %p87, %p88
      %p91 = scmp.ne.s32.totalorder %s76, %s90
      %p92 = scmp.eq.s32.totalorder %s19, 0
      %p93 = por %p91, %p92
      %s95 = sadd.s32 %s94, 1
      %p98 = scmp.eq.s32.totalorder %s13, 1
      %p99 = scmp.ne.s32.totalorder %s94, %s96
      %p100 = scmp.eq.s32.totalorder %s13, 0
      %p101 = por %p99, %p100
      %p102 = scmp.ne.s32.totalorder %s94, %s96
      %p103 = scmp.eq.s32.totalorder %s18, 1
      %p104 = por %p102, %p103
      %p105 = scmp.ne.s32.totalorder %s96, %s97
      %p106 = scmp.eq.s32.totalorder %s18, 0
      %p107 = por %p105, %p106
      %p108 = scmp.ne.s32.totalorder %s96, %s97
      %p109 = scmp.eq.s32.totalorder %s19, 1
      %p110 = por %p108, %p109
      %p112 = scmp.ne.s32.totalorder %s97, %s111
      %p113 = scmp.eq.s32.totalorder %s19, 0
      %p114 = por %p112, %p113
      %s116 = sadd.s32 %s115, 1
      %p119 = scmp.eq.s32.totalorder %s13, 1
      %p120 = scmp.ne.s32.totalorder %s115, %s117
      %p121 = scmp.eq.s32.totalorder %s13, 0
      %p122 = por %p120, %p121
      %p123 = scmp.ne.s32.totalorder %s115, %s117
      %p124 = scmp.eq.s32.totalorder %s18, 1
      %p125 = por %p123, %p124
      %p126 = scmp.ne.s32.totalorder %s117, %s118
      %p127 = scmp.eq.s32.totalorder %s18, 0
      %p128 = por %p126, %p127
      %p129 = scmp.ne.s32.totalorder %s117, %s118
      %p130 = scmp.eq.s32.totalorder %s19, 1
      %p131 = por %p129, %p130
      %p133 = scmp.ne.s32.totalorder %s118, %s132
      %p134 = scmp.eq.s32.totalorder %s19, 0
      %p135 = por %p133, %p134
      %s136 = ssub.s32 %s13, %s20
      %p137 = scmp.eq.s32.totalorder %s136, 0
      %s139 = sadd.s32 %s138, 1
      %s140 = scalar_select %p137, %s138, %s139
      %p143 = pneg %p137
      %p144 = scmp.eq.s32.totalorder %s13, 1
      %p145 = por %p143, %p144
      %p146 = scmp.ne.s32.totalorder %s138, %s141
      %p147 = scmp.eq.s32.totalorder %s13, 0
      %p148 = por %p146, %p147
      %p149 = scmp.ne.s32.totalorder %s138, %s141
      %p150 = scmp.eq.s32.totalorder %s18, 1
      %p151 = por %p149, %p150
      %p152 = scmp.ne.s32.totalorder %s141, %s142
      %p153 = scmp.eq.s32.totalorder %s18, 0
      %p154 = por %p152, %p153
      %p155 = scmp.ne.s32.totalorder %s141, %s142
      %p156 = scmp.eq.s32.totalorder %s19, 1
      %p157 = por %p155, %p156
      %p159 = scmp.ne.s32.totalorder %s142, %s158
      %p160 = scmp.eq.s32.totalorder %s19, 0
      %p161 = por %p159, %p160
      %p162 = scmp.le.s32.totalorder 1, %s13
      %p163 = scmp.lt.s32.totalorder %s13, 3
      %p164 = pnand %p162, %p163
      %p165 = pneg %p164
      // Predicated region
      $region9: #{bert_classifier.4} parent=5 // pred_check
        _
      $region10: #{bert_classifier.4} parent=5 // pred_check_branch
        %167 = sbr.rel (%p164) target = $region12
      $region11: #{bert_classifier.4} parent=5 // pred_region
        %s168 = ssub.s32 %s13, 1
        // Predicated region
        $region13: #{bert_classifier.4} parent=11 // pred_check
          %p169 = pneg %p86
        $region14: #{bert_classifier.4} parent=11 // pred_check_branch
          %171 = sbr.rel (%p169) target = $region16
        $region15: #{bert_classifier.4} parent=11 // pred_region
          _
        $region16: #{bert_classifier.4} parent=11 // pred_fallthru
          _
        // Predicated region
        $region17: #{bert_classifier.4} parent=11 // pred_check
          %p172 = pneg %p107
        $region18: #{bert_classifier.4} parent=11 // pred_check_branch
          %174 = sbr.rel (%p172) target = $region20
        $region19: #{bert_classifier.4} parent=11 // pred_region
          %s176 = ssub.s32 32, 32
          %177 = vsyncadd [#allocation3], %s176
          %s179 = sshll.u32 [#allocation2], 4
          %s180 = int_to_ptr.vmem [resolvable:$true] %s179
          %182 = dma.hbm_to_vmem [thread:$0]  %s3, 32, %s180, [#allocation3]
        $region20: #{bert_classifier.4} parent=11 // pred_fallthru
          _
        // Predicated region
        $region21: #{bert_classifier.4} parent=11 // pred_check
          %p183 = pneg %p128
        $region22: #{bert_classifier.4} parent=11 // pred_check_branch
          %185 = sbr.rel (%p183) target = $region24
        $region23: #{bert_classifier.4} parent=11 // pred_region
          %s187 = ssub.s32 32, 32
          %188 = vsyncadd [#allocation5], %s187
          %s190 = sshll.u32 [#allocation4], 4
          %s191 = int_to_ptr.vmem [resolvable:$true] %s190
          %193 = dma.hbm_to_vmem [thread:$0]  %s4, 32, %s191, [#allocation5]
        $region24: #{bert_classifier.4} parent=11 // pred_fallthru
          _
      $region12: #{bert_classifier.4} parent=5 // pred_fallthru
        _
      %p194 = scmp.lt.s32.totalorder %s13, 2
      // Predicated region
      $region25: #{bert_classifier.4} parent=5 // pred_check
        %p195 = pneg %p194
      $region26: #{bert_classifier.4} parent=5 // pred_check_branch
        %197 = sbr.rel (%p195) target = $region28
      $region27: #{bert_classifier.4} parent=5 // pred_region
        // Predicated region
        $region29: #{bert_classifier.4} parent=27 // pred_check
          %p198 = pneg %p33
        $region30: #{bert_classifier.4} parent=27 // pred_check_branch
          %200 = sbr.rel (%p198) target = $region32
        $region31: #{bert_classifier.4} parent=27 // pred_region
          %p201 = scmp.lt.s32.totalorder %s13, 1
          %s202 = scalar_select %p201, %s13, 1
          %s203 = smul.addr %s202, 2
          %s204 = smul.addr %s203, 8
          %s205 = scalar_lea.vmem %s0, %s204
        $region32: #{bert_classifier.4} parent=27 // pred_fallthru
          _
        // Predicated region
        $region33: #{bert_classifier.4} parent=27 // pred_check
          %p206 = pneg %p59
        $region34: #{bert_classifier.4} parent=27 // pred_check_branch
          %208 = sbr.rel (%p206) target = $region36
        $region35: #{bert_classifier.4} parent=27 // pred_region
          %p209 = scmp.lt.s32.totalorder %s13, 1
          %s210 = scalar_select %p209, %s13, 1
          %s211 = smul.addr %s210, 2
          %s212 = smul.addr %s211, 8
          %s213 = scalar_lea.vmem %s1, %s212
        $region36: #{bert_classifier.4} parent=27 // pred_fallthru
          _
      $region28: #{bert_classifier.4} parent=5 // pred_fallthru
        _
      %p214 = scmp.le.s32.totalorder 1, %s13
      %p215 = scmp.lt.s32.totalorder %s13, 3
      %p216 = pnand %p214, %p215
      %p217 = pneg %p216
      // Predicated region
      $region37: #{bert_classifier.4} parent=5 // pred_check
        _
      $region38: #{bert_classifier.4} parent=5 // pred_check_branch
        %219 = sbr.rel (%p216) target = $region40
      $region39: #{bert_classifier.4} parent=5 // pred_region
        %s220 = ssub.s32 %s13, 1
        // Predicated region
        $region41: #{bert_classifier.4} parent=39 // pred_check
          %p221 = pneg %p107
        $region42: #{bert_classifier.4} parent=39 // pred_check_branch
          %223 = sbr.rel (%p221) target = $region44
        $region43: #{bert_classifier.4} parent=39 // pred_region
          %224 = dma.done [#allocation3], 32
        $region44: #{bert_classifier.4} parent=39 // pred_fallthru
          _
        // Predicated region
        $region45: #{bert_classifier.4} parent=39 // pred_check
          %p225 = pneg %p128
        $region46: #{bert_classifier.4} parent=39 // pred_check_branch
          %227 = sbr.rel (%p225) target = $region48
        $region47: #{bert_classifier.4} parent=39 // pred_region
          %228 = dma.done [#allocation5], 32
        $region48: #{bert_classifier.4} parent=39 // pred_fallthru
          _
        %p229 = scmp.lt.s32.totalorder %s18, 1
        %s230 = scalar_select %p229, %s18, 1
        %s231 = smul.addr %s230, 2
        %s232 = smul.addr %s231, 8
        %s233 = scalar_lea.vmem %s0, %s232
        %p234 = pneg %p39
        %p235 = pneg %p36
        %p236 = scmp.lt.s32.totalorder %s18, 1
        %s237 = scalar_select %p236, %s18, 1
        %s238 = smul.addr %s237, 2
        %s239 = smul.addr %s238, 8
        %s240 = scalar_lea.vmem %s1, %s239
        %p241 = pneg %p65
        %p242 = pneg %p62
        %p243 = pneg %p86
        %p244 = pneg %p83
        %p245 = pneg %p107
        %p246 = pneg %p104
        %p247 = pneg %p128
        %p248 = pneg %p125
        %p249 = pneg %p154
        %p250 = pneg %p151
        %p251 = scmp.lt.s32.totalorder %s18, 1
        %s252 = scalar_select %p251, %s18, 1
        %s253 = smul.addr %s252, 2
        %s254 = smul.addr %s253, 8
        %s255 = scalar_lea.vmem %s5, %s254
        %p256 = scmp.lt.s32.totalorder %s18, 1
        %s257 = scalar_select %p256, %s18, 1
        %s258 = smul.addr %s257, 2
        %s259 = smul.addr %s258, 8
        %s260 = scalar_lea.vmem %s0, %s259
        %p261 = scmp.lt.s32.totalorder %s18, 1
        %s262 = scalar_select %p261, %s18, 1
        %s263 = smul.addr %s262, 2
        %s264 = smul.addr %s263, 8
        %s265 = scalar_lea.vmem %s1, %s264
        %p266 = scmp.lt.s32.totalorder %s18, 1
        %s267 = scalar_select %p266, %s18, 1
        %s268 = smul.addr %s267, 2
        %s269 = smul.addr %s268, 8
        %s270 = scalar_lea.vmem %s5, %s269
        %v271 = vld [vmem:[%s260] sm:$0xff]
        %v272 = vld [vmem:[%s260 + $0x8] sm:$0xff]
        %v273 = vld [vmem:[%s265] sm:$0xff]
        %v274 = vld [vmem:[%s265 + $0x8] sm:$0xff]
        %v275 = vadd.f32 %v271, %v273
        %v276 = vadd.f32 %v272, %v274
        %v277 = vld [vmem:[%s2] sm:$0xff]
        %v278 = vld [vmem:[%s2 + $0x8] sm:$0xff]
        %v279 = vadd.f32 %v275, %v277
        %v280 = vadd.f32 %v276, %v278
        %v281 = vld [vmem:[#allocation2] sm:$0x3]
        %v282 = vld [vmem:[#allocation4] sm:$0x3]
        %v283 = vadd.f32 %v279, %v280
        %284 = vadd.xlane.f32.xlu0 %v283
        %v285 = vpop.xlane.xlu0 %284
        %v286 = vrcp.pop 256.0
        %v287 = vmul.f32 %v285, %v286
        %v288 = vsub.f32 %v279, %v287
        %v289 = vsub.f32 %v280, %v287
        %v290 = vmul.f32 %v288, %v288
        %v291 = vmul.f32 %v289, %v289
        %v292 = vadd.f32 %v290, %v291
        %293 = vadd.xlane.f32.xlu0 %v292
        %v294 = vpop.xlane.xlu0 %293
        %v295 = vmul.f32 %v294, %v286
        %v296 = vadd.f32 %v295, 1e-07
        %v297 = vrsqrt.pop %v296
        %v298 = vmul.f32 %v288, %v297
        %v299 = vmul.f32 %v289, %v297
        %v301 = vlaneseq
        %v302 = vshrl.u32 %v301, 7
        %v303 = vsub.s32 0, %v302
        %v304 = vrot.slane %v281, %v303
        %v305 = vlaneseq
        %v306 = vshrl.u32 %v305, 7
        %v307 = vsub.s32 1, %v306
        %v308 = vrot.slane %v281, %v307
        %v311 = vmul.f32 %v298, %v304
        %v312 = vmul.f32 %v299, %v308
        %v314 = vlaneseq
        %v315 = vshrl.u32 %v314, 7
        %v316 = vsub.s32 0, %v315
        %v317 = vrot.slane %v282, %v316
        %v318 = vlaneseq
        %v319 = vshrl.u32 %v318, 7
        %v320 = vsub.s32 1, %v319
        %v321 = vrot.slane %v282, %v320
        %v324 = vadd.f32 %v311, %v317
        %v325 = vadd.f32 %v312, %v321
        %326 = vst [vmem:[%s270] sm:$0xff] %v324
        %327 = vst [vmem:[%s270 + $0x8] sm:$0xff] %v325
        %p328 = scmp.lt.s32.totalorder %s18, 1
        %s329 = scalar_select %p328, %s18, 1
        %s330 = smul.addr %s329, 2
        %s331 = smul.addr %s330, 8
        %s332 = scalar_lea.vmem %s5, %s331
        // Predicated region
        $region49: #{bert_classifier.4} parent=39 // pred_check
          %p333 = pneg %p151
        $region50: #{bert_classifier.4} parent=39 // pred_check_branch
          %335 = sbr.rel (%p333) target = $region52
        $region51: #{bert_classifier.4} parent=39 // pred_region
          _
        $region52: #{bert_classifier.4} parent=39 // pred_fallthru
          _
      $region40: #{bert_classifier.4} parent=5 // pred_fallthru
        _
      %p336 = scmp.le.s32.totalorder 2, %s13
      // Predicated region
      $region53: #{bert_classifier.4} parent=5 // pred_check
        %p337 = pneg %p336
      $region54: #{bert_classifier.4} parent=5 // pred_check_branch
        %339 = sbr.rel (%p337) target = $region56
      $region55: #{bert_classifier.4} parent=5 // pred_region
        %s340 = ssub.s32 %s13, 2
        // Predicated region
        $region57: #{bert_classifier.4} parent=55 // pred_check
          %p341 = pneg %p157
        $region58: #{bert_classifier.4} parent=55 // pred_check_branch
          %343 = sbr.rel (%p341) target = $region60
        $region59: #{bert_classifier.4} parent=55 // pred_region
          %p344 = scmp.lt.s32.totalorder %s19, 1
          %s345 = scalar_select %p344, %s19, 1
          %s346 = smul.addr %s345, 2
          %s347 = smul.addr %s346, 8
          %s348 = scalar_lea.vmem %s5, %s347
        $region60: #{bert_classifier.4} parent=55 // pred_fallthru
          _
      $region56: #{bert_classifier.4} parent=5 // pred_fallthru
        _
    $region6: #{bert_classifier.4} parent=1 // loop_footer
      %s17 = sadd.s32 1, %s13
    $region7: #{bert_classifier.4} parent=1 // loop_footer_branch
      %12 = sbr.rel target = $region3
    $region8: #{bert_classifier.4} parent=1 // loop_exit
      _
    %349 = vsyncpa [#allocation3], 1
    %s350 = scalar_lea.sflag [#allocation3], 1
    %351 = vsyncpa %s350, 1
    %352 = vsyncpa [#allocation5], 1

// kernel: bert_classifier.7
$region0: #{bert_classifier.7}
  #allocation0 [shape = 'u32[]', space=smem, size = 0x4, offset = 0x4, fixed_abs, tag = 'smem constant byte address 0x4 - core index']
  #allocation1 [shape = 'u32[144,128]{1,0:T(1,128)}', space=vmem, size = 0x12000, scoped, tag = 'internal scratch']
  %s0 = inlined_call_operand.vmem [shape: f32[2,256], index: 0, kind: input, shape index: {}]
  %s1 = inlined_call_operand.hbm [shape: f32[256,256], index: 1, kind: input, shape index: {}]
  %s2 = inlined_call_operand.hbm [shape: f32[1,256], index: 2, kind: input, shape index: {}]
  %s3 = inlined_call_operand.hbm [shape: f32[256,128], index: 3, kind: input, shape index: {}]
  %s4 = inlined_call_operand.hbm [shape: f32[1,128], index: 4, kind: input, shape index: {}]
  %s5 = inlined_call_operand.hbm [shape: f32[2,128], index: 5, kind: output, shape index: {}]
  %s6 = sld [smem:[#allocation0]]
  $region46: #{bert_classifier.7} parent=0
    _
  %s8 = ssub.s32 1, %s6
  %s9 = scalar_select 0, %s8, %s6
  $region1: #{bert_classifier.7} parent=0
    #allocation2 [shape = 'u8[262144]{0}', space=vmem, size = 0x40000, scoped, tag = 'input window, operand 1, single buffered']
    #allocation3 [shape = 's32[1]{0}', space=sflag, size = 0x4, scoped, tag = 'scoped memory for bert_classifier.7']
    #allocation4 [shape = 's32[1]{0}', space=sflag, size = 0x4, scoped, tag = 'scoped memory for bert_classifier.7']
    #allocation5 [shape = 'u8[1024]{0}', space=vmem, size = 0x400, scoped, tag = 'input window, operand 2, single buffered']
    #allocation6 [shape = 's32[1]{0}', space=sflag, size = 0x4, scoped, tag = 'scoped memory for bert_classifier.7']
    #allocation7 [shape = 'u8[131072]{0}', space=vmem, size = 0x20000, scoped, tag = 'input window, operand 3, single buffered']
    #allocation8 [shape = 'u8[512]{0}', space=vmem, size = 0x400, scoped, tag = 'input window, operand 4, single buffered']
    #allocation9 [shape = 's32[1]{0}', space=sflag, size = 0x4, scoped, tag = 'scoped memory for bert_classifier.7']
    #allocation10 [shape = 'u8[1024]{0}', space=vmem, size = 0x400, scoped, tag = 'output window, operand 0, single buffered']
    %10 = vsyncpa [#allocation3], 0
    %11 = vsyncpa [#allocation6], 0
    %12 = vsyncpa [#allocation9], 0
    %13 = vsyncpa [#allocation4], 0
    // Predicated region
    $region2: #{bert_classifier.7} parent=1 // pred_check
      _
    $region3: #{bert_classifier.7} parent=1 // pred_check_branch
      %15 = sbr.rel (0) target = $region5
    $region4: #{bert_classifier.7} parent=1 // pred_region
      _
    $region5: #{bert_classifier.7} parent=1 // pred_fallthru
      _
    // Predicated region
    $region6: #{bert_classifier.7} parent=1 // pred_check
      _
    $region7: #{bert_classifier.7} parent=1 // pred_check_branch
      %17 = sbr.rel (0) target = $region9
    $region8: #{bert_classifier.7} parent=1 // pred_region
      %s19 = ssub.s32 8192, 8192
      %20 = vsyncadd [#allocation3], %s19
      %s21 = sshll.u32 [#allocation2], 4
      %s22 = int_to_ptr.vmem [resolvable:$true] %s21
      %27 = dma.hbm_to_vmem [thread:$0]  %s1, 8192, %s22, [#allocation3], 256, 256, 16
    $region9: #{bert_classifier.7} parent=1 // pred_fallthru
      _
    // Predicated region
    $region10: #{bert_classifier.7} parent=1 // pred_check
      _
    $region11: #{bert_classifier.7} parent=1 // pred_check_branch
      %29 = sbr.rel (0) target = $region13
    $region12: #{bert_classifier.7} parent=1 // pred_region
      %s31 = ssub.s32 32, 32
      %32 = vsyncadd [#allocation6], %s31
      %s34 = sshll.u32 [#allocation5], 4
      %s35 = int_to_ptr.vmem [resolvable:$true] %s34
      %37 = dma.hbm_to_vmem [thread:$0]  %s2, 32, %s35, [#allocation6]
    $region13: #{bert_classifier.7} parent=1 // pred_fallthru
      _
    // Predicated region
    $region14: #{bert_classifier.7} parent=1 // pred_check
      _
    $region15: #{bert_classifier.7} parent=1 // pred_check_branch
      %39 = sbr.rel (0) target = $region17
    $region16: #{bert_classifier.7} parent=1 // pred_region
      %s41 = ssub.s32 4096, 4096
      %42 = vsyncadd [#allocation6], %s41
      %s43 = sshll.u32 [#allocation7], 4
      %s44 = int_to_ptr.vmem [resolvable:$true] %s43
      %49 = dma.hbm_to_vmem [thread:$0]  %s3, 4096, %s44, [#allocation6], 128, 128, 8
    $region17: #{bert_classifier.7} parent=1 // pred_fallthru
      _
    // Predicated region
    $region18: #{bert_classifier.7} parent=1 // pred_check
      _
    $region19: #{bert_classifier.7} parent=1 // pred_check_branch
      %51 = sbr.rel (0) target = $region21
    $region20: #{bert_classifier.7} parent=1 // pred_region
      %s53 = ssub.s32 16, 16
      %54 = vsyncadd [#allocation9], %s53
      %s56 = sshll.u32 [#allocation8], 4
      %s57 = int_to_ptr.vmem [resolvable:$true] %s56
      %59 = dma.hbm_to_vmem [thread:$0]  %s4, 16, %s57, [#allocation9]
    $region21: #{bert_classifier.7} parent=1 // pred_fallthru
      _
    // Predicated region
    $region22: #{bert_classifier.7} parent=1 // pred_check
      _
    $region23: #{bert_classifier.7} parent=1 // pred_check_branch
      %61 = sbr.rel (0) target = $region25
    $region24: #{bert_classifier.7} parent=1 // pred_region
      %62 = dma.done [#allocation3], 8192
    $region25: #{bert_classifier.7} parent=1 // pred_fallthru
      _
    // Predicated region
    $region26: #{bert_classifier.7} parent=1 // pred_check
      _
    $region27: #{bert_classifier.7} parent=1 // pred_check_branch
      %64 = sbr.rel (0) target = $region29
    $region28: #{bert_classifier.7} parent=1 // pred_region
      %65 = dma.done [#allocation6], 32
    $region29: #{bert_classifier.7} parent=1 // pred_fallthru
      _
    // Predicated region
    $region30: #{bert_classifier.7} parent=1 // pred_check
      _
    $region31: #{bert_classifier.7} parent=1 // pred_check_branch
      %67 = sbr.rel (0) target = $region33
    $region32: #{bert_classifier.7} parent=1 // pred_region
      %68 = dma.done [#allocation6], 4096
    $region33: #{bert_classifier.7} parent=1 // pred_fallthru
      _
    // Predicated region
    $region34: #{bert_classifier.7} parent=1 // pred_check
      _
    $region35: #{bert_classifier.7} parent=1 // pred_check_branch
      %70 = sbr.rel (0) target = $region37
    $region36: #{bert_classifier.7} parent=1 // pred_region
      %71 = dma.done [#allocation9], 16
    $region37: #{bert_classifier.7} parent=1 // pred_fallthru
      _
    %v72 = vld [vmem:[%s0] sm:$0xf]
    %v73 = vld [vmem:[#allocation2] sm:$0xff]
    %v74 = vld [vmem:[#allocation2 + $0x8] sm:$0xff]
    %v75 = vld [vmem:[#allocation2 + $0x10] sm:$0xff]
    %v76 = vld [vmem:[#allocation2 + $0x18] sm:$0xff]
    %v77 = vld [vmem:[#allocation2 + $0x20] sm:$0xff]
    %v78 = vld [vmem:[#allocation2 + $0x28] sm:$0xff]
    %v79 = vld [vmem:[#allocation2 + $0x30] sm:$0xff]
    %v80 = vld [vmem:[#allocation2 + $0x38] sm:$0xff]
    %v81 = vld [vmem:[#allocation2 + $0x40] sm:$0xff]
    %v82 = vld [vmem:[#allocation2 + $0x48] sm:$0xff]
    %v83 = vld [vmem:[#allocation2 + $0x50] sm:$0xff]
    %v84 = vld [vmem:[#allocation2 + $0x58] sm:$0xff]
    %v85 = vld [vmem:[#allocation2 + $0x60] sm:$0xff]
    %v86 = vld [vmem:[#allocation2 + $0x68] sm:$0xff]
    %v87 = vld [vmem:[#allocation2 + $0x70] sm:$0xff]
    %v88 = vld [vmem:[#allocation2 + $0x78] sm:$0xff]
    %v89 = vld [vmem:[#allocation2 + $0x80] sm:$0xff]
    %v90 = vld [vmem:[#allocation2 + $0x88] sm:$0xff]
    %v91 = vld [vmem:[#allocation2 + $0x90] sm:$0xff]
    %v92 = vld [vmem:[#allocation2 + $0x98] sm:$0xff]
    %v93 = vld [vmem:[#allocation2 + $0xa0] sm:$0xff]
    %v94 = vld [vmem:[#allocation2 + $0xa8] sm:$0xff]
    %v95 = vld [vmem:[#allocation2 + $0xb0] sm:$0xff]
    %v96 = vld [vmem:[#allocation2 + $0xb8] sm:$0xff]
    %v97 = vld [vmem:[#allocation2 + $0xc0] sm:$0xff]
    %v98 = vld [vmem:[#allocation2 + $0xc8] sm:$0xff]
    %v99 = vld [vmem:[#allocation2 + $0xd0] sm:$0xff]
    %v100 = vld [vmem:[#allocation2 + $0xd8] sm:$0xff]
    %v101 = vld [vmem:[#allocation2 + $0xe0] sm:$0xff]
    %v102 = vld [vmem:[#allocation2 + $0xe8] sm:$0xff]
    %v103 = vld [vmem:[#allocation2 + $0xf0] sm:$0xff]
    %v104 = vld [vmem:[#allocation2 + $0xf8] sm:$0xff]
    %v105 = vld [vmem:[#allocation2 + $0x100] sm:$0xff]
    %v106 = vld [vmem:[#allocation2 + $0x108] sm:$0xff]
    %v107 = vld [vmem:[#allocation2 + $0x110] sm:$0xff]
    %v108 = vld [vmem:[#allocation2 + $0x118] sm:$0xff]
    %v109 = vld [vmem:[#allocation2 + $0x120] sm:$0xff]
    %v110 = vld [vmem:[#allocation2 + $0x128] sm:$0xff]
    %v111 = vld [vmem:[#allocation2 + $0x130] sm:$0xff]
    %v112 = vld [vmem:[#allocation2 + $0x138] sm:$0xff]
    %v113 = vld [vmem:[#allocation2 + $0x140] sm:$0xff]
    %v114 = vld [vmem:[#allocation2 + $0x148] sm:$0xff]
    %v115 = vld [vmem:[#allocation2 + $0x150] sm:$0xff]
    %v116 = vld [vmem:[#allocation2 + $0x158] sm:$0xff]
    %v117 = vld [vmem:[#allocation2 + $0x160] sm:$0xff]
    %v118 = vld [vmem:[#allocation2 + $0x168] sm:$0xff]
    %v119 = vld [vmem:[#allocation2 + $0x170] sm:$0xff]
    %v120 = vld [vmem:[#allocation2 + $0x178] sm:$0xff]
    %v121 = vld [vmem:[#allocation2 + $0x180] sm:$0xff]
    %v122 = vld [vmem:[#allocation2 + $0x188] sm:$0xff]
    %v123 = vld [vmem:[#allocation2 + $0x190] sm:$0xff]
    %v124 = vld [vmem:[#allocation2 + $0x198] sm:$0xff]
    %v125 = vld [vmem:[#allocation2 + $0x1a0] sm:$0xff]
    %v126 = vld [vmem:[#allocation2 + $0x1a8] sm:$0xff]
    %v127 = vld [vmem:[#allocation2 + $0x1b0] sm:$0xff]
    %v128 = vld [vmem:[#allocation2 + $0x1b8] sm:$0xff]
    %v129 = vld [vmem:[#allocation2 + $0x1c0] sm:$0xff]
    %v130 = vld [vmem:[#allocation2 + $0x1c8] sm:$0xff]
    %v131 = vld [vmem:[#allocation2 + $0x1d0] sm:$0xff]
    %v132 = vld [vmem:[#allocation2 + $0x1d8] sm:$0xff]
    %v133 = vld [vmem:[#allocation2 + $0x1e0] sm:$0xff]
    %v134 = vld [vmem:[#allocation2 + $0x1e8] sm:$0xff]
    %v135 = vld [vmem:[#allocation2 + $0x1f0] sm:$0xff]
    %v136 = vld [vmem:[#allocation2 + $0x1f8] sm:$0xff]
    %v137 = vld [vmem:[#allocation5] sm:$0x3]
    %v139 = vlaneseq
    %v140 = vshrl.u32 %v139, 7
    %v141 = vsub.s32 0, %v140
    %v142 = vrot.slane %v137, %v141
    %v143 = vlaneseq
    %v144 = vshrl.u32 %v143, 7
    %v145 = vsub.s32 1, %v144
    %v146 = vrot.slane %v137, %v145
    %v151 = vunpack.c.l.s4 1983009808
    %v152 = vunpack.c.0.s8 %v151
    %v153 = vlaneseq
    %v154 = vshrl.u32 %v153, 7
    %v155 = vsub.s32 %v152, %v154
    %v156 = vrot.slane %v72, %v155
    %v157 = vcombine.high %v156, %v156
    %160 = vmatprep.subr.mxu0 %v74
    %161 = vmatpush1.msra.mxu0 %v73
    %162 = vmatprep.subr.mxu0 %v76
    %163 = vmatpush1.msra.mxu0 %v75
    %164 = vmatprep.subr.mxu0 %v78
    %165 = vmatpush1.msra.mxu0 %v77
    %166 = vmatprep.subr.mxu0 %v80
    %167 = vmatpush1.msra.mxu0 %v79
    %168 = vmatprep.subr.mxu0 %v82
    %169 = vmatpush1.msra.mxu0 %v81
    %170 = vmatprep.subr.mxu0 %v84
    %171 = vmatpush1.msra.mxu0 %v83
    %172 = vmatprep.subr.mxu0 %v86
    %173 = vmatpush1.msra.mxu0 %v85
    %174 = vmatprep.subr.mxu0 %v88
    %175 = vmatpush1.msra.mxu0 %v87
    %176 = vmatprep.subr.mxu0 %v90
    %177 = vmatpush1.msra.mxu0 %v89
    %178 = vmatprep.subr.mxu0 %v92
    %179 = vmatpush1.msra.mxu0 %v91
    %180 = vmatprep.subr.mxu0 %v94
    %181 = vmatpush1.msra.mxu0 %v93
    %182 = vmatprep.subr.mxu0 %v96
    %183 = vmatpush1.msra.mxu0 %v95
    %184 = vmatprep.subr.mxu0 %v98
    %185 = vmatpush1.msra.mxu0 %v97
    %186 = vmatprep.subr.mxu0 %v100
    %187 = vmatpush1.msra.mxu0 %v99
    %188 = vmatprep.subr.mxu0 %v102
    %189 = vmatpush1.msra.mxu0 %v101
    %190 = vmatprep.subr.mxu0 %v104
    %191 = vmatpush1.msra.mxu0 %v103
    %192 = vmatprep.subr.mxu0 %v106
    %193 = vmatpush1.msra.mxu0 %v105
    %194 = vmatprep.subr.mxu0 %v108
    %195 = vmatpush1.msra.mxu0 %v107
    %196 = vmatprep.subr.mxu0 %v110
    %197 = vmatpush1.msra.mxu0 %v109
    %198 = vmatprep.subr.mxu0 %v112
    %199 = vmatpush1.msra.mxu0 %v111
    %200 = vmatprep.subr.mxu0 %v114
    %201 = vmatpush1.msra.mxu0 %v113
    %202 = vmatprep.subr.mxu0 %v116
    %203 = vmatpush1.msra.mxu0 %v115
    %204 = vmatprep.subr.mxu0 %v118
    %205 = vmatpush1.msra.mxu0 %v117
    %206 = vmatprep.subr.mxu0 %v120
    %207 = vmatpush1.msra.mxu0 %v119
    %208 = vmatprep.subr.mxu0 %v122
    %209 = vmatpush1.msra.mxu0 %v121
    %210 = vmatprep.subr.mxu0 %v124
    %211 = vmatpush1.msra.mxu0 %v123
    %212 = vmatprep.subr.mxu0 %v126
    %213 = vmatpush1.msra.mxu0 %v125
    %214 = vmatprep.subr.mxu0 %v128
    %215 = vmatpush1.msra.mxu0 %v127
    %216 = vmatprep.subr.mxu0 %v130
    %217 = vmatpush1.msra.mxu0 %v129
    %218 = vmatprep.subr.mxu0 %v132
    %219 = vmatpush1.msra.mxu0 %v131
    %220 = vmatprep.subr.mxu0 %v134
    %221 = vmatpush1.msra.mxu0 %v133
    %222 = vmatprep.subr.mxu0 %v136
    %223 = vmatpush1.msra.mxu0 %v135
    %224 = vmatprep.mubr.f32.mxu0 %v157
    %225 = vmatmul.mubr.f32.gmra.mrb[0].mxu0 %v156
    %v226 = vpop.f32.mrb[0].mxu0
    %v227 = vadd.f32 %v142, %v226
    %v228 = vpop.f32.mrb[0].mxu0
    %v229 = vadd.f32 %v146, %v228
    %230 = vdwg.mxu0
    %v231 = vtanh.pop %v227
    %v232 = vtanh.pop %v229
    %v233 = vld [vmem:[#allocation7] sm:$0xff]
    %v234 = vld [vmem:[#allocation7 + $0x8] sm:$0xff]
    %v235 = vld [vmem:[#allocation7 + $0x10] sm:$0xff]
    %v236 = vld [vmem:[#allocation7 + $0x18] sm:$0xff]
    %v237 = vld [vmem:[#allocation7 + $0x20] sm:$0xff]
    %v238 = vld [vmem:[#allocation7 + $0x28] sm:$0xff]
    %v239 = vld [vmem:[#allocation7 + $0x30] sm:$0xff]
    %v240 = vld [vmem:[#allocation7 + $0x38] sm:$0xff]
    %v241 = vld [vmem:[#allocation7 + $0x40] sm:$0xff]
    %v242 = vld [vmem:[#allocation7 + $0x48] sm:$0xff]
    %v243 = vld [vmem:[#allocation7 + $0x50] sm:$0xff]
    %v244 = vld [vmem:[#allocation7 + $0x58] sm:$0xff]
    %v245 = vld [vmem:[#allocation7 + $0x60] sm:$0xff]
    %v246 = vld [vmem:[#allocation7 + $0x68] sm:$0xff]
    %v247 = vld [vmem:[#allocation7 + $0x70] sm:$0xff]
    %v248 = vld [vmem:[#allocation7 + $0x78] sm:$0xff]
    %v249 = vld [vmem:[#allocation7 + $0x80] sm:$0xff]
    %v250 = vld [vmem:[#allocation7 + $0x88] sm:$0xff]
    %v251 = vld [vmem:[#allocation7 + $0x90] sm:$0xff]
    %v252 = vld [vmem:[#allocation7 + $0x98] sm:$0xff]
    %v253 = vld [vmem:[#allocation7 + $0xa0] sm:$0xff]
    %v254 = vld [vmem:[#allocation7 + $0xa8] sm:$0xff]
    %v255 = vld [vmem:[#allocation7 + $0xb0] sm:$0xff]
    %v256 = vld [vmem:[#allocation7 + $0xb8] sm:$0xff]
    %v257 = vld [vmem:[#allocation7 + $0xc0] sm:$0xff]
    %v258 = vld [vmem:[#allocation7 + $0xc8] sm:$0xff]
    %v259 = vld [vmem:[#allocation7 + $0xd0] sm:$0xff]
    %v260 = vld [vmem:[#allocation7 + $0xd8] sm:$0xff]
    %v261 = vld [vmem:[#allocation7 + $0xe0] sm:$0xff]
    %v262 = vld [vmem:[#allocation7 + $0xe8] sm:$0xff]
    %v263 = vld [vmem:[#allocation7 + $0xf0] sm:$0xff]
    %v264 = vld [vmem:[#allocation7 + $0xf8] sm:$0xff]
    %v265 = vld [vmem:[#allocation8] sm:$0x1]
    %v267 = vlaneseq
    %v268 = vshrl.u32 %v267, 7
    %v269 = vsub.s32 0, %v268
    %v270 = vrot.slane %v265, %v269
    %272 = vmatprep.subr.mxu0 0.0
    %273 = vmatpush1.msra.mxu0 %v233
    %274 = vmatprep.subr.mxu0 0.0
    %275 = vmatpush1.msra.mxu0 %v234
    %276 = vmatprep.subr.mxu0 0.0
    %277 = vmatpush1.msra.mxu0 %v235
    %278 = vmatprep.subr.mxu0 0.0
    %279 = vmatpush1.msra.mxu0 %v236
    %280 = vmatprep.subr.mxu0 0.0
    %281 = vmatpush1.msra.mxu0 %v237
    %282 = vmatprep.subr.mxu0 0.0
    %283 = vmatpush1.msra.mxu0 %v238
    %284 = vmatprep.subr.mxu0 0.0
    %285 = vmatpush1.msra.mxu0 %v239
    %286 = vmatprep.subr.mxu0 0.0
    %287 = vmatpush1.msra.mxu0 %v240
    %288 = vmatprep.subr.mxu0 0.0
    %289 = vmatpush1.msra.mxu0 %v241
    %290 = vmatprep.subr.mxu0 0.0
    %291 = vmatpush1.msra.mxu0 %v242
    %292 = vmatprep.subr.mxu0 0.0
    %293 = vmatpush1.msra.mxu0 %v243
    %294 = vmatprep.subr.mxu0 0.0
    %295 = vmatpush1.msra.mxu0 %v244
    %296 = vmatprep.subr.mxu0 0.0
    %297 = vmatpush1.msra.mxu0 %v245
    %298 = vmatprep.subr.mxu0 0.0
    %299 = vmatpush1.msra.mxu0 %v246
    %300 = vmatprep.subr.mxu0 0.0
    %301 = vmatpush1.msra.mxu0 %v247
    %302 = vmatprep.subr.mxu0 0.0
    %303 = vmatpush1.msra.mxu0 %v248
    %304 = vmatprep.subr.mxu0 0.0
    %305 = vmatpush1.msra.mxu0 %v249
    %306 = vmatprep.subr.mxu0 0.0
    %307 = vmatpush1.msra.mxu0 %v250
    %308 = vmatprep.subr.mxu0 0.0
    %309 = vmatpush1.msra.mxu0 %v251
    %310 = vmatprep.subr.mxu0 0.0
    %311 = vmatpush1.msra.mxu0 %v252
    %312 = vmatprep.subr.mxu0 0.0
    %313 = vmatpush1.msra.mxu0 %v253
    %314 = vmatprep.subr.mxu0 0.0
    %315 = vmatpush1.msra.mxu0 %v254
    %316 = vmatprep.subr.mxu0 0.0
    %317 = vmatpush1.msra.mxu0 %v255
    %318 = vmatprep.subr.mxu0 0.0
    %319 = vmatpush1.msra.mxu0 %v256
    %320 = vmatprep.subr.mxu0 0.0
    %321 = vmatpush1.msra.mxu0 %v257
    %322 = vmatprep.subr.mxu0 0.0
    %323 = vmatpush1.msra.mxu0 %v258
    %324 = vmatprep.subr.mxu0 0.0
    %325 = vmatpush1.msra.mxu0 %v259
    %326 = vmatprep.subr.mxu0 0.0
    %327 = vmatpush1.msra.mxu0 %v260
    %328 = vmatprep.subr.mxu0 0.0
    %329 = vmatpush1.msra.mxu0 %v261
    %330 = vmatprep.subr.mxu0 0.0
    %331 = vmatpush1.msra.mxu0 %v262
    %332 = vmatprep.subr.mxu0 0.0
    %333 = vmatpush1.msra.mxu0 %v263
    %334 = vmatprep.subr.mxu0 0.0
    %335 = vmatpush1.msra.mxu0 %v264
    %336 = vmatprep.mubr.f32.mxu0 %v232
    %337 = vmatmul.mubr.f32.gmra.mrb[0].mxu0 %v231
    %v338 = vpop.f32.mrb[0].mxu0
    %v339 = vadd.f32 %v270, %v338
    %v340 = vpop.f32.mrb[0].mxu0
    %341 = vdwg.mxu0
    %342 = vst [vmem:[#allocation10] sm:$0x3] %v339
    // Predicated region
    $region38: #{bert_classifier.7} parent=1 // pred_check
      _
    $region39: #{bert_classifier.7} parent=1 // pred_check_branch
      %344 = sbr.rel (0) target = $region41
    $region40: #{bert_classifier.7} parent=1 // pred_region
      %s346 = ssub.s32 32, 32
      %347 = vsyncadd [#allocation4], %s346
      %s349 = sshll.u32 [#allocation10], 4
      %s350 = int_to_ptr.vmem [resolvable:$true] %s349
      %352 = dma.vmem_to_hbm [thread:$0]  %s350, 32, %s5, [#allocation4]
    $region41: #{bert_classifier.7} parent=1 // pred_fallthru
      _
    // Predicated region
    $region42: #{bert_classifier.7} parent=1 // pred_check
      _
    $region43: #{bert_classifier.7} parent=1 // pred_check_branch
      %354 = sbr.rel (0) target = $region45
    $region44: #{bert_classifier.7} parent=1 // pred_region
      %355 = dma.done [#allocation4], 32
    $region45: #{bert_classifier.7} parent=1 // pred_fallthru
      _
    %356 = vsyncpa [#allocation3], 1
    %357 = vsyncpa [#allocation6], 1
    %358 = vsyncpa [#allocation9], 1
    %359 = vsyncpa [#allocation4], 1

// kernel: bert_classifier.5
$region0: #{bert_classifier.5}
  #allocation0 [shape = 'u32[]', space=smem, size = 0x4, offset = 0x4, fixed_abs, tag = 'smem constant byte address 0x4 - core index']
  #allocation1 [shape = 'u32[144,128]{1,0:T(1,128)}', space=vmem, size = 0x12000, scoped, tag = 'internal scratch']
  %s0 = inlined_call_operand.vmem [shape: f32[2,8,256], index: 0, kind: input, shape index: {}]
  %s1 = inlined_call_operand.vmem [shape: f32[2,1,8], index: 1, kind: input, shape index: {}]
  %s2 = inlined_call_operand.hbm [shape: bf16[256,768], index: 2, kind: input, shape index: {}]
  %s3 = inlined_call_operand.hbm [shape: f32[1,768], index: 3, kind: input, shape index: {}]
  %s4 = inlined_call_operand.hbm [shape: bf16[256,256], index: 4, kind: input, shape index: {}]
  %s5 = inlined_call_operand.hbm [shape: f32[1,256], index: 5, kind: input, shape index: {}]
  %s6 = inlined_call_operand.hbm [shape: f32[1,256], index: 6, kind: input, shape index: {}]
  %s7 = inlined_call_operand.hbm [shape: f32[1,256], index: 7, kind: input, shape index: {}]
  %s8 = inlined_call_operand.hbm [shape: bf16[256,1024], index: 8, kind: input, shape index: {}]
  %s9 = inlined_call_operand.hbm [shape: f32[1,1024], index: 9, kind: input, shape index: {}]
  %s10 = inlined_call_operand.hbm [shape: bf16[1024,256], index: 10, kind: input, shape index: {}]
  %s11 = inlined_call_operand.hbm [shape: f32[1,256], index: 11, kind: input, shape index: {}]
  %s12 = inlined_call_operand.hbm [shape: f32[1,256], index: 12, kind: input, shape index: {}]
  %s13 = inlined_call_operand.hbm [shape: f32[1,256], index: 13, kind: input, shape index: {}]
  %s14 = inlined_call_operand.vmem [shape: f32[2,8,256], index: 14, kind: output, shape index: {}]
  %s15 = sld [smem:[#allocation0]]
  $region137: #{bert_classifier.5} parent=0
    _
  %s17 = ssub.s32 1, %s15
  %s18 = scalar_select 0, %s17, %s15
  $region1: #{bert_classifier.5} parent=0
    #allocation2 [shape = 'u8[393216]{0}', space=vmem, size = 0x60000, scoped, tag = 'input window, operand 2, single buffered']
    #allocation3 [shape = 's32[2]{0}', space=sflag, size = 0x8, scoped, tag = 'scoped memory for bert_classifier.5']
    #allocation4 [shape = 'u8[3072]{0}', space=vmem, size = 0xc00, scoped, tag = 'input window, operand 3, single buffered']
    #allocation5 [shape = 's32[1]{0}', space=sflag, size = 0x4, scoped, tag = 'scoped memory for bert_classifier.5']
    #allocation6 [shape = 'u8[131072]{0}', space=vmem, size = 0x20000, scoped, tag = 'input window, operand 4, single buffered']
    #allocation7 [shape = 'u8[1024]{0}', space=vmem, size = 0x400, scoped, tag = 'input window, operand 5, single buffered']
    #allocation8 [shape = 's32[1]{0}', space=sflag, size = 0x4, scoped, tag = 'scoped memory for bert_classifier.5']
    #allocation9 [shape = 'u8[1024]{0}', space=vmem, size = 0x400, scoped, tag = 'input window, operand 6, single buffered']
    #allocation10 [shape = 'u8[1024]{0}', space=vmem, size = 0x400, scoped, tag = 'input window, operand 7, single buffered']
    #allocation11 [shape = 's32[1]{0}', space=sflag, size = 0x4, scoped, tag = 'scoped memory for bert_classifier.5']
    #allocation12 [shape = 'u8[524288]{0}', space=vmem, size = 0x80000, scoped, tag = 'input window, operand 8, single buffered']
    #allocation13 [shape = 'u8[4096]{0}', space=vmem, size = 0x1000, scoped, tag = 'input window, operand 9, single buffered']
    #allocation14 [shape = 's32[1]{0}', space=sflag, size = 0x4, scoped, tag = 'scoped memory for bert_classifier.5']
    #allocation15 [shape = 'u8[524288]{0}', space=vmem, size = 0x80000, scoped, tag = 'input window, operand 10, single buffered']
    #allocation16 [shape = 'u8[1024]{0}', space=vmem, size = 0x400, scoped, tag = 'input window, operand 11, single buffered']
    #allocation17 [shape = 's32[1]{0}', space=sflag, size = 0x4, scoped, tag = 'scoped memory for bert_classifier.5']
    #allocation18 [shape = 'u8[1024]{0}', space=vmem, size = 0x400, scoped, tag = 'input window, operand 12, single buffered']
    #allocation19 [shape = 'u8[1024]{0}', space=vmem, size = 0x400, scoped, tag = 'input window, operand 13, single buffered']
    #allocation20 [shape = 's32[1]{0}', space=sflag, size = 0x4, scoped, tag = 'scoped memory for bert_classifier.5']
    %19 = vsyncpa [#allocation3], 0
    %20 = vsyncpa [#allocation5], 0
    %21 = vsyncpa [#allocation8], 0
    %22 = vsyncpa [#allocation11], 0
    %23 = vsyncpa [#allocation14], 0
    %24 = vsyncpa [#allocation17], 0
    %25 = vsyncpa [#allocation20], 0
    loop: start=0, step=1, limit=4
    $region2: #{bert_classifier.5} parent=1 // loop_pre_header
      _
    $region3: #{bert_classifier.5} parent=1 // loop_header
      %s27 = sphi 0, %s31
      %p28 = scmp.ge.s32.totalorder %s27, 4
      %s37 = sphi 0, %s39
      %s40 = sphi 0, %s37
      %s41 = sphi 0, %s40
      %s57 = sphi 0, %s41
      %s63 = sphi 0, %s65
      %s66 = sphi 0, %s63
      %s67 = sphi 0, %s66
      %s83 = sphi 0, %s67
      %s87 = sphi 0, %s87
      %s89 = sphi 0, %s87
      %s90 = sphi 0, %s89
      %s104 = sphi 0, %s90
      %s108 = sphi 0, %s108
      %s110 = sphi 0, %s108
      %s111 = sphi 0, %s110
      %s125 = sphi 0, %s111
      %s129 = sphi 0, %s129
      %s131 = sphi 0, %s129
      %s132 = sphi 0, %s131
      %s146 = sphi 0, %s132
      %s150 = sphi 0, %s150
      %s152 = sphi 0, %s150
      %s153 = sphi 0, %s152
      %s167 = sphi 0, %s153
      %s171 = sphi 0, %s171
      %s173 = sphi 0, %s171
      %s174 = sphi 0, %s173
      %s188 = sphi 0, %s174
      %s192 = sphi 0, %s192
      %s194 = sphi 0, %s192
      %s195 = sphi 0, %s194
      %s209 = sphi 0, %s195
      %s213 = sphi 0, %s213
      %s215 = sphi 0, %s213
      %s216 = sphi 0, %s215
      %s230 = sphi 0, %s216
      %s234 = sphi 0, %s234
      %s236 = sphi 0, %s234
      %s237 = sphi 0, %s236
      %s251 = sphi 0, %s237
      %s255 = sphi 0, %s255
      %s257 = sphi 0, %s255
      %s258 = sphi 0, %s257
      %s272 = sphi 0, %s258
      %s276 = sphi 0, %s276
      %s278 = sphi 0, %s276
      %s279 = sphi 0, %s278
      %s293 = sphi 0, %s279
      %s297 = sphi 0, %s297
      %s299 = sphi 0, %s297
      %s300 = sphi 0, %s299
      %s314 = sphi 0, %s300
      %s318 = sphi 0, %s318
      %s320 = sphi 0, %s318
      %s321 = sphi 0, %s320
      %s335 = sphi 0, %s321
      %s341 = sphi 0, %s343
      %s344 = sphi 0, %s341
      %s345 = sphi 0, %s344
      %s361 = sphi 0, %s345
    $region4: #{bert_classifier.5} parent=1 // loop_header_branch
      %30 = sbr.rel (%p28) target = $region8
    $region5: #{bert_classifier.5} parent=1 // loop_body
      %s32 = ssub.s32 %s27, 1
      %s33 = ssub.s32 %s27, 2
      %s34 = sadd.s32 %s27, 1
      %s35 = ssub.s32 %s27, %s34
      %p36 = scmp.eq.s32.totalorder %s35, 0
      %s38 = sadd.s32 %s37, 1
      %s39 = scalar_select %p36, %s37, %s38
      %p42 = pneg %p36
      %p43 = scmp.eq.s32.totalorder %s27, 1
      %p44 = por %p42, %p43
      %p45 = scmp.ne.s32.totalorder %s37, %s40
      %p46 = scmp.eq.s32.totalorder %s27, 0
      %p47 = por %p45, %p46
      %p48 = scmp.ne.s32.totalorder %s37, %s40
      %p49 = scmp.eq.s32.totalorder %s32, 1
      %p50 = por %p48, %p49
      %p51 = scmp.ne.s32.totalorder %s40, %s41
      %p52 = scmp.eq.s32.totalorder %s32, 0
      %p53 = por %p51, %p52
      %p54 = scmp.ne.s32.totalorder %s40, %s41
      %p55 = scmp.eq.s32.totalorder %s33, 1
      %p56 = por %p54, %p55
      %p58 = scmp.ne.s32.totalorder %s41, %s57
      %p59 = scmp.eq.s32.totalorder %s33, 0
      %p60 = por %p58, %p59
      %s61 = ssub.s32 %s27, %s34
      %p62 = scmp.eq.s32.totalorder %s61, 0
      %s64 = sadd.s32 %s63, 1
      %s65 = scalar_select %p62, %s63, %s64
      %p68 = pneg %p62
      %p69 = scmp.eq.s32.totalorder %s27, 1
      %p70 = por %p68, %p69
      %p71 = scmp.ne.s32.totalorder %s63, %s66
      %p72 = scmp.eq.s32.totalorder %s27, 0
      %p73 = por %p71, %p72
      %p74 = scmp.ne.s32.totalorder %s63, %s66
      %p75 = scmp.eq.s32.totalorder %s32, 1
      %p76 = por %p74, %p75
      %p77 = scmp.ne.s32.totalorder %s66, %s67
      %p78 = scmp.eq.s32.totalorder %s32, 0
      %p79 = por %p77, %p78
      %p80 = scmp.ne.s32.totalorder %s66, %s67
      %p81 = scmp.eq.s32.totalorder %s33, 1
      %p82 = por %p80, %p81
      %p84 = scmp.ne.s32.totalorder %s67, %s83
      %p85 = scmp.eq.s32.totalorder %s33, 0
      %p86 = por %p84, %p85
      %s88 = sadd.s32 %s87, 1
      %p91 = scmp.eq.s32.totalorder %s27, 1
      %p92 = scmp.ne.s32.totalorder %s87, %s89
      %p93 = scmp.eq.s32.totalorder %s27, 0
      %p94 = por %p92, %p93
      %p95 = scmp.ne.s32.totalorder %s87, %s89
      %p96 = scmp.eq.s32.totalorder %s32, 1
      %p97 = por %p95, %p96
      %p98 = scmp.ne.s32.totalorder %s89, %s90
      %p99 = scmp.eq.s32.totalorder %s32, 0
      %p100 = por %p98, %p99
      %p101 = scmp.ne.s32.totalorder %s89, %s90
      %p102 = scmp.eq.s32.totalorder %s33, 1
      %p103 = por %p101, %p102
      %p105 = scmp.ne.s32.totalorder %s90, %s104
      %p106 = scmp.eq.s32.totalorder %s33, 0
      %p107 = por %p105, %p106
      %s109 = sadd.s32 %s108, 1
      %p112 = scmp.eq.s32.totalorder %s27, 1
      %p113 = scmp.ne.s32.totalorder %s108, %s110
      %p114 = scmp.eq.s32.totalorder %s27, 0
      %p115 = por %p113, %p114
      %p116 = scmp.ne.s32.totalorder %s108, %s110
      %p117 = scmp.eq.s32.totalorder %s32, 1
      %p118 = por %p116, %p117
      %p119 = scmp.ne.s32.totalorder %s110, %s111
      %p120 = scmp.eq.s32.totalorder %s32, 0
      %p121 = por %p119, %p120
      %p122 = scmp.ne.s32.totalorder %s110, %s111
      %p123 = scmp.eq.s32.totalorder %s33, 1
      %p124 = por %p122, %p123
      %p126 = scmp.ne.s32.totalorder %s111, %s125
      %p127 = scmp.eq.s32.totalorder %s33, 0
      %p128 = por %p126, %p127
      %s130 = sadd.s32 %s129, 1
      %p133 = scmp.eq.s32.totalorder %s27, 1
      %p134 = scmp.ne.s32.totalorder %s129, %s131
      %p135 = scmp.eq.s32.totalorder %s27, 0
      %p136 = por %p134, %p135
      %p137 = scmp.ne.s32.totalorder %s129, %s131
      %p138 = scmp.eq.s32.totalorder %s32, 1
      %p139 = por %p137, %p138
      %p140 = scmp.ne.s32.totalorder %s131, %s132
      %p141 = scmp.eq.s32.totalorder %s32, 0
      %p142 = por %p140, %p141
      %p143 = scmp.ne.s32.totalorder %s131, %s132
      %p144 = scmp.eq.s32.totalorder %s33, 1
      %p145 = por %p143, %p144
      %p147 = scmp.ne.s32.totalorder %s132, %s146
      %p148 = scmp.eq.s32.totalorder %s33, 0
      %p149 = por %p147, %p148
      %s151 = sadd.s32 %s150, 1
      %p154 = scmp.eq.s32.totalorder %s27, 1
      %p155 = scmp.ne.s32.totalorder %s150, %s152
      %p156 = scmp.eq.s32.totalorder %s27, 0
      %p157 = por %p155, %p156
      %p158 = scmp.ne.s32.totalorder %s150, %s152
      %p159 = scmp.eq.s32.totalorder %s32, 1
      %p160 = por %p158, %p159
      %p161 = scmp.ne.s32.totalorder %s152, %s153
      %p162 = scmp.eq.s32.totalorder %s32, 0
      %p163 = por %p161, %p162
      %p164 = scmp.ne.s32.totalorder %s152, %s153
      %p165 = scmp.eq.s32.totalorder %s33, 1
      %p166 = por %p164, %p165
      %p168 = scmp.ne.s32.totalorder %s153, %s167
      %p169 = scmp.eq.s32.totalorder %s33, 0
      %p170 = por %p168, %p169
      %s172 = sadd.s32 %s171, 1
      %p175 = scmp.eq.s32.totalorder %s27, 1
      %p176 = scmp.ne.s32.totalorder %s171, %s173
      %p177 = scmp.eq.s32.totalorder %s27, 0
      %p178 = por %p176, %p177
      %p179 = scmp.ne.s32.totalorder %s171, %s173
      %p180 = scmp.eq.s32.totalorder %s32, 1
      %p181 = por %p179, %p180
      %p182 = scmp.ne.s32.totalorder %s173, %s174
      %p183 = scmp.eq.s32.totalorder %s32, 0
      %p184 = por %p182, %p183
      %p185 = scmp.ne.s32.totalorder %s173, %s174
      %p186 = scmp.eq.s32.totalorder %s33, 1
      %p187 = por %p185, %p186
      %p189 = scmp.ne.s32.totalorder %s174, %s188
      %p190 = scmp.eq.s32.totalorder %s33, 0
      %p191 = por %p189, %p190
      %s193 = sadd.s32 %s192, 1
      %p196 = scmp.eq.s32.totalorder %s27, 1
      %p197 = scmp.ne.s32.totalorder %s192, %s194
      %p198 = scmp.eq.s32.totalorder %s27, 0
      %p199 = por %p197, %p198
      %p200 = scmp.ne.s32.totalorder %s192, %s194
      %p201 = scmp.eq.s32.totalorder %s32, 1
      %p202 = por %p200, %p201
      %p203 = scmp.ne.s32.totalorder %s194, %s195
      %p204 = scmp.eq.s32.totalorder %s32, 0
      %p205 = por %p203, %p204
      %p206 = scmp.ne.s32.totalorder %s194, %s195
      %p207 = scmp.eq.s32.totalorder %s33, 1
      %p208 = por %p206, %p207
      %p210 = scmp.ne.s32.totalorder %s195, %s209
      %p211 = scmp.eq.s32.totalorder %s33, 0
      %p212 = por %p210, %p211
      %s214 = sadd.s32 %s213, 1
      %p217 = scmp.eq.s32.totalorder %s27, 1
      %p218 = scmp.ne.s32.totalorder %s213, %s215
      %p219 = scmp.eq.s32.totalorder %s27, 0
      %p220 = por %p218, %p219
      %p221 = scmp.ne.s32.totalorder %s213, %s215
      %p222 = scmp.eq.s32.totalorder %s32, 1
      %p223 = por %p221, %p222
      %p224 = scmp.ne.s32.totalorder %s215, %s216
      %p225 = scmp.eq.s32.totalorder %s32, 0
      %p226 = por %p224, %p225
      %p227 = scmp.ne.s32.totalorder %s215, %s216
      %p228 = scmp.eq.s32.totalorder %s33, 1
      %p229 = por %p227, %p228
      %p231 = scmp.ne.s32.totalorder %s216, %s230
      %p232 = scmp.eq.s32.totalorder %s33, 0
      %p233 = por %p231, %p232
      %s235 = sadd.s32 %s234, 1
      %p238 = scmp.eq.s32.totalorder %s27, 1
      %p239 = scmp.ne.s32.totalorder %s234, %s236
      %p240 = scmp.eq.s32.totalorder %s27, 0
      %p241 = por %p239, %p240
      %p242 = scmp.ne.s32.totalorder %s234, %s236
      %p243 = scmp.eq.s32.totalorder %s32, 1
      %p244 = por %p242, %p243
      %p245 = scmp.ne.s32.totalorder %s236, %s237
      %p246 = scmp.eq.s32.totalorder %s32, 0
      %p247 = por %p245, %p246
      %p248 = scmp.ne.s32.totalorder %s236, %s237
      %p249 = scmp.eq.s32.totalorder %s33, 1
      %p250 = por %p248, %p249
      %p252 = scmp.ne.s32.totalorder %s237, %s251
      %p253 = scmp.eq.s32.totalorder %s33, 0
      %p254 = por %p252, %p253
      %s256 = sadd.s32 %s255, 1
      %p259 = scmp.eq.s32.totalorder %s27, 1
      %p260 = scmp.ne.s32.totalorder %s255, %s257
      %p261 = scmp.eq.s32.totalorder %s27, 0
      %p262 = por %p260, %p261
      %p263 = scmp.ne.s32.totalorder %s255, %s257
      %p264 = scmp.eq.s32.totalorder %s32, 1
      %p265 = por %p263, %p264
      %p266 = scmp.ne.s32.totalorder %s257, %s258
      %p267 = scmp.eq.s32.totalorder %s32, 0
      %p268 = por %p266, %p267
      %p269 = scmp.ne.s32.totalorder %s257, %s258
      %p270 = scmp.eq.s32.totalorder %s33, 1
      %p271 = por %p269, %p270
      %p273 = scmp.ne.s32.totalorder %s258, %s272
      %p274 = scmp.eq.s32.totalorder %s33, 0
      %p275 = por %p273, %p274
      %s277 = sadd.s32 %s276, 1
      %p280 = scmp.eq.s32.totalorder %s27, 1
      %p281 = scmp.ne.s32.totalorder %s276, %s278
      %p282 = scmp.eq.s32.totalorder %s27, 0
      %p283 = por %p281, %p282
      %p284 = scmp.ne.s32.totalorder %s276, %s278
      %p285 = scmp.eq.s32.totalorder %s32, 1
      %p286 = por %p284, %p285
      %p287 = scmp.ne.s32.totalorder %s278, %s279
      %p288 = scmp.eq.s32.totalorder %s32, 0
      %p289 = por %p287, %p288
      %p290 = scmp.ne.s32.totalorder %s278, %s279
      %p291 = scmp.eq.s32.totalorder %s33, 1
      %p292 = por %p290, %p291
      %p294 = scmp.ne.s32.totalorder %s279, %s293
      %p295 = scmp.eq.s32.totalorder %s33, 0
      %p296 = por %p294, %p295
      %s298 = sadd.s32 %s297, 1
      %p301 = scmp.eq.s32.totalorder %s27, 1
      %p302 = scmp.ne.s32.totalorder %s297, %s299
      %p303 = scmp.eq.s32.totalorder %s27, 0
      %p304 = por %p302, %p303
      %p305 = scmp.ne.s32.totalorder %s297, %s299
      %p306 = scmp.eq.s32.totalorder %s32, 1
      %p307 = por %p305, %p306
      %p308 = scmp.ne.s32.totalorder %s299, %s300
      %p309 = scmp.eq.s32.totalorder %s32, 0
      %p310 = por %p308, %p309
      %p311 = scmp.ne.s32.totalorder %s299, %s300
      %p312 = scmp.eq.s32.totalorder %s33, 1
      %p313 = por %p311, %p312
      %p315 = scmp.ne.s32.totalorder %s300, %s314
      %p316 = scmp.eq.s32.totalorder %s33, 0
      %p317 = por %p315, %p316
      %s319 = sadd.s32 %s318, 1
      %p322 = scmp.eq.s32.totalorder %s27, 1
      %p323 = scmp.ne.s32.totalorder %s318, %s320
      %p324 = scmp.eq.s32.totalorder %s27, 0
      %p325 = por %p323, %p324
      %p326 = scmp.ne.s32.totalorder %s318, %s320
      %p327 = scmp.eq.s32.totalorder %s32, 1
      %p328 = por %p326, %p327
      %p329 = scmp.ne.s32.totalorder %s320, %s321
      %p330 = scmp.eq.s32.totalorder %s32, 0
      %p331 = por %p329, %p330
      %p332 = scmp.ne.s32.totalorder %s320, %s321
      %p333 = scmp.eq.s32.totalorder %s33, 1
      %p334 = por %p332, %p333
      %p336 = scmp.ne.s32.totalorder %s321, %s335
      %p337 = scmp.eq.s32.totalorder %s33, 0
      %p338 = por %p336, %p337
      %s339 = ssub.s32 %s27, %s34
      %p340 = scmp.eq.s32.totalorder %s339, 0
      %s342 = sadd.s32 %s341, 1
      %s343 = scalar_select %p340, %s341, %s342
      %p346 = pneg %p340
      %p347 = scmp.eq.s32.totalorder %s27, 1
      %p348 = por %p346, %p347
      %p349 = scmp.ne.s32.totalorder %s341, %s344
      %p350 = scmp.eq.s32.totalorder %s27, 0
      %p351 = por %p349, %p350
      %p352 = scmp.ne.s32.totalorder %s341, %s344
      %p353 = scmp.eq.s32.totalorder %s32, 1
      %p354 = por %p352, %p353
      %p355 = scmp.ne.s32.totalorder %s344, %s345
      %p356 = scmp.eq.s32.totalorder %s32, 0
      %p357 = por %p355, %p356
      %p358 = scmp.ne.s32.totalorder %s344, %s345
      %p359 = scmp.eq.s32.totalorder %s33, 1
      %p360 = por %p358, %p359
      %p362 = scmp.ne.s32.totalorder %s345, %s361
      %p363 = scmp.eq.s32.totalorder %s33, 0
      %p364 = por %p362, %p363
      %p365 = scmp.le.s32.totalorder 1, %s27
      %p366 = scmp.lt.s32.totalorder %s27, 3
      %p367 = pnand %p365, %p366
      %p368 = pneg %p367
      // Predicated region
      $region9: #{bert_classifier.5} parent=5 // pred_check
        _
      $region10: #{bert_classifier.5} parent=5 // pred_check_branch
        %370 = sbr.rel (%p367) target = $region12
      $region11: #{bert_classifier.5} parent=5 // pred_region
        %s371 = ssub.s32 %s27, 1
        // Predicated region
        $region13: #{bert_classifier.5} parent=11 // pred_check
          %p372 = pneg %p100
        $region14: #{bert_classifier.5} parent=11 // pred_check_branch
          %374 = sbr.rel (%p372) target = $region16
        $region15: #{bert_classifier.5} parent=11 // pred_region
          %s376 = ssub.s32 12288, 12288
          %377 = vsyncadd [#allocation3], %s376
          %s378 = sshll.u32 [#allocation2], 4
          %s379 = int_to_ptr.vmem [resolvable:$true] %s378
          %384 = dma.hbm_to_vmem [thread:$0]  %s2, 12288, %s379, [#allocation3], 384, 384, 24
        $region16: #{bert_classifier.5} parent=11 // pred_fallthru
          _
        // Predicated region
        $region17: #{bert_classifier.5} parent=11 // pred_check
          %p385 = pneg %p121
        $region18: #{bert_classifier.5} parent=11 // pred_check_branch
          %387 = sbr.rel (%p385) target = $region20
        $region19: #{bert_classifier.5} parent=11 // pred_region
          %s389 = ssub.s32 96, 96
          %390 = vsyncadd [#allocation5], %s389
          %s392 = sshll.u32 [#allocation4], 4
          %s393 = int_to_ptr.vmem [resolvable:$true] %s392
          %395 = dma.hbm_to_vmem [thread:$0]  %s3, 96, %s393, [#allocation5]
        $region20: #{bert_classifier.5} parent=11 // pred_fallthru
          _
        // Predicated region
        $region21: #{bert_classifier.5} parent=11 // pred_check
          %p396 = pneg %p142
        $region22: #{bert_classifier.5} parent=11 // pred_check_branch
          %398 = sbr.rel (%p396) target = $region24
        $region23: #{bert_classifier.5} parent=11 // pred_region
          %s400 = ssub.s32 4096, 4096
          %401 = vsyncadd [#allocation5], %s400
          %s402 = sshll.u32 [#allocation6], 4
          %s403 = int_to_ptr.vmem [resolvable:$true] %s402
          %408 = dma.hbm_to_vmem [thread:$0]  %s4, 4096, %s403, [#allocation5], 128, 128, 8
        $region24: #{bert_classifier.5} parent=11 // pred_fallthru
          _
        // Predicated region
        $region25: #{bert_classifier.5} parent=11 // pred_check
          %p409 = pneg %p163
        $region26: #{bert_classifier.5} parent=11 // pred_check_branch
          %411 = sbr.rel (%p409) target = $region28
        $region27: #{bert_classifier.5} parent=11 // pred_region
          %s413 = ssub.s32 32, 32
          %414 = vsyncadd [#allocation8], %s413
          %s416 = sshll.u32 [#allocation7], 4
          %s417 = int_to_ptr.vmem [resolvable:$true] %s416
          %419 = dma.hbm_to_vmem [thread:$0]  %s5, 32, %s417, [#allocation8]
        $region28: #{bert_classifier.5} parent=11 // pred_fallthru
          _
        // Predicated region
        $region29: #{bert_classifier.5} parent=11 // pred_check
          %p420 = pneg %p184
        $region30: #{bert_classifier.5} parent=11 // pred_check_branch
          %422 = sbr.rel (%p420) target = $region32
        $region31: #{bert_classifier.5} parent=11 // pred_region
          %s424 = ssub.s32 32, 32
          %425 = vsyncadd [#allocation8], %s424
          %s427 = sshll.u32 [#allocation9], 4
          %s428 = int_to_ptr.vmem [resolvable:$true] %s427
          %430 = dma.hbm_to_vmem [thread:$0]  %s6, 32, %s428, [#allocation8]
        $region32: #{bert_classifier.5} parent=11 // pred_fallthru
          _
        // Predicated region
        $region33: #{bert_classifier.5} parent=11 // pred_check
          %p431 = pneg %p205
        $region34: #{bert_classifier.5} parent=11 // pred_check_branch
          %433 = sbr.rel (%p431) target = $region36
        $region35: #{bert_classifier.5} parent=11 // pred_region
          %s435 = ssub.s32 32, 32
          %436 = vsyncadd [#allocation11], %s435
          %s438 = sshll.u32 [#allocation10], 4
          %s439 = int_to_ptr.vmem [resolvable:$true] %s438
          %441 = dma.hbm_to_vmem [thread:$0]  %s7, 32, %s439, [#allocation11]
        $region36: #{bert_classifier.5} parent=11 // pred_fallthru
          _
        // Predicated region
        $region37: #{bert_classifier.5} parent=11 // pred_check
          %p442 = pneg %p226
        $region38: #{bert_classifier.5} parent=11 // pred_check_branch
          %444 = sbr.rel (%p442) target = $region40
        $region39: #{bert_classifier.5} parent=11 // pred_region
          %s446 = ssub.s32 16384, 16384
          %447 = vsyncadd [#allocation11], %s446
          %s448 = sshll.u32 [#allocation12], 4
          %s449 = int_to_ptr.vmem [resolvable:$true] %s448
          %454 = dma.hbm_to_vmem [thread:$0]  %s8, 16384, %s449, [#allocation11], 512, 512, 32
        $region40: #{bert_classifier.5} parent=11 // pred_fallthru
          _
        // Predicated region
        $region41: #{bert_classifier.5} parent=11 // pred_check
          %p455 = pneg %p247
        $region42: #{bert_classifier.5} parent=11 // pred_check_branch
          %457 = sbr.rel (%p455) target = $region44
        $region43: #{bert_classifier.5} parent=11 // pred_region
          %s459 = ssub.s32 128, 128
          %460 = vsyncadd [#allocation14], %s459
          %s462 = sshll.u32 [#allocation13], 4
          %s463 = int_to_ptr.vmem [resolvable:$true] %s462
          %465 = dma.hbm_to_vmem [thread:$0]  %s9, 128, %s463, [#allocation14]
        $region44: #{bert_classifier.5} parent=11 // pred_fallthru
          _
        // Predicated region
        $region45: #{bert_classifier.5} parent=11 // pred_check
          %p466 = pneg %p268
        $region46: #{bert_classifier.5} parent=11 // pred_check_branch
          %468 = sbr.rel (%p466) target = $region48
        $region47: #{bert_classifier.5} parent=11 // pred_region
          %s470 = ssub.s32 16384, 16384
          %471 = vsyncadd [#allocation14], %s470
          %s472 = sshll.u32 [#allocation15], 4
          %s473 = int_to_ptr.vmem [resolvable:$true] %s472
          %478 = dma.hbm_to_vmem [thread:$0]  %s10, 16384, %s473, [#allocation14], 128, 128, 8
        $region48: #{bert_classifier.5} parent=11 // pred_fallthru
          _
        // Predicated region
        $region49: #{bert_classifier.5} parent=11 // pred_check
          %p479 = pneg %p289
        $region50: #{bert_classifier.5} parent=11 // pred_check_branch
          %481 = sbr.rel (%p479) target = $region52
        $region51: #{bert_classifier.5} parent=11 // pred_region
          %s483 = ssub.s32 32, 32
          %484 = vsyncadd [#allocation17], %s483
          %s486 = sshll.u32 [#allocation16], 4
          %s487 = int_to_ptr.vmem [resolvable:$true] %s486
          %489 = dma.hbm_to_vmem [thread:$0]  %s11, 32, %s487, [#allocation17]
        $region52: #{bert_classifier.5} parent=11 // pred_fallthru
          _
        // Predicated region
        $region53: #{bert_classifier.5} parent=11 // pred_check
          %p490 = pneg %p310
        $region54: #{bert_classifier.5} parent=11 // pred_check_branch
          %492 = sbr.rel (%p490) target = $region56
        $region55: #{bert_classifier.5} parent=11 // pred_region
          %s494 = ssub.s32 32, 32
          %495 = vsyncadd [#allocation17], %s494
          %s497 = sshll.u32 [#allocation18], 4
          %s498 = int_to_ptr.vmem [resolvable:$true] %s497
          %500 = dma.hbm_to_vmem [thread:$0]  %s12, 32, %s498, [#allocation17]
        $region56: #{bert_classifier.5} parent=11 // pred_fallthru
          _
        // Predicated region
        $region57: #{bert_classifier.5} parent=11 // pred_check
          %p501 = pneg %p331
        $region58: #{bert_classifier.5} parent=11 // pred_check_branch
          %503 = sbr.rel (%p501) target = $region60
        $region59: #{bert_classifier.5} parent=11 // pred_region
          %s505 = ssub.s32 32, 32
          %506 = vsyncadd [#allocation20], %s505
          %s508 = sshll.u32 [#allocation19], 4
          %s509 = int_to_ptr.vmem [resolvable:$true] %s508
          %511 = dma.hbm_to_vmem [thread:$0]  %s13, 32, %s509, [#allocation20]
        $region60: #{bert_classifier.5} parent=11 // pred_fallthru
          _
      $region12: #{bert_classifier.5} parent=5 // pred_fallthru
        _
      %p512 = scmp.lt.s32.totalorder %s27, 2
      // Predicated region
      $region61: #{bert_classifier.5} parent=5 // pred_check
        %p513 = pneg %p512
      $region62: #{bert_classifier.5} parent=5 // pred_check_branch
        %515 = sbr.rel (%p513) target = $region64
      $region63: #{bert_classifier.5} parent=5 // pred_region
        // Predicated region
        $region65: #{bert_classifier.5} parent=63 // pred_check
          %p516 = pneg %p47
        $region66: #{bert_classifier.5} parent=63 // pred_check_branch
          %518 = sbr.rel (%p516) target = $region68
        $region67: #{bert_classifier.5} parent=63 // pred_region
          %p519 = scmp.lt.s32.totalorder %s27, 1
          %s520 = scalar_select %p519, %s27, 1
          %s521 = smul.addr %s520, 2
          %s522 = smul.addr %s521, 8
          %s523 = scalar_lea.vmem %s0, %s522
        $region68: #{bert_classifier.5} parent=63 // pred_fallthru
          _
        // Predicated region
        $region69: #{bert_classifier.5} parent=63 // pred_check
          %p524 = pneg %p73
        $region70: #{bert_classifier.5} parent=63 // pred_check_branch
          %526 = sbr.rel (%p524) target = $region72
        $region71: #{bert_classifier.5} parent=63 // pred_region
          %p527 = scmp.lt.s32.totalorder %s27, 1
          %s528 = scalar_select %p527, %s27, 1
          %s529 = scalar_lea.vmem %s1, %s528
        $region72: #{bert_classifier.5} parent=63 // pred_fallthru
          _
      $region64: #{bert_classifier.5} parent=5 // pred_fallthru
        _
      %p530 = scmp.le.s32.totalorder 1, %s27
      %p531 = scmp.lt.s32.totalorder %s27, 3
      %p532 = pnand %p530, %p531
      %p533 = pneg %p532
      // Predicated region
      $region73: #{bert_classifier.5} parent=5 // pred_check
        _
      $region74: #{bert_classifier.5} parent=5 // pred_check_branch
        %535 = sbr.rel (%p532) target = $region76
      $region75: #{bert_classifier.5} parent=5 // pred_region
        %s536 = ssub.s32 %s27, 1
        // Predicated region
        $region77: #{bert_classifier.5} parent=75 // pred_check
          %p537 = pneg %p100
        $region78: #{bert_classifier.5} parent=75 // pred_check_branch
          %539 = sbr.rel (%p537) target = $region80
        $region79: #{bert_classifier.5} parent=75 // pred_region
          %540 = dma.done [#allocation3], 12288
        $region80: #{bert_classifier.5} parent=75 // pred_fallthru
          _
        // Predicated region
        $region81: #{bert_classifier.5} parent=75 // pred_check
          %p541 = pneg %p121
        $region82: #{bert_classifier.5} parent=75 // pred_check_branch
          %543 = sbr.rel (%p541) target = $region84
        $region83: #{bert_classifier.5} parent=75 // pred_region
          %544 = dma.done [#allocation5], 96
        $region84: #{bert_classifier.5} parent=75 // pred_fallthru
          _
        // Predicated region
        $region85: #{bert_classifier.5} parent=75 // pred_check
          %p545 = pneg %p142
        $region86: #{bert_classifier.5} parent=75 // pred_check_branch
          %547 = sbr.rel (%p545) target = $region88
        $region87: #{bert_classifier.5} parent=75 // pred_region
          %548 = dma.done [#allocation5], 4096
        $region88: #{bert_classifier.5} parent=75 // pred_fallthru
          _
        // Predicated region
        $region89: #{bert_classifier.5} parent=75 // pred_check
          %p549 = pneg %p163
        $region90: #{bert_classifier.5} parent=75 // pred_check_branch
          %551 = sbr.rel (%p549) target = $region92
        $region91: #{bert_classifier.5} parent=75 // pred_region
          %552 = dma.done [#allocation8], 32
        $region92: #{bert_classifier.5} parent=75 // pred_fallthru
          _
        // Predicated region
        $region93: #{bert_classifier.5} parent=75 // pred_check
          %p553 = pneg %p184
        $region94: #{bert_classifier.5} parent=75 // pred_check_branch
          %555 = sbr.rel (%p553) target = $region96
        $region95: #{bert_classifier.5} parent=75 // pred_region
          %556 = dma.done [#allocation8], 32
        $region96: #{bert_classifier.5} parent=75 // pred_fallthru
          _
        // Predicated region
        $region97: #{bert_classifier.5} parent=75 // pred_check
          %p557 = pneg %p205
        $region98: #{bert_classifier.5} parent=75 // pred_check_branch
          %559 = sbr.rel (%p557) target = $region100
        $region99: #{bert_classifier.5} parent=75 // pred_region
          %560 = dma.done [#allocation11], 32
        $region100: #{bert_classifier.5} parent=75 // pred_fallthru
          _
        // Predicated region
        $region101: #{bert_classifier.5} parent=75 // pred_check
          %p561 = pneg %p226
        $region102: #{bert_classifier.5} parent=75 // pred_check_branch
          %563 = sbr.rel (%p561) target = $region104
        $region103: #{bert_classifier.5} parent=75 // pred_region
          %564 = dma.done [#allocation11], 16384
        $region104: #{bert_classifier.5} parent=75 // pred_fallthru
          _
        // Predicated region
        $region105: #{bert_classifier.5} parent=75 // pred_check
          %p565 = pneg %p247
        $region106: #{bert_classifier.5} parent=75 // pred_check_branch
          %567 = sbr.rel (%p565) target = $region108
        $region107: #{bert_classifier.5} parent=75 // pred_region
          %568 = dma.done [#allocation14], 128
        $region108: #{bert_classifier.5} parent=75 // pred_fallthru
          _
        // Predicated region
        $region109: #{bert_classifier.5} parent=75 // pred_check
          %p569 = pneg %p268
        $region110: #{bert_classifier.5} parent=75 // pred_check_branch
          %571 = sbr.rel (%p569) target = $region112
        $region111: #{bert_classifier.5} parent=75 // pred_region
          %572 = dma.done [#allocation14], 16384
        $region112: #{bert_classifier.5} parent=75 // pred_fallthru
          _
        // Predicated region
        $region113: #{bert_classifier.5} parent=75 // pred_check
          %p573 = pneg %p289
        $region114: #{bert_classifier.5} parent=75 // pred_check_branch
          %575 = sbr.rel (%p573) target = $region116
        $region115: #{bert_classifier.5} parent=75 // pred_region
          %576 = dma.done [#allocation17], 32
        $region116: #{bert_classifier.5} parent=75 // pred_fallthru
          _
        // Predicated region
        $region117: #{bert_classifier.5} parent=75 // pred_check
          %p577 = pneg %p310
        $region118: #{bert_classifier.5} parent=75 // pred_check_branch
          %579 = sbr.rel (%p577) target = $region120
        $region119: #{bert_classifier.5} parent=75 // pred_region
          %580 = dma.done [#allocation17], 32
        $region120: #{bert_classifier.5} parent=75 // pred_fallthru
          _
        // Predicated region
        $region121: #{bert_classifier.5} parent=75 // pred_check
          %p581 = pneg %p331
        $region122: #{bert_classifier.5} parent=75 // pred_check_branch
          %583 = sbr.rel (%p581) target = $region124
        $region123: #{bert_classifier.5} parent=75 // pred_region
          %584 = dma.done [#allocation20], 32
        $region124: #{bert_classifier.5} parent=75 // pred_fallthru
          _
        %p585 = scmp.lt.s32.totalorder %s32, 1
        %s586 = scalar_select %p585, %s32, 1
        %s587 = smul.addr %s586, 2
        %s588 = smul.addr %s587, 8
        %s589 = scalar_lea.vmem %s0, %s588
        %p590 = pneg %p53
        %p591 = pneg %p50
        %p592 = scmp.lt.s32.totalorder %s32, 1
        %s593 = scalar_select %p592, %s32, 1
        %s594 = scalar_lea.vmem %s1, %s593
        %p595 = pneg %p79
        %p596 = pneg %p76
        %p597 = pneg %p100
        %p598 = pneg %p97
        %p599 = pneg %p121
        %p600 = pneg %p118
        %p601 = pneg %p142
        %p602 = pneg %p139
        %p603 = pneg %p163
        %p604 = pneg %p160
        %p605 = pneg %p184
        %p606 = pneg %p181
        %p607 = pneg %p205
        %p608 = pneg %p202
        %p609 = pneg %p226
        %p610 = pneg %p223
        %p611 = pneg %p247
        %p612 = pneg %p244
        %p613 = pneg %p268
        %p614 = pneg %p265
        %p615 = pneg %p289
        %p616 = pneg %p286
        %p617 = pneg %p310
        %p618 = pneg %p307
        %p619 = pneg %p331
        %p620 = pneg %p328
        %p621 = pneg %p357
        %p622 = pneg %p354
        %p623 = scmp.lt.s32.totalorder %s32, 1
        %s624 = scalar_select %p623, %s32, 1
        %s625 = smul.addr %s624, 2
        %s626 = smul.addr %s625, 8
        %s627 = scalar_lea.vmem %s14, %s626
        %p628 = scmp.lt.s32.totalorder %s32, 1
        %s629 = scalar_select %p628, %s32, 1
        %s630 = smul.addr %s629, 2
        %s631 = smul.addr %s630, 8
        %s632 = scalar_lea.vmem %s0, %s631
        %p633 = scmp.lt.s32.totalorder %s32, 1
        %s634 = scalar_select %p633, %s32, 1
        %s635 = scalar_lea.vmem %s1, %s634
        %p636 = scmp.lt.s32.totalorder %s32, 1
        %s637 = scalar_select %p636, %s32, 1
        %s638 = smul.addr %s637, 2
        %s639 = smul.addr %s638, 8
        %s640 = scalar_lea.vmem %s14, %s639
        %v642 = vld [vmem:[%s632] sm:$0xff]
        %v643 = vld [vmem:[%s632 + $0x8] sm:$0xff]
        %v644 = vld [vmem:[%s635] sm:$0x1]
        %v645 = vpack.c.bf16 %v642, %v642
        %v646 = vpack.c.bf16 %v643, %v643
        %v647 = vld [vmem:[#allocation2] sm:$0xff]
        %v648 = vld [vmem:[#allocation2 + $0x8] sm:$0xff]
        %v649 = vld [vmem:[#allocation2 + $0x10] sm:$0xff]
        %v650 = vld [vmem:[#allocation2 + $0x18] sm:$0xff]
        %v651 = vld [vmem:[#allocation2 + $0x20] sm:$0xff]
        %v652 = vld [vmem:[#allocation2 + $0x28] sm:$0xff]
        %v653 = vld [vmem:[#allocation2 + $0x30] sm:$0xff]
        %v654 = vld [vmem:[#allocation2 + $0x38] sm:$0xff]
        %v655 = vld [vmem:[#allocation2 + $0x40] sm:$0xff]
        %v656 = vld [vmem:[#allocation2 + $0x48] sm:$0xff]
        %v657 = vld [vmem:[#allocation2 + $0x50] sm:$0xff]
        %v658 = vld [vmem:[#allocation2 + $0x58] sm:$0xff]
        %v659 = vld [vmem:[#allocation2 + $0x60] sm:$0xff]
        %v660 = vld [vmem:[#allocation2 + $0x68] sm:$0xff]
        %v661 = vld [vmem:[#allocation2 + $0x70] sm:$0xff]
        %v662 = vld [vmem:[#allocation2 + $0x78] sm:$0xff]
        %v663 = vld [vmem:[#allocation2 + $0x80] sm:$0xff]
        %v664 = vld [vmem:[#allocation2 + $0x88] sm:$0xff]
        %v665 = vld [vmem:[#allocation2 + $0x90] sm:$0xff]
        %v666 = vld [vmem:[#allocation2 + $0x98] sm:$0xff]
        %v667 = vld [vmem:[#allocation2 + $0xa0] sm:$0xff]
        %v668 = vld [vmem:[#allocation2 + $0xa8] sm:$0xff]
        %v669 = vld [vmem:[#allocation2 + $0xb0] sm:$0xff]
        %v670 = vld [vmem:[#allocation2 + $0xb8] sm:$0xff]
        %v671 = vld [vmem:[#allocation2 + $0xc0] sm:$0xff]
        %v672 = vld [vmem:[#allocation2 + $0xc8] sm:$0xff]
        %v673 = vld [vmem:[#allocation2 + $0xd0] sm:$0xff]
        %v674 = vld [vmem:[#allocation2 + $0xd8] sm:$0xff]
        %v675 = vld [vmem:[#allocation2 + $0xe0] sm:$0xff]
        %v676 = vld [vmem:[#allocation2 + $0xe8] sm:$0xff]
        %v677 = vld [vmem:[#allocation2 + $0xf0] sm:$0xff]
        %v678 = vld [vmem:[#allocation2 + $0xf8] sm:$0xff]
        %v679 = vld [vmem:[#allocation2 + $0x100] sm:$0xff]
        %v680 = vld [vmem:[#allocation2 + $0x108] sm:$0xff]
        %v681 = vld [vmem:[#allocation2 + $0x110] sm:$0xff]
        %v682 = vld [vmem:[#allocation2 + $0x118] sm:$0xff]
        %v683 = vld [vmem:[#allocation2 + $0x120] sm:$0xff]
        %v684 = vld [vmem:[#allocation2 + $0x128] sm:$0xff]
        %v685 = vld [vmem:[#allocation2 + $0x130] sm:$0xff]
        %v686 = vld [vmem:[#allocation2 + $0x138] sm:$0xff]
        %v687 = vld [vmem:[#allocation2 + $0x140] sm:$0xff]
        %v688 = vld [vmem:[#allocation2 + $0x148] sm:$0xff]
        %v689 = vld [vmem:[#allocation2 + $0x150] sm:$0xff]
        %v690 = vld [vmem:[#allocation2 + $0x158] sm:$0xff]
        %v691 = vld [vmem:[#allocation2 + $0x160] sm:$0xff]
        %v692 = vld [vmem:[#allocation2 + $0x168] sm:$0xff]
        %v693 = vld [vmem:[#allocation2 + $0x170] sm:$0xff]
        %v694 = vld [vmem:[#allocation2 + $0x178] sm:$0xff]
        %v695 = vld [vmem:[#allocation2 + $0x180] sm:$0xff]
        %v696 = vld [vmem:[#allocation2 + $0x188] sm:$0xff]
        %v697 = vld [vmem:[#allocation2 + $0x190] sm:$0xff]
        %v698 = vld [vmem:[#allocation2 + $0x198] sm:$0xff]
        %v699 = vld [vmem:[#allocation2 + $0x1a0] sm:$0xff]
        %v700 = vld [vmem:[#allocation2 + $0x1a8] sm:$0xff]
        %v701 = vld [vmem:[#allocation2 + $0x1b0] sm:$0xff]
        %v702 = vld [vmem:[#allocation2 + $0x1b8] sm:$0xff]
        %v703 = vld [vmem:[#allocation2 + $0x1c0] sm:$0xff]
        %v704 = vld [vmem:[#allocation2 + $0x1c8] sm:$0xff]
        %v705 = vld [vmem:[#allocation2 + $0x1d0] sm:$0xff]
        %v706 = vld [vmem:[#allocation2 + $0x1d8] sm:$0xff]
        %v707 = vld [vmem:[#allocation2 + $0x1e0] sm:$0xff]
        %v708 = vld [vmem:[#allocation2 + $0x1e8] sm:$0xff]
        %v709 = vld [vmem:[#allocation2 + $0x1f0] sm:$0xff]
        %v710 = vld [vmem:[#allocation2 + $0x1f8] sm:$0xff]
        %v711 = vld [vmem:[#allocation2 + $0x200] sm:$0xff]
        %v712 = vld [vmem:[#allocation2 + $0x208] sm:$0xff]
        %v713 = vld [vmem:[#allocation2 + $0x210] sm:$0xff]
        %v714 = vld [vmem:[#allocation2 + $0x218] sm:$0xff]
        %v715 = vld [vmem:[#allocation2 + $0x220] sm:$0xff]
        %v716 = vld [vmem:[#allocation2 + $0x228] sm:$0xff]
        %v717 = vld [vmem:[#allocation2 + $0x230] sm:$0xff]
        %v718 = vld [vmem:[#allocation2 + $0x238] sm:$0xff]
        %v719 = vld [vmem:[#allocation2 + $0x240] sm:$0xff]
        %v720 = vld [vmem:[#allocation2 + $0x248] sm:$0xff]
        %v721 = vld [vmem:[#allocation2 + $0x250] sm:$0xff]
        %v722 = vld [vmem:[#allocation2 + $0x258] sm:$0xff]
        %v723 = vld [vmem:[#allocation2 + $0x260] sm:$0xff]
        %v724 = vld [vmem:[#allocation2 + $0x268] sm:$0xff]
        %v725 = vld [vmem:[#allocation2 + $0x270] sm:$0xff]
        %v726 = vld [vmem:[#allocation2 + $0x278] sm:$0xff]
        %v727 = vld [vmem:[#allocation2 + $0x280] sm:$0xff]
        %v728 = vld [vmem:[#allocation2 + $0x288] sm:$0xff]
        %v729 = vld [vmem:[#allocation2 + $0x290] sm:$0xff]
        %v730 = vld [vmem:[#allocation2 + $0x298] sm:$0xff]
        %v731 = vld [vmem:[#allocation2 + $0x2a0] sm:$0xff]
        %v732 = vld [vmem:[#allocation2 + $0x2a8] sm:$0xff]
        %v733 = vld [vmem:[#allocation2 + $0x2b0] sm:$0xff]
        %v734 = vld [vmem:[#allocation2 + $0x2b8] sm:$0xff]
        %v735 = vld [vmem:[#allocation2 + $0x2c0] sm:$0xff]
        %v736 = vld [vmem:[#allocation2 + $0x2c8] sm:$0xff]
        %v737 = vld [vmem:[#allocation2 + $0x2d0] sm:$0xff]
        %v738 = vld [vmem:[#allocation2 + $0x2d8] sm:$0xff]
        %v739 = vld [vmem:[#allocation2 + $0x2e0] sm:$0xff]
        %v740 = vld [vmem:[#allocation2 + $0x2e8] sm:$0xff]
        %v741 = vld [vmem:[#allocation2 + $0x2f0] sm:$0xff]
        %v742 = vld [vmem:[#allocation2 + $0x2f8] sm:$0xff]
        %v743 = vld [vmem:[#allocation4] sm:$0x3f]
        %v745 = vlaneseq
        %v746 = vshrl.u32 %v745, 7
        %v747 = vsub.s32 0, %v746
        %v748 = vrot.slane %v743, %v747
        %v749 = vlaneseq
        %v750 = vshrl.u32 %v749, 7
        %v751 = vsub.s32 1, %v750
        %v752 = vrot.slane %v743, %v751
        %v753 = vlaneseq
        %v754 = vshrl.u32 %v753, 7
        %v755 = vsub.s32 2, %v754
        %v756 = vrot.slane %v743, %v755
        %v757 = vlaneseq
        %v758 = vshrl.u32 %v757, 7
        %v759 = vsub.s32 3, %v758
        %v760 = vrot.slane %v743, %v759
        %v761 = vlaneseq
        %v762 = vshrl.u32 %v761, 7
        %v763 = vsub.s32 4, %v762
        %v764 = vrot.slane %v743, %v763
        %v765 = vlaneseq
        %v766 = vshrl.u32 %v765, 7
        %v767 = vsub.s32 5, %v766
        %v768 = vrot.slane %v743, %v767
        %v871 = vunpack.c.l.b16 %v647
        %v872 = vunpack.c.h.b16 %v647
        %v873 = vunpack.c.l.b16 %v648
        %v874 = vunpack.c.h.b16 %v648
        %v875 = vunpack.c.l.b16 %v649
        %v876 = vunpack.c.h.b16 %v649
        %v877 = vunpack.c.l.b16 %v650
        %v878 = vunpack.c.h.b16 %v650
        %v879 = vunpack.c.l.b16 %v651
        %v880 = vunpack.c.h.b16 %v651
        %v881 = vunpack.c.l.b16 %v652
        %v882 = vunpack.c.h.b16 %v652
        %v883 = vunpack.c.l.b16 %v653
        %v884 = vunpack.c.h.b16 %v653
        %v885 = vunpack.c.l.b16 %v654
        %v886 = vunpack.c.h.b16 %v654
        %v887 = vunpack.c.l.b16 %v655
        %v888 = vunpack.c.h.b16 %v655
        %v889 = vunpack.c.l.b16 %v656
        %v890 = vunpack.c.h.b16 %v656
        %v891 = vunpack.c.l.b16 %v657
        %v892 = vunpack.c.h.b16 %v657
        %v893 = vunpack.c.l.b16 %v658
        %v894 = vunpack.c.h.b16 %v658
        %v895 = vunpack.c.l.b16 %v659
        %v896 = vunpack.c.h.b16 %v659
        %v897 = vunpack.c.l.b16 %v660
        %v898 = vunpack.c.h.b16 %v660
        %v899 = vunpack.c.l.b16 %v661
        %v900 = vunpack.c.h.b16 %v661
        %v901 = vunpack.c.l.b16 %v662
        %v902 = vunpack.c.h.b16 %v662
        %v903 = vunpack.c.l.b16 %v663
        %v904 = vunpack.c.h.b16 %v663
        %v905 = vunpack.c.l.b16 %v664
        %v906 = vunpack.c.h.b16 %v664
        %v907 = vunpack.c.l.b16 %v665
        %v908 = vunpack.c.h.b16 %v665
        %v909 = vunpack.c.l.b16 %v666
        %v910 = vunpack.c.h.b16 %v666
        %v911 = vunpack.c.l.b16 %v667
        %v912 = vunpack.c.h.b16 %v667
        %v913 = vunpack.c.l.b16 %v668
        %v914 = vunpack.c.h.b16 %v668
        %v915 = vunpack.c.l.b16 %v669
        %v916 = vunpack.c.h.b16 %v669
        %v917 = vunpack.c.l.b16 %v670
        %v918 = vunpack.c.h.b16 %v670
        %v919 = vunpack.c.l.b16 %v671
        %v920 = vunpack.c.h.b16 %v671
        %v921 = vunpack.c.l.b16 %v672
        %v922 = vunpack.c.h.b16 %v672
        %v923 = vunpack.c.l.b16 %v673
        %v924 = vunpack.c.h.b16 %v673
        %v925 = vunpack.c.l.b16 %v674
        %v926 = vunpack.c.h.b16 %v674
        %v927 = vunpack.c.l.b16 %v675
        %v928 = vunpack.c.h.b16 %v675
        %v929 = vunpack.c.l.b16 %v676
        %v930 = vunpack.c.h.b16 %v676
        %v931 = vunpack.c.l.b16 %v677
        %v932 = vunpack.c.h.b16 %v677
        %v933 = vunpack.c.l.b16 %v678
        %v934 = vunpack.c.h.b16 %v678
        %v935 = vunpack.c.l.b16 %v679
        %v936 = vunpack.c.h.b16 %v679
        %v937 = vunpack.c.l.b16 %v680
        %v938 = vunpack.c.h.b16 %v680
        %v939 = vunpack.c.l.b16 %v681
        %v940 = vunpack.c.h.b16 %v681
        %v941 = vunpack.c.l.b16 %v682
        %v942 = vunpack.c.h.b16 %v682
        %v943 = vunpack.c.l.b16 %v683
        %v944 = vunpack.c.h.b16 %v683
        %v945 = vunpack.c.l.b16 %v684
        %v946 = vunpack.c.h.b16 %v684
        %v947 = vunpack.c.l.b16 %v685
        %v948 = vunpack.c.h.b16 %v685
        %v949 = vunpack.c.l.b16 %v686
        %v950 = vunpack.c.h.b16 %v686
        %v951 = vunpack.c.l.b16 %v687
        %v952 = vunpack.c.h.b16 %v687
        %v953 = vunpack.c.l.b16 %v688
        %v954 = vunpack.c.h.b16 %v688
        %v955 = vunpack.c.l.b16 %v689
        %v956 = vunpack.c.h.b16 %v689
        %v957 = vunpack.c.l.b16 %v690
        %v958 = vunpack.c.h.b16 %v690
        %v959 = vunpack.c.l.b16 %v691
        %v960 = vunpack.c.h.b16 %v691
        %v961 = vunpack.c.l.b16 %v692
        %v962 = vunpack.c.h.b16 %v692
        %v963 = vunpack.c.l.b16 %v693
        %v964 = vunpack.c.h.b16 %v693
        %v965 = vunpack.c.l.b16 %v694
        %v966 = vunpack.c.h.b16 %v694
        %v967 = vunpack.c.l.b16 %v695
        %v968 = vunpack.c.h.b16 %v695
        %v969 = vunpack.c.l.b16 %v696
        %v970 = vunpack.c.h.b16 %v696
        %v971 = vunpack.c.l.b16 %v697
        %v972 = vunpack.c.h.b16 %v697
        %v973 = vunpack.c.l.b16 %v698
        %v974 = vunpack.c.h.b16 %v698
        %v975 = vunpack.c.l.b16 %v699
        %v976 = vunpack.c.h.b16 %v699
        %v977 = vunpack.c.l.b16 %v700
        %v978 = vunpack.c.h.b16 %v700
        %v979 = vunpack.c.l.b16 %v701
        %v980 = vunpack.c.h.b16 %v701
        %v981 = vunpack.c.l.b16 %v702
        %v982 = vunpack.c.h.b16 %v702
        %v983 = vunpack.c.l.b16 %v703
        %v984 = vunpack.c.h.b16 %v703
        %v985 = vunpack.c.l.b16 %v704
        %v986 = vunpack.c.h.b16 %v704
        %v987 = vunpack.c.l.b16 %v705
        %v988 = vunpack.c.h.b16 %v705
        %v989 = vunpack.c.l.b16 %v706
        %v990 = vunpack.c.h.b16 %v706
        %v991 = vunpack.c.l.b16 %v707
        %v992 = vunpack.c.h.b16 %v707
        %v993 = vunpack.c.l.b16 %v708
        %v994 = vunpack.c.h.b16 %v708
        %v995 = vunpack.c.l.b16 %v709
        %v996 = vunpack.c.h.b16 %v709
        %v997 = vunpack.c.l.b16 %v710
        %v998 = vunpack.c.h.b16 %v710
        %v999 = vunpack.c.l.b16 %v711
        %v1000 = vunpack.c.h.b16 %v711
        %v1001 = vunpack.c.l.b16 %v712
        %v1002 = vunpack.c.h.b16 %v712
        %v1003 = vunpack.c.l.b16 %v713
        %v1004 = vunpack.c.h.b16 %v713
        %v1005 = vunpack.c.l.b16 %v714
        %v1006 = vunpack.c.h.b16 %v714
        %v1007 = vunpack.c.l.b16 %v715
        %v1008 = vunpack.c.h.b16 %v715
        %v1009 = vunpack.c.l.b16 %v716
        %v1010 = vunpack.c.h.b16 %v716
        %v1011 = vunpack.c.l.b16 %v717
        %v1012 = vunpack.c.h.b16 %v717
        %v1013 = vunpack.c.l.b16 %v718
        %v1014 = vunpack.c.h.b16 %v718
        %v1015 = vunpack.c.l.b16 %v719
        %v1016 = vunpack.c.h.b16 %v719
        %v1017 = vunpack.c.l.b16 %v720
        %v1018 = vunpack.c.h.b16 %v720
        %v1019 = vunpack.c.l.b16 %v721
        %v1020 = vunpack.c.h.b16 %v721
        %v1021 = vunpack.c.l.b16 %v722
        %v1022 = vunpack.c.h.b16 %v722
        %v1023 = vunpack.c.l.b16 %v723
        %v1024 = vunpack.c.h.b16 %v723
        %v1025 = vunpack.c.l.b16 %v724
        %v1026 = vunpack.c.h.b16 %v724
        %v1027 = vunpack.c.l.b16 %v725
        %v1028 = vunpack.c.h.b16 %v725
        %v1029 = vunpack.c.l.b16 %v726
        %v1030 = vunpack.c.h.b16 %v726
        %v1031 = vunpack.c.l.b16 %v727
        %v1032 = vunpack.c.h.b16 %v727
        %v1033 = vunpack.c.l.b16 %v728
        %v1034 = vunpack.c.h.b16 %v728
        %v1035 = vunpack.c.l.b16 %v729
        %v1036 = vunpack.c.h.b16 %v729
        %v1037 = vunpack.c.l.b16 %v730
        %v1038 = vunpack.c.h.b16 %v730
        %v1039 = vunpack.c.l.b16 %v731
        %v1040 = vunpack.c.h.b16 %v731
        %v1041 = vunpack.c.l.b16 %v732
        %v1042 = vunpack.c.h.b16 %v732
        %v1043 = vunpack.c.l.b16 %v733
        %v1044 = vunpack.c.h.b16 %v733
        %v1045 = vunpack.c.l.b16 %v734
        %v1046 = vunpack.c.h.b16 %v734
        %v1047 = vunpack.c.l.b16 %v735
        %v1048 = vunpack.c.h.b16 %v735
        %v1049 = vunpack.c.l.b16 %v736
        %v1050 = vunpack.c.h.b16 %v736
        %v1051 = vunpack.c.l.b16 %v737
        %v1052 = vunpack.c.h.b16 %v737
        %v1053 = vunpack.c.l.b16 %v738
        %v1054 = vunpack.c.h.b16 %v738
        %v1055 = vunpack.c.l.b16 %v739
        %v1056 = vunpack.c.h.b16 %v739
        %v1057 = vunpack.c.l.b16 %v740
        %v1058 = vunpack.c.h.b16 %v740
        %v1059 = vunpack.c.l.b16 %v741
        %v1060 = vunpack.c.h.b16 %v741
        %v1061 = vunpack.c.l.b16 %v742
        %v1062 = vunpack.c.h.b16 %v742
        %v1063 = vpack.c.b16 %v877, %v871
        %v1064 = vpack.c.b16 %v878, %v872
        %v1065 = vpack.c.b16 %v879, %v873
        %v1066 = vpack.c.b16 %v880, %v874
        %v1067 = vpack.c.b16 %v881, %v875
        %v1068 = vpack.c.b16 %v882, %v876
        %v1069 = vpack.c.b16 %v889, %v883
        %v1070 = vpack.c.b16 %v890, %v884
        %v1071 = vpack.c.b16 %v891, %v885
        %v1072 = vpack.c.b16 %v892, %v886
        %v1073 = vpack.c.b16 %v893, %v887
        %v1074 = vpack.c.b16 %v894, %v888
        %v1075 = vpack.c.b16 %v901, %v895
        %v1076 = vpack.c.b16 %v902, %v896
        %v1077 = vpack.c.b16 %v903, %v897
        %v1078 = vpack.c.b16 %v904, %v898
        %v1079 = vpack.c.b16 %v905, %v899
        %v1080 = vpack.c.b16 %v906, %v900
        %v1081 = vpack.c.b16 %v913, %v907
        %v1082 = vpack.c.b16 %v914, %v908
        %v1083 = vpack.c.b16 %v915, %v909
        %v1084 = vpack.c.b16 %v916, %v910
        %v1085 = vpack.c.b16 %v917, %v911
        %v1086 = vpack.c.b16 %v918, %v912
        %v1087 = vpack.c.b16 %v925, %v919
        %v1088 = vpack.c.b16 %v926, %v920
        %v1089 = vpack.c.b16 %v927, %v921
        %v1090 = vpack.c.b16 %v928, %v922
        %v1091 = vpack.c.b16 %v929, %v923
        %v1092 = vpack.c.b16 %v930, %v924
        %v1093 = vpack.c.b16 %v937, %v931
        %v1094 = vpack.c.b16 %v938, %v932
        %v1095 = vpack.c.b16 %v939, %v933
        %v1096 = vpack.c.b16 %v940, %v934
        %v1097 = vpack.c.b16 %v941, %v935
        %v1098 = vpack.c.b16 %v942, %v936
        %v1099 = vpack.c.b16 %v949, %v943
        %v1100 = vpack.c.b16 %v950, %v944
        %v1101 = vpack.c.b16 %v951, %v945
        %v1102 = vpack.c.b16 %v952, %v946
        %v1103 = vpack.c.b16 %v953, %v947
        %v1104 = vpack.c.b16 %v954, %v948
        %v1105 = vpack.c.b16 %v961, %v955
        %v1106 = vpack.c.b16 %v962, %v956
        %v1107 = vpack.c.b16 %v963, %v957
        %v1108 = vpack.c.b16 %v964, %v958
        %v1109 = vpack.c.b16 %v965, %v959
        %v1110 = vpack.c.b16 %v966, %v960
        %v1111 = vpack.c.b16 %v973, %v967
        %v1112 = vpack.c.b16 %v974, %v968
        %v1113 = vpack.c.b16 %v975, %v969
        %v1114 = vpack.c.b16 %v976, %v970
        %v1115 = vpack.c.b16 %v977, %v971
        %v1116 = vpack.c.b16 %v978, %v972
        %v1117 = vpack.c.b16 %v985, %v979
        %v1118 = vpack.c.b16 %v986, %v980
        %v1119 = vpack.c.b16 %v987, %v981
        %v1120 = vpack.c.b16 %v988, %v982
        %v1121 = vpack.c.b16 %v989, %v983
        %v1122 = vpack.c.b16 %v990, %v984
        %v1123 = vpack.c.b16 %v997, %v991
        %v1124 = vpack.c.b16 %v998, %v992
        %v1125 = vpack.c.b16 %v999, %v993
        %v1126 = vpack.c.b16 %v1000, %v994
        %v1127 = vpack.c.b16 %v1001, %v995
        %v1128 = vpack.c.b16 %v1002, %v996
        %v1129 = vpack.c.b16 %v1009, %v1003
        %v1130 = vpack.c.b16 %v1010, %v1004
        %v1131 = vpack.c.b16 %v1011, %v1005
        %v1132 = vpack.c.b16 %v1012, %v1006
        %v1133 = vpack.c.b16 %v1013, %v1007
        %v1134 = vpack.c.b16 %v1014, %v1008
        %v1135 = vpack.c.b16 %v1021, %v1015
        %v1136 = vpack.c.b16 %v1022, %v1016
        %v1137 = vpack.c.b16 %v1023, %v1017
        %v1138 = vpack.c.b16 %v1024, %v1018
        %v1139 = vpack.c.b16 %v1025, %v1019
        %v1140 = vpack.c.b16 %v1026, %v1020
        %v1141 = vpack.c.b16 %v1033, %v1027
        %v1142 = vpack.c.b16 %v1034, %v1028
        %v1143 = vpack.c.b16 %v1035, %v1029
        %v1144 = vpack.c.b16 %v1036, %v1030
        %v1145 = vpack.c.b16 %v1037, %v1031
        %v1146 = vpack.c.b16 %v1038, %v1032
        %v1147 = vpack.c.b16 %v1045, %v1039
        %v1148 = vpack.c.b16 %v1046, %v1040
        %v1149 = vpack.c.b16 %v1047, %v1041
        %v1150 = vpack.c.b16 %v1048, %v1042
        %v1151 = vpack.c.b16 %v1049, %v1043
        %v1152 = vpack.c.b16 %v1050, %v1044
        %v1153 = vpack.c.b16 %v1057, %v1051
        %v1154 = vpack.c.b16 %v1058, %v1052
        %v1155 = vpack.c.b16 %v1059, %v1053
        %v1156 = vpack.c.b16 %v1060, %v1054
        %v1157 = vpack.c.b16 %v1061, %v1055
        %v1158 = vpack.c.b16 %v1062, %v1056
        %1255 = vmatprep.subr.bf16.mxu0 %v1064
        %1256 = vmatpush1.bf16.msra.mxu0 %v1063
        %1257 = vmatprep.subr.bf16.mxu0 %v1070
        %1258 = vmatpush1.bf16.msra.mxu0 %v1069
        %1259 = vmatprep.subr.bf16.mxu0 %v1076
        %1260 = vmatpush1.bf16.msra.mxu0 %v1075
        %1261 = vmatprep.subr.bf16.mxu0 %v1082
        %1262 = vmatpush1.bf16.msra.mxu0 %v1081
        %1263 = vmatprep.subr.bf16.mxu0 %v1088
        %1264 = vmatpush1.bf16.msra.mxu0 %v1087
        %1265 = vmatprep.subr.bf16.mxu0 %v1094
        %1266 = vmatpush1.bf16.msra.mxu0 %v1093
        %1267 = vmatprep.subr.bf16.mxu0 %v1100
        %1268 = vmatpush1.bf16.msra.mxu0 %v1099
        %1269 = vmatprep.subr.bf16.mxu0 %v1106
        %1270 = vmatpush1.bf16.msra.mxu0 %v1105
        %1271 = vmatprep.subr.bf16.mxu0 %v1112
        %1272 = vmatpush1.bf16.msra.mxu0 %v1111
        %1273 = vmatprep.subr.bf16.mxu0 %v1118
        %1274 = vmatpush1.bf16.msra.mxu0 %v1117
        %1275 = vmatprep.subr.bf16.mxu0 %v1124
        %1276 = vmatpush1.bf16.msra.mxu0 %v1123
        %1277 = vmatprep.subr.bf16.mxu0 %v1130
        %1278 = vmatpush1.bf16.msra.mxu0 %v1129
        %1279 = vmatprep.subr.bf16.mxu0 %v1136
        %1280 = vmatpush1.bf16.msra.mxu0 %v1135
        %1281 = vmatprep.subr.bf16.mxu0 %v1142
        %1282 = vmatpush1.bf16.msra.mxu0 %v1141
        %1283 = vmatprep.subr.bf16.mxu0 %v1148
        %1284 = vmatpush1.bf16.msra.mxu0 %v1147
        %1285 = vmatprep.subr.bf16.mxu0 %v1154
        %1286 = vmatpush1.bf16.msra.mxu0 %v1153
        %1287 = vmatprep.mubr.bf16.mxu0 %v646
        %1288 = vmatmul.mubr.bf16.gmra.mrb[0].mxu0 %v645
        %v1289 = vpop.f32.mrb[0].mxu0
        %v1290 = vadd.f32 %v748, %v1289
        %v1291 = vpop.f32.mrb[0].mxu0
        %v1292 = vadd.f32 %v752, %v1291
        %v1293 = vpop.f32.mrb[0].mxu0
        %v1294 = vpop.f32.mrb[0].mxu0
        %1295 = vdwg.mxu0
        %1296 = vmatprep.subr.bf16.mxu0 %v1066
        %1297 = vmatpush1.bf16.msra.mxu0 %v1065
        %1298 = vmatprep.subr.bf16.mxu0 %v1072
        %1299 = vmatpush1.bf16.msra.mxu0 %v1071
        %1300 = vmatprep.subr.bf16.mxu0 %v1078
        %1301 = vmatpush1.bf16.msra.mxu0 %v1077
        %1302 = vmatprep.subr.bf16.mxu0 %v1084
        %1303 = vmatpush1.bf16.msra.mxu0 %v1083
        %1304 = vmatprep.subr.bf16.mxu0 %v1090
        %1305 = vmatpush1.bf16.msra.mxu0 %v1089
        %1306 = vmatprep.subr.bf16.mxu0 %v1096
        %1307 = vmatpush1.bf16.msra.mxu0 %v1095
        %1308 = vmatprep.subr.bf16.mxu0 %v1102
        %1309 = vmatpush1.bf16.msra.mxu0 %v1101
        %1310 = vmatprep.subr.bf16.mxu0 %v1108
        %1311 = vmatpush1.bf16.msra.mxu0 %v1107
        %1312 = vmatprep.subr.bf16.mxu0 %v1114
        %1313 = vmatpush1.bf16.msra.mxu0 %v1113
        %1314 = vmatprep.subr.bf16.mxu0 %v1120
        %1315 = vmatpush1.bf16.msra.mxu0 %v1119
        %1316 = vmatprep.subr.bf16.mxu0 %v1126
        %1317 = vmatpush1.bf16.msra.mxu0 %v1125
        %1318 = vmatprep.subr.bf16.mxu0 %v1132
        %1319 = vmatpush1.bf16.msra.mxu0 %v1131
        %1320 = vmatprep.subr.bf16.mxu0 %v1138
        %1321 = vmatpush1.bf16.msra.mxu0 %v1137
        %1322 = vmatprep.subr.bf16.mxu0 %v1144
        %1323 = vmatpush1.bf16.msra.mxu0 %v1143
        %1324 = vmatprep.subr.bf16.mxu0 %v1150
        %1325 = vmatpush1.bf16.msra.mxu0 %v1149
        %1326 = vmatprep.subr.bf16.mxu0 %v1156
        %1327 = vmatpush1.bf16.msra.mxu0 %v1155
        %1328 = vmatprep.mubr.bf16.mxu0 %v646
        %1329 = vmatmul.mubr.bf16.gmra.mrb[0].mxu0 %v645
        %v1330 = vpop.f32.mrb[0].mxu0
        %v1331 = vadd.f32 %v756, %v1330
        %v1332 = vpop.f32.mrb[0].mxu0
        %v1333 = vadd.f32 %v760, %v1332
        %v1334 = vpop.f32.mrb[0].mxu0
        %v1335 = vpop.f32.mrb[0].mxu0
        %1336 = vdwg.mxu0
        %1337 = vmatprep.subr.bf16.mxu0 %v1068
        %1338 = vmatpush1.bf16.msra.mxu0 %v1067
        %1339 = vmatprep.subr.bf16.mxu0 %v1074
        %1340 = vmatpush1.bf16.msra.mxu0 %v1073
        %1341 = vmatprep.subr.bf16.mxu0 %v1080
        %1342 = vmatpush1.bf16.msra.mxu0 %v1079
        %1343 = vmatprep.subr.bf16.mxu0 %v1086
        %1344 = vmatpush1.bf16.msra.mxu0 %v1085
        %1345 = vmatprep.subr.bf16.mxu0 %v1092
        %1346 = vmatpush1.bf16.msra.mxu0 %v1091
        %1347 = vmatprep.subr.bf16.mxu0 %v1098
        %1348 = vmatpush1.bf16.msra.mxu0 %v1097
        %1349 = vmatprep.subr.bf16.mxu0 %v1104
        %1350 = vmatpush1.bf16.msra.mxu0 %v1103
        %1351 = vmatprep.subr.bf16.mxu0 %v1110
        %1352 = vmatpush1.bf16.msra.mxu0 %v1109
        %1353 = vmatprep.subr.bf16.mxu0 %v1116
        %1354 = vmatpush1.bf16.msra.mxu0 %v1115
        %1355 = vmatprep.subr.bf16.mxu0 %v1122
        %1356 = vmatpush1.bf16.msra.mxu0 %v1121
        %1357 = vmatprep.subr.bf16.mxu0 %v1128
        %1358 = vmatpush1.bf16.msra.mxu0 %v1127
        %1359 = vmatprep.subr.bf16.mxu0 %v1134
        %1360 = vmatpush1.bf16.msra.mxu0 %v1133
        %1361 = vmatprep.subr.bf16.mxu0 %v1140
        %1362 = vmatpush1.bf16.msra.mxu0 %v1139
        %1363 = vmatprep.subr.bf16.mxu0 %v1146
        %1364 = vmatpush1.bf16.msra.mxu0 %v1145
        %1365 = vmatprep.subr.bf16.mxu0 %v1152
        %1366 = vmatpush1.bf16.msra.mxu0 %v1151
        %1367 = vmatprep.subr.bf16.mxu0 %v1158
        %1368 = vmatpush1.bf16.msra.mxu0 %v1157
        %1369 = vmatprep.mubr.bf16.mxu0 %v646
        %1370 = vmatmul.mubr.bf16.gmra.mrb[0].mxu0 %v645
        %v1371 = vpop.f32.mrb[0].mxu0
        %v1372 = vadd.f32 %v764, %v1371
        %v1373 = vpop.f32.mrb[0].mxu0
        %v1374 = vadd.f32 %v768, %v1373
        %v1375 = vpop.f32.mrb[0].mxu0
        %v1376 = vpop.f32.mrb[0].mxu0
        %1377 = vdwg.mxu0
        %v1378 = vpack.c.bf16 %v1290, %v1290
        %v1379 = vpack.c.bf16 %v1331, %v1331
        %v1380 = vpack.c.bf16 %v1372, %v1372
        %vm1381 = vcmask 523264
        %v1383 = vsel %vm1381, %v1378, 0
        %v1386 = vsel %vm1381, %v1379, 0
        %1388 = vmatprep.subr.bf16.mxu0 0
        %1389 = vmatpush1.bf16.xpose.msra.mxu0 %v1386
        %1390 = vmatprep.subr.bf16.mxu0 0
        %1391 = vmatpush1.bf16.xpose.msra.mxu0 0
        %1392 = vmatprep.subr.bf16.mxu0 0
        %1393 = vmatpush1.bf16.xpose.msra.mxu0 0
        %1394 = vmatprep.subr.bf16.mxu0 0
        %1395 = vmatpush1.bf16.xpose.msra.mxu0 0
        %1396 = vmatprep.subr.bf16.mxu0 0
        %1397 = vmatpush1.bf16.xpose.msra.mxu0 0
        %1398 = vmatprep.subr.bf16.mxu0 0
        %1399 = vmatpush1.bf16.xpose.msra.mxu0 0
        %1400 = vmatprep.subr.bf16.mxu0 0
        %1401 = vmatpush1.bf16.xpose.msra.mxu0 0
        %1402 = vmatprep.subr.bf16.mxu0 0
        %1403 = vmatpush1.bf16.xpose.msra.mxu0 0
        %1404 = vmatprep.subr.bf16.mxu0 0
        %1405 = vmatpush1.bf16.xpose.msra.mxu0 0
        %1406 = vmatprep.subr.bf16.mxu0 0
        %1407 = vmatpush1.bf16.xpose.msra.mxu0 0
        %1408 = vmatprep.subr.bf16.mxu0 0
        %1409 = vmatpush1.bf16.xpose.msra.mxu0 0
        %1410 = vmatprep.subr.bf16.mxu0 0
        %1411 = vmatpush1.bf16.xpose.msra.mxu0 0
        %1412 = vmatprep.subr.bf16.mxu0 0
        %1413 = vmatpush1.bf16.xpose.msra.mxu0 0
        %1414 = vmatprep.subr.bf16.mxu0 0
        %1415 = vmatpush1.bf16.xpose.msra.mxu0 0
        %1416 = vmatprep.subr.bf16.mxu0 0
        %1417 = vmatpush1.bf16.xpose.msra.mxu0 0
        %1418 = vmatprep.subr.bf16.mxu0 0
        %1419 = vmatpush1.bf16.xpose.msra.mxu0 0
        %1420 = vmatprep.mubr.bf16.mxu0 0
        %1421 = vmatmul.mubr.bf16.gmra.mrb[0].mxu0 %v1383
        %v1422 = vpop.f32.mrb[0].mxu0
        %v1423 = vadd.f32 0.0, %v1422
        %v1424 = vpop.f32.mrb[0].mxu0
        %v1425 = vpop.f32.mrb[0].mxu0
        %v1426 = vpop.f32.mrb[0].mxu0
        %1427 = vdwg.mxu0
        %v1428 = vmul.f32 %v1423, 0.125
        %v1430 = vlaneseq
        %v1431 = vshrl.u32 %v1430, 7
        %v1432 = vsub.s32 0, %v1431
        %v1433 = vrot.slane %v644, %v1432
        %v1435 = vadd.f32 %v1428, %v1433
        %vm1436 = vcmask 64512
        %v1437 = vsel %vm1436, %v1435, -inf
        %1438 = vmax.xlane.f32.xlu0 %v1437
        %v1439 = vpop.xlane.xlu0 %1438
        %v1440 = vsub.f32 %v1435, %v1439
        %v1441 = vmul.f32 %v1440, 1.442695
        %v1442 = vpow.pop %v1441
        %v1443 = vsel %vm1436, %v1442, 0.0
        %1444 = vadd.xlane.f32.xlu0 %v1443
        %v1445 = vpop.xlane.xlu0 %1444
        %v1446 = vrcp.pop %v1445
        %v1447 = vmul.f32 %v1442, %v1446
        %v1448 = vpack.c.bf16 %v1447, %v1447
        %v1450 = vsel %vm1436, %v1448, 0
        %vm1452 = vcmask 1043456
        %v1454 = vsel %vm1452, %v1380, 0
        %1456 = vmatprep.subr.bf16.mxu0 0
        %1457 = vmatpush1.bf16.msra.mxu0 %v1454
        %1458 = vmatprep.subr.bf16.mxu0 0
        %1459 = vmatpush1.bf16.msra.mxu0 0
        %1460 = vmatprep.subr.bf16.mxu0 0
        %1461 = vmatpush1.bf16.msra.mxu0 0
        %1462 = vmatprep.subr.bf16.mxu0 0
        %1463 = vmatpush1.bf16.msra.mxu0 0
        %1464 = vmatprep.subr.bf16.mxu0 0
        %1465 = vmatpush1.bf16.msra.mxu0 0
        %1466 = vmatprep.subr.bf16.mxu0 0
        %1467 = vmatpush1.bf16.msra.mxu0 0
        %1468 = vmatprep.subr.bf16.mxu0 0
        %1469 = vmatpush1.bf16.msra.mxu0 0
        %1470 = vmatprep.subr.bf16.mxu0 0
        %1471 = vmatpush1.bf16.msra.mxu0 0
        %1472 = vmatprep.subr.bf16.mxu0 0
        %1473 = vmatpush1.bf16.msra.mxu0 0
        %1474 = vmatprep.subr.bf16.mxu0 0
        %1475 = vmatpush1.bf16.msra.mxu0 0
        %1476 = vmatprep.subr.bf16.mxu0 0
        %1477 = vmatpush1.bf16.msra.mxu0 0
        %1478 = vmatprep.subr.bf16.mxu0 0
        %1479 = vmatpush1.bf16.msra.mxu0 0
        %1480 = vmatprep.subr.bf16.mxu0 0
        %1481 = vmatpush1.bf16.msra.mxu0 0
        %1482 = vmatprep.subr.bf16.mxu0 0
        %1483 = vmatpush1.bf16.msra.mxu0 0
        %1484 = vmatprep.subr.bf16.mxu0 0
        %1485 = vmatpush1.bf16.msra.mxu0 0
        %1486 = vmatprep.subr.bf16.mxu0 0
        %1487 = vmatpush1.bf16.msra.mxu0 0
        %1488 = vmatprep.mubr.bf16.mxu0 0
        %1489 = vmatmul.mubr.bf16.gmra.mrb[0].mxu0 %v1450
        %v1490 = vpop.f32.mrb[0].mxu0
        %v1491 = vadd.f32 0.0, %v1490
        %v1492 = vpop.f32.mrb[0].mxu0
        %v1493 = vpop.f32.mrb[0].mxu0
        %v1494 = vpop.f32.mrb[0].mxu0
        %1495 = vdwg.mxu0
        %1497 = vrot.lane.b32.xlu0 %v1378, 64
        %v1498 = vpop.permute.xlu0 %1497
        %1500 = vrot.lane.b32.xlu0 %v1379, 64
        %v1501 = vpop.permute.xlu0 %1500
        %v1503 = vsel %vm1381, %v1498, 0
        %v1506 = vsel %vm1381, %v1501, 0
        %1508 = vmatprep.subr.bf16.mxu0 0
        %1509 = vmatpush1.bf16.xpose.msra.mxu0 %v1506
        %1510 = vmatprep.subr.bf16.mxu0 0
        %1511 = vmatpush1.bf16.xpose.msra.mxu0 0
        %1512 = vmatprep.subr.bf16.mxu0 0
        %1513 = vmatpush1.bf16.xpose.msra.mxu0 0
        %1514 = vmatprep.subr.bf16.mxu0 0
        %1515 = vmatpush1.bf16.xpose.msra.mxu0 0
        %1516 = vmatprep.subr.bf16.mxu0 0
        %1517 = vmatpush1.bf16.xpose.msra.mxu0 0
        %1518 = vmatprep.subr.bf16.mxu0 0
        %1519 = vmatpush1.bf16.xpose.msra.mxu0 0
        %1520 = vmatprep.subr.bf16.mxu0 0
        %1521 = vmatpush1.bf16.xpose.msra.mxu0 0
        %1522 = vmatprep.subr.bf16.mxu0 0
        %1523 = vmatpush1.bf16.xpose.msra.mxu0 0
        %1524 = vmatprep.subr.bf16.mxu0 0
        %1525 = vmatpush1.bf16.xpose.msra.mxu0 0
        %1526 = vmatprep.subr.bf16.mxu0 0
        %1527 = vmatpush1.bf16.xpose.msra.mxu0 0
        %1528 = vmatprep.subr.bf16.mxu0 0
        %1529 = vmatpush1.bf16.xpose.msra.mxu0 0
        %1530 = vmatprep.subr.bf16.mxu0 0
        %1531 = vmatpush1.bf16.xpose.msra.mxu0 0
        %1532 = vmatprep.subr.bf16.mxu0 0
        %1533 = vmatpush1.bf16.xpose.msra.mxu0 0
        %1534 = vmatprep.subr.bf16.mxu0 0
        %1535 = vmatpush1.bf16.xpose.msra.mxu0 0
        %1536 = vmatprep.subr.bf16.mxu0 0
        %1537 = vmatpush1.bf16.xpose.msra.mxu0 0
        %1538 = vmatprep.subr.bf16.mxu0 0
        %1539 = vmatpush1.bf16.xpose.msra.mxu0 0
        %1540 = vmatprep.mubr.bf16.mxu0 0
        %1541 = vmatmul.mubr.bf16.gmra.mrb[0].mxu0 %v1503
        %v1542 = vpop.f32.mrb[0].mxu0
        %v1543 = vadd.f32 0.0, %v1542
        %v1544 = vpop.f32.mrb[0].mxu0
        %v1545 = vpop.f32.mrb[0].mxu0
        %v1546 = vpop.f32.mrb[0].mxu0
        %1547 = vdwg.mxu0
        %v1548 = vmul.f32 %v1543, 0.125
        %v1549 = vadd.f32 %v1548, %v1433
        %v1550 = vsel %vm1436, %v1549, -inf
        %1551 = vmax.xlane.f32.xlu0 %v1550
        %v1552 = vpop.xlane.xlu0 %1551
        %v1553 = vsub.f32 %v1549, %v1552
        %v1554 = vmul.f32 %v1553, 1.442695
        %v1555 = vpow.pop %v1554
        %v1556 = vsel %vm1436, %v1555, 0.0
        %1557 = vadd.xlane.f32.xlu0 %v1556
        %v1558 = vpop.xlane.xlu0 %1557
        %v1559 = vrcp.pop %v1558
        %v1560 = vmul.f32 %v1555, %v1559
        %v1561 = vpack.c.bf16 %v1560, %v1560
        %1563 = vrot.lane.b32.xlu0 %v1380, 64
        %v1564 = vpop.permute.xlu0 %1563
        %v1566 = vsel %vm1436, %v1561, 0
        %v1569 = vsel %vm1452, %v1564, 0
        %1571 = vmatprep.subr.bf16.mxu0 0
        %1572 = vmatpush1.bf16.msra.mxu0 %v1569
        %1573 = vmatprep.subr.bf16.mxu0 0
        %1574 = vmatpush1.bf16.msra.mxu0 0
        %1575 = vmatprep.subr.bf16.mxu0 0
        %1576 = vmatpush1.bf16.msra.mxu0 0
        %1577 = vmatprep.subr.bf16.mxu0 0
        %1578 = vmatpush1.bf16.msra.mxu0 0
        %1579 = vmatprep.subr.bf16.mxu0 0
        %1580 = vmatpush1.bf16.msra.mxu0 0
        %1581 = vmatprep.subr.bf16.mxu0 0
        %1582 = vmatpush1.bf16.msra.mxu0 0
        %1583 = vmatprep.subr.bf16.mxu0 0
        %1584 = vmatpush1.bf16.msra.mxu0 0
        %1585 = vmatprep.subr.bf16.mxu0 0
        %1586 = vmatpush1.bf16.msra.mxu0 0
        %1587 = vmatprep.subr.bf16.mxu0 0
        %1588 = vmatpush1.bf16.msra.mxu0 0
        %1589 = vmatprep.subr.bf16.mxu0 0
        %1590 = vmatpush1.bf16.msra.mxu0 0
        %1591 = vmatprep.subr.bf16.mxu0 0
        %1592 = vmatpush1.bf16.msra.mxu0 0
        %1593 = vmatprep.subr.bf16.mxu0 0
        %1594 = vmatpush1.bf16.msra.mxu0 0
        %1595 = vmatprep.subr.bf16.mxu0 0
        %1596 = vmatpush1.bf16.msra.mxu0 0
        %1597 = vmatprep.subr.bf16.mxu0 0
        %1598 = vmatpush1.bf16.msra.mxu0 0
        %1599 = vmatprep.subr.bf16.mxu0 0
        %1600 = vmatpush1.bf16.msra.mxu0 0
        %1601 = vmatprep.subr.bf16.mxu0 0
        %1602 = vmatpush1.bf16.msra.mxu0 0
        %1603 = vmatprep.mubr.bf16.mxu0 0
        %1604 = vmatmul.mubr.bf16.gmra.mrb[0].mxu0 %v1566
        %v1605 = vpop.f32.mrb[0].mxu0
        %v1606 = vadd.f32 0.0, %v1605
        %v1607 = vpop.f32.mrb[0].mxu0
        %v1608 = vpop.f32.mrb[0].mxu0
        %v1609 = vpop.f32.mrb[0].mxu0
        %1610 = vdwg.mxu0
        %v1611 = vpack.c.bf16 %v1292, %v1292
        %v1612 = vpack.c.bf16 %v1333, %v1333
        %v1613 = vpack.c.bf16 %v1374, %v1374
        %v1615 = vsel %vm1381, %v1611, 0
        %v1618 = vsel %vm1381, %v1612, 0
        %1620 = vmatprep.subr.bf16.mxu0 0
        %1621 = vmatpush1.bf16.xpose.msra.mxu0 %v1618
        %1622 = vmatprep.subr.bf16.mxu0 0
        %1623 = vmatpush1.bf16.xpose.msra.mxu0 0
        %1624 = vmatprep.subr.bf16.mxu0 0
        %1625 = vmatpush1.bf16.xpose.msra.mxu0 0
        %1626 = vmatprep.subr.bf16.mxu0 0
        %1627 = vmatpush1.bf16.xpose.msra.mxu0 0
        %1628 = vmatprep.subr.bf16.mxu0 0
        %1629 = vmatpush1.bf16.xpose.msra.mxu0 0
        %1630 = vmatprep.subr.bf16.mxu0 0
        %1631 = vmatpush1.bf16.xpose.msra.mxu0 0
        %1632 = vmatprep.subr.bf16.mxu0 0
        %1633 = vmatpush1.bf16.xpose.msra.mxu0 0
        %1634 = vmatprep.subr.bf16.mxu0 0
        %1635 = vmatpush1.bf16.xpose.msra.mxu0 0
        %1636 = vmatprep.subr.bf16.mxu0 0
        %1637 = vmatpush1.bf16.xpose.msra.mxu0 0
        %1638 = vmatprep.subr.bf16.mxu0 0
        %1639 = vmatpush1.bf16.xpose.msra.mxu0 0
        %1640 = vmatprep.subr.bf16.mxu0 0
        %1641 = vmatpush1.bf16.xpose.msra.mxu0 0
        %1642 = vmatprep.subr.bf16.mxu0 0
        %1643 = vmatpush1.bf16.xpose.msra.mxu0 0
        %1644 = vmatprep.subr.bf16.mxu0 0
        %1645 = vmatpush1.bf16.xpose.msra.mxu0 0
        %1646 = vmatprep.subr.bf16.mxu0 0
        %1647 = vmatpush1.bf16.xpose.msra.mxu0 0
        %1648 = vmatprep.subr.bf16.mxu0 0
        %1649 = vmatpush1.bf16.xpose.msra.mxu0 0
        %1650 = vmatprep.subr.bf16.mxu0 0
        %1651 = vmatpush1.bf16.xpose.msra.mxu0 0
        %1652 = vmatprep.mubr.bf16.mxu0 0
        %1653 = vmatmul.mubr.bf16.gmra.mrb[0].mxu0 %v1615
        %v1654 = vpop.f32.mrb[0].mxu0
        %v1655 = vadd.f32 0.0, %v1654
        %v1656 = vpop.f32.mrb[0].mxu0
        %v1657 = vpop.f32.mrb[0].mxu0
        %v1658 = vpop.f32.mrb[0].mxu0
        %1659 = vdwg.mxu0
        %v1660 = vmul.f32 %v1655, 0.125
        %v1661 = vadd.f32 %v1660, %v1433
        %v1662 = vsel %vm1436, %v1661, -inf
        %1663 = vmax.xlane.f32.xlu0 %v1662
        %v1664 = vpop.xlane.xlu0 %1663
        %v1665 = vsub.f32 %v1661, %v1664
        %v1666 = vmul.f32 %v1665, 1.442695
        %v1667 = vpow.pop %v1666
        %v1668 = vsel %vm1436, %v1667, 0.0
        %1669 = vadd.xlane.f32.xlu0 %v1668
        %v1670 = vpop.xlane.xlu0 %1669
        %v1671 = vrcp.pop %v1670
        %v1672 = vmul.f32 %v1667, %v1671
        %v1673 = vpack.c.bf16 %v1672, %v1672
        %v1675 = vsel %vm1436, %v1673, 0
        %v1678 = vsel %vm1452, %v1613, 0
        %1680 = vmatprep.subr.bf16.mxu0 0
        %1681 = vmatpush1.bf16.msra.mxu0 %v1678
        %1682 = vmatprep.subr.bf16.mxu0 0
        %1683 = vmatpush1.bf16.msra.mxu0 0
        %1684 = vmatprep.subr.bf16.mxu0 0
        %1685 = vmatpush1.bf16.msra.mxu0 0
        %1686 = vmatprep.subr.bf16.mxu0 0
        %1687 = vmatpush1.bf16.msra.mxu0 0
        %1688 = vmatprep.subr.bf16.mxu0 0
        %1689 = vmatpush1.bf16.msra.mxu0 0
        %1690 = vmatprep.subr.bf16.mxu0 0
        %1691 = vmatpush1.bf16.msra.mxu0 0
        %1692 = vmatprep.subr.bf16.mxu0 0
        %1693 = vmatpush1.bf16.msra.mxu0 0
        %1694 = vmatprep.subr.bf16.mxu0 0
        %1695 = vmatpush1.bf16.msra.mxu0 0
        %1696 = vmatprep.subr.bf16.mxu0 0
        %1697 = vmatpush1.bf16.msra.mxu0 0
        %1698 = vmatprep.subr.bf16.mxu0 0
        %1699 = vmatpush1.bf16.msra.mxu0 0
        %1700 = vmatprep.subr.bf16.mxu0 0
        %1701 = vmatpush1.bf16.msra.mxu0 0
        %1702 = vmatprep.subr.bf16.mxu0 0
        %1703 = vmatpush1.bf16.msra.mxu0 0
        %1704 = vmatprep.subr.bf16.mxu0 0
        %1705 = vmatpush1.bf16.msra.mxu0 0
        %1706 = vmatprep.subr.bf16.mxu0 0
        %1707 = vmatpush1.bf16.msra.mxu0 0
        %1708 = vmatprep.subr.bf16.mxu0 0
        %1709 = vmatpush1.bf16.msra.mxu0 0
        %1710 = vmatprep.subr.bf16.mxu0 0
        %1711 = vmatpush1.bf16.msra.mxu0 0
        %1712 = vmatprep.mubr.bf16.mxu0 0
        %1713 = vmatmul.mubr.bf16.gmra.mrb[0].mxu0 %v1675
        %v1714 = vpop.f32.mrb[0].mxu0
        %v1715 = vadd.f32 0.0, %v1714
        %v1716 = vpop.f32.mrb[0].mxu0
        %v1717 = vpop.f32.mrb[0].mxu0
        %v1718 = vpop.f32.mrb[0].mxu0
        %1719 = vdwg.mxu0
        %1721 = vrot.lane.b32.xlu0 %v1611, 64
        %v1722 = vpop.permute.xlu0 %1721
        %1724 = vrot.lane.b32.xlu0 %v1612, 64
        %v1725 = vpop.permute.xlu0 %1724
        %v1727 = vsel %vm1381, %v1722, 0
        %v1730 = vsel %vm1381, %v1725, 0
        %1732 = vmatprep.subr.bf16.mxu0 0
        %1733 = vmatpush1.bf16.xpose.msra.mxu0 %v1730
        %1734 = vmatprep.subr.bf16.mxu0 0
        %1735 = vmatpush1.bf16.xpose.msra.mxu0 0
        %1736 = vmatprep.subr.bf16.mxu0 0
        %1737 = vmatpush1.bf16.xpose.msra.mxu0 0
        %1738 = vmatprep.subr.bf16.mxu0 0
        %1739 = vmatpush1.bf16.xpose.msra.mxu0 0
        %1740 = vmatprep.subr.bf16.mxu0 0
        %1741 = vmatpush1.bf16.xpose.msra.mxu0 0
        %1742 = vmatprep.subr.bf16.mxu0 0
        %1743 = vmatpush1.bf16.xpose.msra.mxu0 0
        %1744 = vmatprep.subr.bf16.mxu0 0
        %1745 = vmatpush1.bf16.xpose.msra.mxu0 0
        %1746 = vmatprep.subr.bf16.mxu0 0
        %1747 = vmatpush1.bf16.xpose.msra.mxu0 0
        %1748 = vmatprep.subr.bf16.mxu0 0
        %1749 = vmatpush1.bf16.xpose.msra.mxu0 0
        %1750 = vmatprep.subr.bf16.mxu0 0
        %1751 = vmatpush1.bf16.xpose.msra.mxu0 0
        %1752 = vmatprep.subr.bf16.mxu0 0
        %1753 = vmatpush1.bf16.xpose.msra.mxu0 0
        %1754 = vmatprep.subr.bf16.mxu0 0
        %1755 = vmatpush1.bf16.xpose.msra.mxu0 0
        %1756 = vmatprep.subr.bf16.mxu0 0
        %1757 = vmatpush1.bf16.xpose.msra.mxu0 0
        %1758 = vmatprep.subr.bf16.mxu0 0
        %1759 = vmatpush1.bf16.xpose.msra.mxu0 0
        %1760 = vmatprep.subr.bf16.mxu0 0
        %1761 = vmatpush1.bf16.xpose.msra.mxu0 0
        %1762 = vmatprep.subr.bf16.mxu0 0
        %1763 = vmatpush1.bf16.xpose.msra.mxu0 0
        %1764 = vmatprep.mubr.bf16.mxu0 0
        %1765 = vmatmul.mubr.bf16.gmra.mrb[0].mxu0 %v1727
        %v1766 = vpop.f32.mrb[0].mxu0
        %v1767 = vadd.f32 0.0, %v1766
        %v1768 = vpop.f32.mrb[0].mxu0
        %v1769 = vpop.f32.mrb[0].mxu0
        %v1770 = vpop.f32.mrb[0].mxu0
        %1771 = vdwg.mxu0
        %v1772 = vmul.f32 %v1767, 0.125
        %v1773 = vadd.f32 %v1772, %v1433
        %v1774 = vsel %vm1436, %v1773, -inf
        %1775 = vmax.xlane.f32.xlu0 %v1774
        %v1776 = vpop.xlane.xlu0 %1775
        %v1777 = vsub.f32 %v1773, %v1776
        %v1778 = vmul.f32 %v1777, 1.442695
        %v1779 = vpow.pop %v1778
        %v1780 = vsel %vm1436, %v1779, 0.0
        %1781 = vadd.xlane.f32.xlu0 %v1780
        %v1782 = vpop.xlane.xlu0 %1781
        %v1783 = vrcp.pop %v1782
        %v1784 = vmul.f32 %v1779, %v1783
        %v1785 = vpack.c.bf16 %v1784, %v1784
        %1787 = vrot.lane.b32.xlu0 %v1613, 64
        %v1788 = vpop.permute.xlu0 %1787
        %v1790 = vsel %vm1436, %v1785, 0
        %v1793 = vsel %vm1452, %v1788, 0
        %1795 = vmatprep.subr.bf16.mxu0 0
        %1796 = vmatpush1.bf16.msra.mxu0 %v1793
        %1797 = vmatprep.subr.bf16.mxu0 0
        %1798 = vmatpush1.bf16.msra.mxu0 0
        %1799 = vmatprep.subr.bf16.mxu0 0
        %1800 = vmatpush1.bf16.msra.mxu0 0
        %1801 = vmatprep.subr.bf16.mxu0 0
        %1802 = vmatpush1.bf16.msra.mxu0 0
        %1803 = vmatprep.subr.bf16.mxu0 0
        %1804 = vmatpush1.bf16.msra.mxu0 0
        %1805 = vmatprep.subr.bf16.mxu0 0
        %1806 = vmatpush1.bf16.msra.mxu0 0
        %1807 = vmatprep.subr.bf16.mxu0 0
        %1808 = vmatpush1.bf16.msra.mxu0 0
        %1809 = vmatprep.subr.bf16.mxu0 0
        %1810 = vmatpush1.bf16.msra.mxu0 0
        %1811 = vmatprep.subr.bf16.mxu0 0
        %1812 = vmatpush1.bf16.msra.mxu0 0
        %1813 = vmatprep.subr.bf16.mxu0 0
        %1814 = vmatpush1.bf16.msra.mxu0 0
        %1815 = vmatprep.subr.bf16.mxu0 0
        %1816 = vmatpush1.bf16.msra.mxu0 0
        %1817 = vmatprep.subr.bf16.mxu0 0
        %1818 = vmatpush1.bf16.msra.mxu0 0
        %1819 = vmatprep.subr.bf16.mxu0 0
        %1820 = vmatpush1.bf16.msra.mxu0 0
        %1821 = vmatprep.subr.bf16.mxu0 0
        %1822 = vmatpush1.bf16.msra.mxu0 0
        %1823 = vmatprep.subr.bf16.mxu0 0
        %1824 = vmatpush1.bf16.msra.mxu0 0
        %1825 = vmatprep.subr.bf16.mxu0 0
        %1826 = vmatpush1.bf16.msra.mxu0 0
        %1827 = vmatprep.mubr.bf16.mxu0 0
        %1828 = vmatmul.mubr.bf16.gmra.mrb[0].mxu0 %v1790
        %v1829 = vpop.f32.mrb[0].mxu0
        %v1830 = vadd.f32 0.0, %v1829
        %v1831 = vpop.f32.mrb[0].mxu0
        %v1832 = vpop.f32.mrb[0].mxu0
        %v1833 = vpop.f32.mrb[0].mxu0
        %1834 = vdwg.mxu0
        %1836 = vrot.lane.b32.xlu0 %v1606, 64
        %v1837 = vpop.permute.xlu0 %1836
        %1840 = vrot.lane.b32.xlu0 %v1830, 64
        %v1841 = vpop.permute.xlu0 %1840
        %v1843 = vsel %vm1381, %v1491, %v1837
        %v1844 = vsel %vm1381, %v1715, %v1841
        %v1845 = vpack.c.bf16 %v1843, %v1843
        %v1846 = vpack.c.bf16 %v1844, %v1844
        %v1847 = vld [vmem:[#allocation6] sm:$0xff]
        %v1848 = vld [vmem:[#allocation6 + $0x8] sm:$0xff]
        %v1849 = vld [vmem:[#allocation6 + $0x10] sm:$0xff]
        %v1850 = vld [vmem:[#allocation6 + $0x18] sm:$0xff]
        %v1851 = vld [vmem:[#allocation6 + $0x20] sm:$0xff]
        %v1852 = vld [vmem:[#allocation6 + $0x28] sm:$0xff]
        %v1853 = vld [vmem:[#allocation6 + $0x30] sm:$0xff]
        %v1854 = vld [vmem:[#allocation6 + $0x38] sm:$0xff]
        %v1855 = vld [vmem:[#allocation6 + $0x40] sm:$0xff]
        %v1856 = vld [vmem:[#allocation6 + $0x48] sm:$0xff]
        %v1857 = vld [vmem:[#allocation6 + $0x50] sm:$0xff]
        %v1858 = vld [vmem:[#allocation6 + $0x58] sm:$0xff]
        %v1859 = vld [vmem:[#allocation6 + $0x60] sm:$0xff]
        %v1860 = vld [vmem:[#allocation6 + $0x68] sm:$0xff]
        %v1861 = vld [vmem:[#allocation6 + $0x70] sm:$0xff]
        %v1862 = vld [vmem:[#allocation6 + $0x78] sm:$0xff]
        %v1863 = vld [vmem:[#allocation6 + $0x80] sm:$0xff]
        %v1864 = vld [vmem:[#allocation6 + $0x88] sm:$0xff]
        %v1865 = vld [vmem:[#allocation6 + $0x90] sm:$0xff]
        %v1866 = vld [vmem:[#allocation6 + $0x98] sm:$0xff]
        %v1867 = vld [vmem:[#allocation6 + $0xa0] sm:$0xff]
        %v1868 = vld [vmem:[#allocation6 + $0xa8] sm:$0xff]
        %v1869 = vld [vmem:[#allocation6 + $0xb0] sm:$0xff]
        %v1870 = vld [vmem:[#allocation6 + $0xb8] sm:$0xff]
        %v1871 = vld [vmem:[#allocation6 + $0xc0] sm:$0xff]
        %v1872 = vld [vmem:[#allocation6 + $0xc8] sm:$0xff]
        %v1873 = vld [vmem:[#allocation6 + $0xd0] sm:$0xff]
        %v1874 = vld [vmem:[#allocation6 + $0xd8] sm:$0xff]
        %v1875 = vld [vmem:[#allocation6 + $0xe0] sm:$0xff]
        %v1876 = vld [vmem:[#allocation6 + $0xe8] sm:$0xff]
        %v1877 = vld [vmem:[#allocation6 + $0xf0] sm:$0xff]
        %v1878 = vld [vmem:[#allocation6 + $0xf8] sm:$0xff]
        %v1879 = vld [vmem:[#allocation7] sm:$0x3]
        %v1881 = vlaneseq
        %v1882 = vshrl.u32 %v1881, 7
        %v1883 = vsub.s32 0, %v1882
        %v1884 = vrot.slane %v1879, %v1883
        %v1885 = vlaneseq
        %v1886 = vshrl.u32 %v1885, 7
        %v1887 = vsub.s32 1, %v1886
        %v1888 = vrot.slane %v1879, %v1887
        %v1923 = vunpack.c.l.b16 %v1847
        %v1924 = vunpack.c.h.b16 %v1847
        %v1925 = vunpack.c.l.b16 %v1848
        %v1926 = vunpack.c.h.b16 %v1848
        %v1927 = vunpack.c.l.b16 %v1849
        %v1928 = vunpack.c.h.b16 %v1849
        %v1929 = vunpack.c.l.b16 %v1850
        %v1930 = vunpack.c.h.b16 %v1850
        %v1931 = vunpack.c.l.b16 %v1851
        %v1932 = vunpack.c.h.b16 %v1851
        %v1933 = vunpack.c.l.b16 %v1852
        %v1934 = vunpack.c.h.b16 %v1852
        %v1935 = vunpack.c.l.b16 %v1853
        %v1936 = vunpack.c.h.b16 %v1853
        %v1937 = vunpack.c.l.b16 %v1854
        %v1938 = vunpack.c.h.b16 %v1854
        %v1939 = vunpack.c.l.b16 %v1855
        %v1940 = vunpack.c.h.b16 %v1855
        %v1941 = vunpack.c.l.b16 %v1856
        %v1942 = vunpack.c.h.b16 %v1856
        %v1943 = vunpack.c.l.b16 %v1857
        %v1944 = vunpack.c.h.b16 %v1857
        %v1945 = vunpack.c.l.b16 %v1858
        %v1946 = vunpack.c.h.b16 %v1858
        %v1947 = vunpack.c.l.b16 %v1859
        %v1948 = vunpack.c.h.b16 %v1859
        %v1949 = vunpack.c.l.b16 %v1860
        %v1950 = vunpack.c.h.b16 %v1860
        %v1951 = vunpack.c.l.b16 %v1861
        %v1952 = vunpack.c.h.b16 %v1861
        %v1953 = vunpack.c.l.b16 %v1862
        %v1954 = vunpack.c.h.b16 %v1862
        %v1955 = vunpack.c.l.b16 %v1863
        %v1956 = vunpack.c.h.b16 %v1863
        %v1957 = vunpack.c.l.b16 %v1864
        %v1958 = vunpack.c.h.b16 %v1864
        %v1959 = vunpack.c.l.b16 %v1865
        %v1960 = vunpack.c.h.b16 %v1865
        %v1961 = vunpack.c.l.b16 %v1866
        %v1962 = vunpack.c.h.b16 %v1866
        %v1963 = vunpack.c.l.b16 %v1867
        %v1964 = vunpack.c.h.b16 %v1867
        %v1965 = vunpack.c.l.b16 %v1868
        %v1966 = vunpack.c.h.b16 %v1868
        %v1967 = vunpack.c.l.b16 %v1869
        %v1968 = vunpack.c.h.b16 %v1869
        %v1969 = vunpack.c.l.b16 %v1870
        %v1970 = vunpack.c.h.b16 %v1870
        %v1971 = vunpack.c.l.b16 %v1871
        %v1972 = vunpack.c.h.b16 %v1871
        %v1973 = vunpack.c.l.b16 %v1872
        %v1974 = vunpack.c.h.b16 %v1872
        %v1975 = vunpack.c.l.b16 %v1873
        %v1976 = vunpack.c.h.b16 %v1873
        %v1977 = vunpack.c.l.b16 %v1874
        %v1978 = vunpack.c.h.b16 %v1874
        %v1979 = vunpack.c.l.b16 %v1875
        %v1980 = vunpack.c.h.b16 %v1875
        %v1981 = vunpack.c.l.b16 %v1876
        %v1982 = vunpack.c.h.b16 %v1876
        %v1983 = vunpack.c.l.b16 %v1877
        %v1984 = vunpack.c.h.b16 %v1877
        %v1985 = vunpack.c.l.b16 %v1878
        %v1986 = vunpack.c.h.b16 %v1878
        %v1987 = vpack.c.b16 %v1925, %v1923
        %v1988 = vpack.c.b16 %v1926, %v1924
        %v1989 = vpack.c.b16 %v1929, %v1927
        %v1990 = vpack.c.b16 %v1930, %v1928
        %v1991 = vpack.c.b16 %v1933, %v1931
        %v1992 = vpack.c.b16 %v1934, %v1932
        %v1993 = vpack.c.b16 %v1937, %v1935
        %v1994 = vpack.c.b16 %v1938, %v1936
        %v1995 = vpack.c.b16 %v1941, %v1939
        %v1996 = vpack.c.b16 %v1942, %v1940
        %v1997 = vpack.c.b16 %v1945, %v1943
        %v1998 = vpack.c.b16 %v1946, %v1944
        %v1999 = vpack.c.b16 %v1949, %v1947
        %v2000 = vpack.c.b16 %v1950, %v1948
        %v2001 = vpack.c.b16 %v1953, %v1951
        %v2002 = vpack.c.b16 %v1954, %v1952
        %v2003 = vpack.c.b16 %v1957, %v1955
        %v2004 = vpack.c.b16 %v1958, %v1956
        %v2005 = vpack.c.b16 %v1961, %v1959
        %v2006 = vpack.c.b16 %v1962, %v1960
        %v2007 = vpack.c.b16 %v1965, %v1963
        %v2008 = vpack.c.b16 %v1966, %v1964
        %v2009 = vpack.c.b16 %v1969, %v1967
        %v2010 = vpack.c.b16 %v1970, %v1968
        %v2011 = vpack.c.b16 %v1973, %v1971
        %v2012 = vpack.c.b16 %v1974, %v1972
        %v2013 = vpack.c.b16 %v1977, %v1975
        %v2014 = vpack.c.b16 %v1978, %v1976
        %v2015 = vpack.c.b16 %v1981, %v1979
        %v2016 = vpack.c.b16 %v1982, %v1980
        %v2017 = vpack.c.b16 %v1985, %v1983
        %v2018 = vpack.c.b16 %v1986, %v1984
        %2051 = vmatprep.subr.bf16.mxu0 %v1988
        %2052 = vmatpush1.bf16.msra.mxu0 %v1987
        %2053 = vmatprep.subr.bf16.mxu0 %v1990
        %2054 = vmatpush1.bf16.msra.mxu0 %v1989
        %2055 = vmatprep.subr.bf16.mxu0 %v1992
        %2056 = vmatpush1.bf16.msra.mxu0 %v1991
        %2057 = vmatprep.subr.bf16.mxu0 %v1994
        %2058 = vmatpush1.bf16.msra.mxu0 %v1993
        %2059 = vmatprep.subr.bf16.mxu0 %v1996
        %2060 = vmatpush1.bf16.msra.mxu0 %v1995
        %2061 = vmatprep.subr.bf16.mxu0 %v1998
        %2062 = vmatpush1.bf16.msra.mxu0 %v1997
        %2063 = vmatprep.subr.bf16.mxu0 %v2000
        %2064 = vmatpush1.bf16.msra.mxu0 %v1999
        %2065 = vmatprep.subr.bf16.mxu0 %v2002
        %2066 = vmatpush1.bf16.msra.mxu0 %v2001
        %2067 = vmatprep.subr.bf16.mxu0 %v2004
        %2068 = vmatpush1.bf16.msra.mxu0 %v2003
        %2069 = vmatprep.subr.bf16.mxu0 %v2006
        %2070 = vmatpush1.bf16.msra.mxu0 %v2005
        %2071 = vmatprep.subr.bf16.mxu0 %v2008
        %2072 = vmatpush1.bf16.msra.mxu0 %v2007
        %2073 = vmatprep.subr.bf16.mxu0 %v2010
        %2074 = vmatpush1.bf16.msra.mxu0 %v2009
        %2075 = vmatprep.subr.bf16.mxu0 %v2012
        %2076 = vmatpush1.bf16.msra.mxu0 %v2011
        %2077 = vmatprep.subr.bf16.mxu0 %v2014
        %2078 = vmatpush1.bf16.msra.mxu0 %v2013
        %2079 = vmatprep.subr.bf16.mxu0 %v2016
        %2080 = vmatpush1.bf16.msra.mxu0 %v2015
        %2081 = vmatprep.subr.bf16.mxu0 %v2018
        %2082 = vmatpush1.bf16.msra.mxu0 %v2017
        %2083 = vmatprep.mubr.bf16.mxu0 %v1846
        %2084 = vmatmul.mubr.bf16.gmra.mrb[0].mxu0 %v1845
        %v2085 = vpop.f32.mrb[0].mxu0
        %v2086 = vadd.f32 %v1884, %v2085
        %v2087 = vpop.f32.mrb[0].mxu0
        %v2088 = vadd.f32 %v1888, %v2087
        %v2089 = vpop.f32.mrb[0].mxu0
        %v2090 = vpop.f32.mrb[0].mxu0
        %2091 = vdwg.mxu0
        %v2092 = vadd.f32 %v2086, %v642
        %v2093 = vadd.f32 %v2088, %v643
        %v2094 = vld [vmem:[#allocation9] sm:$0x3]
        %v2095 = vld [vmem:[#allocation10] sm:$0x3]
        %v2096 = vadd.f32 %v2092, %v2093
        %2097 = vadd.xlane.f32.xlu0 %v2096
        %v2098 = vpop.xlane.xlu0 %2097
        %v2099 = vrcp.pop 256.0
        %v2100 = vmul.f32 %v2098, %v2099
        %v2101 = vsub.f32 %v2092, %v2100
        %v2102 = vsub.f32 %v2093, %v2100
        %v2103 = vmul.f32 %v2101, %v2101
        %v2104 = vmul.f32 %v2102, %v2102
        %v2105 = vadd.f32 %v2103, %v2104
        %2106 = vadd.xlane.f32.xlu0 %v2105
        %v2107 = vpop.xlane.xlu0 %2106
        %v2108 = vmul.f32 %v2107, %v2099
        %v2109 = vadd.f32 %v2108, 1e-07
        %v2110 = vrsqrt.pop %v2109
        %v2111 = vmul.f32 %v2101, %v2110
        %v2112 = vmul.f32 %v2102, %v2110
        %v2114 = vlaneseq
        %v2115 = vshrl.u32 %v2114, 7
        %v2116 = vsub.s32 0, %v2115
        %v2117 = vrot.slane %v2094, %v2116
        %v2118 = vlaneseq
        %v2119 = vshrl.u32 %v2118, 7
        %v2120 = vsub.s32 1, %v2119
        %v2121 = vrot.slane %v2094, %v2120
        %v2124 = vmul.f32 %v2111, %v2117
        %v2125 = vmul.f32 %v2112, %v2121
        %v2127 = vlaneseq
        %v2128 = vshrl.u32 %v2127, 7
        %v2129 = vsub.s32 0, %v2128
        %v2130 = vrot.slane %v2095, %v2129
        %v2131 = vlaneseq
        %v2132 = vshrl.u32 %v2131, 7
        %v2133 = vsub.s32 1, %v2132
        %v2134 = vrot.slane %v2095, %v2133
        %v2137 = vadd.f32 %v2124, %v2130
        %v2138 = vadd.f32 %v2125, %v2134
        %v2139 = vpack.c.bf16 %v2137, %v2137
        %v2140 = vpack.c.bf16 %v2138, %v2138
        %v2141 = vld [vmem:[#allocation12] sm:$0xff]
        %v2142 = vld [vmem:[#allocation12 + $0x8] sm:$0xff]
        %v2143 = vld [vmem:[#allocation12 + $0x10] sm:$0xff]
        %v2144 = vld [vmem:[#allocation12 + $0x18] sm:$0xff]
        %v2145 = vld [vmem:[#allocation12 + $0x20] sm:$0xff]
        %v2146 = vld [vmem:[#allocation12 + $0x28] sm:$0xff]
        %v2147 = vld [vmem:[#allocation12 + $0x30] sm:$0xff]
        %v2148 = vld [vmem:[#allocation12 + $0x38] sm:$0xff]
        %v2149 = vld [vmem:[#allocation12 + $0x40] sm:$0xff]
        %v2150 = vld [vmem:[#allocation12 + $0x48] sm:$0xff]
        %v2151 = vld [vmem:[#allocation12 + $0x50] sm:$0xff]
        %v2152 = vld [vmem:[#allocation12 + $0x58] sm:$0xff]
        %v2153 = vld [vmem:[#allocation12 + $0x60] sm:$0xff]
        %v2154 = vld [vmem:[#allocation12 + $0x68] sm:$0xff]
        %v2155 = vld [vmem:[#allocation12 + $0x70] sm:$0xff]
        %v2156 = vld [vmem:[#allocation12 + $0x78] sm:$0xff]
        %v2157 = vld [vmem:[#allocation12 + $0x80] sm:$0xff]
        %v2158 = vld [vmem:[#allocation12 + $0x88] sm:$0xff]
        %v2159 = vld [vmem:[#allocation12 + $0x90] sm:$0xff]
        %v2160 = vld [vmem:[#allocation12 + $0x98] sm:$0xff]
        %v2161 = vld [vmem:[#allocation12 + $0xa0] sm:$0xff]
        %v2162 = vld [vmem:[#allocation12 + $0xa8] sm:$0xff]
        %v2163 = vld [vmem:[#allocation12 + $0xb0] sm:$0xff]
        %v2164 = vld [vmem:[#allocation12 + $0xb8] sm:$0xff]
        %v2165 = vld [vmem:[#allocation12 + $0xc0] sm:$0xff]
        %v2166 = vld [vmem:[#allocation12 + $0xc8] sm:$0xff]
        %v2167 = vld [vmem:[#allocation12 + $0xd0] sm:$0xff]
        %v2168 = vld [vmem:[#allocation12 + $0xd8] sm:$0xff]
        %v2169 = vld [vmem:[#allocation12 + $0xe0] sm:$0xff]
        %v2170 = vld [vmem:[#allocation12 + $0xe8] sm:$0xff]
        %v2171 = vld [vmem:[#allocation12 + $0xf0] sm:$0xff]
        %v2172 = vld [vmem:[#allocation12 + $0xf8] sm:$0xff]
        %v2173 = vld [vmem:[#allocation12 + $0x100] sm:$0xff]
        %v2174 = vld [vmem:[#allocation12 + $0x108] sm:$0xff]
        %v2175 = vld [vmem:[#allocation12 + $0x110] sm:$0xff]
        %v2176 = vld [vmem:[#allocation12 + $0x118] sm:$0xff]
        %v2177 = vld [vmem:[#allocation12 + $0x120] sm:$0xff]
        %v2178 = vld [vmem:[#allocation12 + $0x128] sm:$0xff]
        %v2179 = vld [vmem:[#allocation12 + $0x130] sm:$0xff]
        %v2180 = vld [vmem:[#allocation12 + $0x138] sm:$0xff]
        %v2181 = vld [vmem:[#allocation12 + $0x140] sm:$0xff]
        %v2182 = vld [vmem:[#allocation12 + $0x148] sm:$0xff]
        %v2183 = vld [vmem:[#allocation12 + $0x150] sm:$0xff]
        %v2184 = vld [vmem:[#allocation12 + $0x158] sm:$0xff]
        %v2185 = vld [vmem:[#allocation12 + $0x160] sm:$0xff]
        %v2186 = vld [vmem:[#allocation12 + $0x168] sm:$0xff]
        %v2187 = vld [vmem:[#allocation12 + $0x170] sm:$0xff]
        %v2188 = vld [vmem:[#allocation12 + $0x178] sm:$0xff]
        %v2189 = vld [vmem:[#allocation12 + $0x180] sm:$0xff]
        %v2190 = vld [vmem:[#allocation12 + $0x188] sm:$0xff]
        %v2191 = vld [vmem:[#allocation12 + $0x190] sm:$0xff]
        %v2192 = vld [vmem:[#allocation12 + $0x198] sm:$0xff]
        %v2193 = vld [vmem:[#allocation12 + $0x1a0] sm:$0xff]
        %v2194 = vld [vmem:[#allocation12 + $0x1a8] sm:$0xff]
        %v2195 = vld [vmem:[#allocation12 + $0x1b0] sm:$0xff]
        %v2196 = vld [vmem:[#allocation12 + $0x1b8] sm:$0xff]
        %v2197 = vld [vmem:[#allocation12 + $0x1c0] sm:$0xff]
        %v2198 = vld [vmem:[#allocation12 + $0x1c8] sm:$0xff]
        %v2199 = vld [vmem:[#allocation12 + $0x1d0] sm:$0xff]
        %v2200 = vld [vmem:[#allocation12 + $0x1d8] sm:$0xff]
        %v2201 = vld [vmem:[#allocation12 + $0x1e0] sm:$0xff]
        %v2202 = vld [vmem:[#allocation12 + $0x1e8] sm:$0xff]
        %v2203 = vld [vmem:[#allocation12 + $0x1f0] sm:$0xff]
        %v2204 = vld [vmem:[#allocation12 + $0x1f8] sm:$0xff]
        %v2205 = vld [vmem:[#allocation12 + $0x200] sm:$0xff]
        %v2206 = vld [vmem:[#allocation12 + $0x208] sm:$0xff]
        %v2207 = vld [vmem:[#allocation12 + $0x210] sm:$0xff]
        %v2208 = vld [vmem:[#allocation12 + $0x218] sm:$0xff]
        %v2209 = vld [vmem:[#allocation12 + $0x220] sm:$0xff]
        %v2210 = vld [vmem:[#allocation12 + $0x228] sm:$0xff]
        %v2211 = vld [vmem:[#allocation12 + $0x230] sm:$0xff]
        %v2212 = vld [vmem:[#allocation12 + $0x238] sm:$0xff]
        %v2213 = vld [vmem:[#allocation12 + $0x240] sm:$0xff]
        %v2214 = vld [vmem:[#allocation12 + $0x248] sm:$0xff]
        %v2215 = vld [vmem:[#allocation12 + $0x250] sm:$0xff]
        %v2216 = vld [vmem:[#allocation12 + $0x258] sm:$0xff]
        %v2217 = vld [vmem:[#allocation12 + $0x260] sm:$0xff]
        %v2218 = vld [vmem:[#allocation12 + $0x268] sm:$0xff]
        %v2219 = vld [vmem:[#allocation12 + $0x270] sm:$0xff]
        %v2220 = vld [vmem:[#allocation12 + $0x278] sm:$0xff]
        %v2221 = vld [vmem:[#allocation12 + $0x280] sm:$0xff]
        %v2222 = vld [vmem:[#allocation12 + $0x288] sm:$0xff]
        %v2223 = vld [vmem:[#allocation12 + $0x290] sm:$0xff]
        %v2224 = vld [vmem:[#allocation12 + $0x298] sm:$0xff]
        %v2225 = vld [vmem:[#allocation12 + $0x2a0] sm:$0xff]
        %v2226 = vld [vmem:[#allocation12 + $0x2a8] sm:$0xff]
        %v2227 = vld [vmem:[#allocation12 + $0x2b0] sm:$0xff]
        %v2228 = vld [vmem:[#allocation12 + $0x2b8] sm:$0xff]
        %v2229 = vld [vmem:[#allocation12 + $0x2c0] sm:$0xff]
        %v2230 = vld [vmem:[#allocation12 + $0x2c8] sm:$0xff]
        %v2231 = vld [vmem:[#allocation12 + $0x2d0] sm:$0xff]
        %v2232 = vld [vmem:[#allocation12 + $0x2d8] sm:$0xff]
        %v2233 = vld [vmem:[#allocation12 + $0x2e0] sm:$0xff]
        %v2234 = vld [vmem:[#allocation12 + $0x2e8] sm:$0xff]
        %v2235 = vld [vmem:[#allocation12 + $0x2f0] sm:$0xff]
        %v2236 = vld [vmem:[#allocation12 + $0x2f8] sm:$0xff]
        %v2237 = vld [vmem:[#allocation12 + $0x300] sm:$0xff]
        %v2238 = vld [vmem:[#allocation12 + $0x308] sm:$0xff]
        %v2239 = vld [vmem:[#allocation12 + $0x310] sm:$0xff]
        %v2240 = vld [vmem:[#allocation12 + $0x318] sm:$0xff]
        %v2241 = vld [vmem:[#allocation12 + $0x320] sm:$0xff]
        %v2242 = vld [vmem:[#allocation12 + $0x328] sm:$0xff]
        %v2243 = vld [vmem:[#allocation12 + $0x330] sm:$0xff]
        %v2244 = vld [vmem:[#allocation12 + $0x338] sm:$0xff]
        %v2245 = vld [vmem:[#allocation12 + $0x340] sm:$0xff]
        %v2246 = vld [vmem:[#allocation12 + $0x348] sm:$0xff]
        %v2247 = vld [vmem:[#allocation12 + $0x350] sm:$0xff]
        %v2248 = vld [vmem:[#allocation12 + $0x358] sm:$0xff]
        %v2249 = vld [vmem:[#allocation12 + $0x360] sm:$0xff]
        %v2250 = vld [vmem:[#allocation12 + $0x368] sm:$0xff]
        %v2251 = vld [vmem:[#allocation12 + $0x370] sm:$0xff]
        %v2252 = vld [vmem:[#allocation12 + $0x378] sm:$0xff]
        %v2253 = vld [vmem:[#allocation12 + $0x380] sm:$0xff]
        %v2254 = vld [vmem:[#allocation12 + $0x388] sm:$0xff]
        %v2255 = vld [vmem:[#allocation12 + $0x390] sm:$0xff]
        %v2256 = vld [vmem:[#allocation12 + $0x398] sm:$0xff]
        %v2257 = vld [vmem:[#allocation12 + $0x3a0] sm:$0xff]
        %v2258 = vld [vmem:[#allocation12 + $0x3a8] sm:$0xff]
        %v2259 = vld [vmem:[#allocation12 + $0x3b0] sm:$0xff]
        %v2260 = vld [vmem:[#allocation12 + $0x3b8] sm:$0xff]
        %v2261 = vld [vmem:[#allocation12 + $0x3c0] sm:$0xff]
        %v2262 = vld [vmem:[#allocation12 + $0x3c8] sm:$0xff]
        %v2263 = vld [vmem:[#allocation12 + $0x3d0] sm:$0xff]
        %v2264 = vld [vmem:[#allocation12 + $0x3d8] sm:$0xff]
        %v2265 = vld [vmem:[#allocation12 + $0x3e0] sm:$0xff]
        %v2266 = vld [vmem:[#allocation12 + $0x3e8] sm:$0xff]
        %v2267 = vld [vmem:[#allocation12 + $0x3f0] sm:$0xff]
        %v2268 = vld [vmem:[#allocation12 + $0x3f8] sm:$0xff]
        %v2269 = vld [vmem:[#allocation13] sm:$0xff]
        %v2271 = vlaneseq
        %v2272 = vshrl.u32 %v2271, 7
        %v2273 = vsub.s32 0, %v2272
        %v2274 = vrot.slane %v2269, %v2273
        %v2275 = vlaneseq
        %v2276 = vshrl.u32 %v2275, 7
        %v2277 = vsub.s32 1, %v2276
        %v2278 = vrot.slane %v2269, %v2277
        %v2279 = vlaneseq
        %v2280 = vshrl.u32 %v2279, 7
        %v2281 = vsub.s32 2, %v2280
        %v2282 = vrot.slane %v2269, %v2281
        %v2283 = vlaneseq
        %v2284 = vshrl.u32 %v2283, 7
        %v2285 = vsub.s32 3, %v2284
        %v2286 = vrot.slane %v2269, %v2285
        %v2287 = vlaneseq
        %v2288 = vshrl.u32 %v2287, 7
        %v2289 = vsub.s32 4, %v2288
        %v2290 = vrot.slane %v2269, %v2289
        %v2291 = vlaneseq
        %v2292 = vshrl.u32 %v2291, 7
        %v2293 = vsub.s32 5, %v2292
        %v2294 = vrot.slane %v2269, %v2293
        %v2295 = vlaneseq
        %v2296 = vshrl.u32 %v2295, 7
        %v2297 = vsub.s32 6, %v2296
        %v2298 = vrot.slane %v2269, %v2297
        %v2299 = vlaneseq
        %v2300 = vshrl.u32 %v2299, 7
        %v2301 = vsub.s32 7, %v2300
        %v2302 = vrot.slane %v2269, %v2301
        %v2439 = vunpack.c.l.b16 %v2141
        %v2440 = vunpack.c.h.b16 %v2141
        %v2441 = vunpack.c.l.b16 %v2142
        %v2442 = vunpack.c.h.b16 %v2142
        %v2443 = vunpack.c.l.b16 %v2143
        %v2444 = vunpack.c.h.b16 %v2143
        %v2445 = vunpack.c.l.b16 %v2144
        %v2446 = vunpack.c.h.b16 %v2144
        %v2447 = vunpack.c.l.b16 %v2145
        %v2448 = vunpack.c.h.b16 %v2145
        %v2449 = vunpack.c.l.b16 %v2146
        %v2450 = vunpack.c.h.b16 %v2146
        %v2451 = vunpack.c.l.b16 %v2147
        %v2452 = vunpack.c.h.b16 %v2147
        %v2453 = vunpack.c.l.b16 %v2148
        %v2454 = vunpack.c.h.b16 %v2148
        %v2455 = vunpack.c.l.b16 %v2149
        %v2456 = vunpack.c.h.b16 %v2149
        %v2457 = vunpack.c.l.b16 %v2150
        %v2458 = vunpack.c.h.b16 %v2150
        %v2459 = vunpack.c.l.b16 %v2151
        %v2460 = vunpack.c.h.b16 %v2151
        %v2461 = vunpack.c.l.b16 %v2152
        %v2462 = vunpack.c.h.b16 %v2152
        %v2463 = vunpack.c.l.b16 %v2153
        %v2464 = vunpack.c.h.b16 %v2153
        %v2465 = vunpack.c.l.b16 %v2154
        %v2466 = vunpack.c.h.b16 %v2154
        %v2467 = vunpack.c.l.b16 %v2155
        %v2468 = vunpack.c.h.b16 %v2155
        %v2469 = vunpack.c.l.b16 %v2156
        %v2470 = vunpack.c.h.b16 %v2156
        %v2471 = vunpack.c.l.b16 %v2157
        %v2472 = vunpack.c.h.b16 %v2157
        %v2473 = vunpack.c.l.b16 %v2158
        %v2474 = vunpack.c.h.b16 %v2158
        %v2475 = vunpack.c.l.b16 %v2159
        %v2476 = vunpack.c.h.b16 %v2159
        %v2477 = vunpack.c.l.b16 %v2160
        %v2478 = vunpack.c.h.b16 %v2160
        %v2479 = vunpack.c.l.b16 %v2161
        %v2480 = vunpack.c.h.b16 %v2161
        %v2481 = vunpack.c.l.b16 %v2162
        %v2482 = vunpack.c.h.b16 %v2162
        %v2483 = vunpack.c.l.b16 %v2163
        %v2484 = vunpack.c.h.b16 %v2163
        %v2485 = vunpack.c.l.b16 %v2164
        %v2486 = vunpack.c.h.b16 %v2164
        %v2487 = vunpack.c.l.b16 %v2165
        %v2488 = vunpack.c.h.b16 %v2165
        %v2489 = vunpack.c.l.b16 %v2166
        %v2490 = vunpack.c.h.b16 %v2166
        %v2491 = vunpack.c.l.b16 %v2167
        %v2492 = vunpack.c.h.b16 %v2167
        %v2493 = vunpack.c.l.b16 %v2168
        %v2494 = vunpack.c.h.b16 %v2168
        %v2495 = vunpack.c.l.b16 %v2169
        %v2496 = vunpack.c.h.b16 %v2169
        %v2497 = vunpack.c.l.b16 %v2170
        %v2498 = vunpack.c.h.b16 %v2170
        %v2499 = vunpack.c.l.b16 %v2171
        %v2500 = vunpack.c.h.b16 %v2171
        %v2501 = vunpack.c.l.b16 %v2172
        %v2502 = vunpack.c.h.b16 %v2172
        %v2503 = vunpack.c.l.b16 %v2173
        %v2504 = vunpack.c.h.b16 %v2173
        %v2505 = vunpack.c.l.b16 %v2174
        %v2506 = vunpack.c.h.b16 %v2174
        %v2507 = vunpack.c.l.b16 %v2175
        %v2508 = vunpack.c.h.b16 %v2175
        %v2509 = vunpack.c.l.b16 %v2176
        %v2510 = vunpack.c.h.b16 %v2176
        %v2511 = vunpack.c.l.b16 %v2177
        %v2512 = vunpack.c.h.b16 %v2177
        %v2513 = vunpack.c.l.b16 %v2178
        %v2514 = vunpack.c.h.b16 %v2178
        %v2515 = vunpack.c.l.b16 %v2179
        %v2516 = vunpack.c.h.b16 %v2179
        %v2517 = vunpack.c.l.b16 %v2180
        %v2518 = vunpack.c.h.b16 %v2180
        %v2519 = vunpack.c.l.b16 %v2181
        %v2520 = vunpack.c.h.b16 %v2181
        %v2521 = vunpack.c.l.b16 %v2182
        %v2522 = vunpack.c.h.b16 %v2182
        %v2523 = vunpack.c.l.b16 %v2183
        %v2524 = vunpack.c.h.b16 %v2183
        %v2525 = vunpack.c.l.b16 %v2184
        %v2526 = vunpack.c.h.b16 %v2184
        %v2527 = vunpack.c.l.b16 %v2185
        %v2528 = vunpack.c.h.b16 %v2185
        %v2529 = vunpack.c.l.b16 %v2186
        %v2530 = vunpack.c.h.b16 %v2186
        %v2531 = vunpack.c.l.b16 %v2187
        %v2532 = vunpack.c.h.b16 %v2187
        %v2533 = vunpack.c.l.b16 %v2188
        %v2534 = vunpack.c.h.b16 %v2188
        %v2535 = vunpack.c.l.b16 %v2189
        %v2536 = vunpack.c.h.b16 %v2189
        %v2537 = vunpack.c.l.b16 %v2190
        %v2538 = vunpack.c.h.b16 %v2190
        %v2539 = vunpack.c.l.b16 %v2191
        %v2540 = vunpack.c.h.b16 %v2191
        %v2541 = vunpack.c.l.b16 %v2192
        %v2542 = vunpack.c.h.b16 %v2192
        %v2543 = vunpack.c.l.b16 %v2193
        %v2544 = vunpack.c.h.b16 %v2193
        %v2545 = vunpack.c.l.b16 %v2194
        %v2546 = vunpack.c.h.b16 %v2194
        %v2547 = vunpack.c.l.b16 %v2195
        %v2548 = vunpack.c.h.b16 %v2195
        %v2549 = vunpack.c.l.b16 %v2196
        %v2550 = vunpack.c.h.b16 %v2196
        %v2551 = vunpack.c.l.b16 %v2197
        %v2552 = vunpack.c.h.b16 %v2197
        %v2553 = vunpack.c.l.b16 %v2198
        %v2554 = vunpack.c.h.b16 %v2198
        %v2555 = vunpack.c.l.b16 %v2199
        %v2556 = vunpack.c.h.b16 %v2199
        %v2557 = vunpack.c.l.b16 %v2200
        %v2558 = vunpack.c.h.b16 %v2200
        %v2559 = vunpack.c.l.b16 %v2201
        %v2560 = vunpack.c.h.b16 %v2201
        %v2561 = vunpack.c.l.b16 %v2202
        %v2562 = vunpack.c.h.b16 %v2202
        %v2563 = vunpack.c.l.b16 %v2203
        %v2564 = vunpack.c.h.b16 %v2203
        %v2565 = vunpack.c.l.b16 %v2204
        %v2566 = vunpack.c.h.b16 %v2204
        %v2567 = vunpack.c.l.b16 %v2205
        %v2568 = vunpack.c.h.b16 %v2205
        %v2569 = vunpack.c.l.b16 %v2206
        %v2570 = vunpack.c.h.b16 %v2206
        %v2571 = vunpack.c.l.b16 %v2207
        %v2572 = vunpack.c.h.b16 %v2207
        %v2573 = vunpack.c.l.b16 %v2208
        %v2574 = vunpack.c.h.b16 %v2208
        %v2575 = vunpack.c.l.b16 %v2209
        %v2576 = vunpack.c.h.b16 %v2209
        %v2577 = vunpack.c.l.b16 %v2210
        %v2578 = vunpack.c.h.b16 %v2210
        %v2579 = vunpack.c.l.b16 %v2211
        %v2580 = vunpack.c.h.b16 %v2211
        %v2581 = vunpack.c.l.b16 %v2212
        %v2582 = vunpack.c.h.b16 %v2212
        %v2583 = vunpack.c.l.b16 %v2213
        %v2584 = vunpack.c.h.b16 %v2213
        %v2585 = vunpack.c.l.b16 %v2214
        %v2586 = vunpack.c.h.b16 %v2214
        %v2587 = vunpack.c.l.b16 %v2215
        %v2588 = vunpack.c.h.b16 %v2215
        %v2589 = vunpack.c.l.b16 %v2216
        %v2590 = vunpack.c.h.b16 %v2216
        %v2591 = vunpack.c.l.b16 %v2217
        %v2592 = vunpack.c.h.b16 %v2217
        %v2593 = vunpack.c.l.b16 %v2218
        %v2594 = vunpack.c.h.b16 %v2218
        %v2595 = vunpack.c.l.b16 %v2219
        %v2596 = vunpack.c.h.b16 %v2219
        %v2597 = vunpack.c.l.b16 %v2220
        %v2598 = vunpack.c.h.b16 %v2220
        %v2599 = vunpack.c.l.b16 %v2221
        %v2600 = vunpack.c.h.b16 %v2221
        %v2601 = vunpack.c.l.b16 %v2222
        %v2602 = vunpack.c.h.b16 %v2222
        %v2603 = vunpack.c.l.b16 %v2223
        %v2604 = vunpack.c.h.b16 %v2223
        %v2605 = vunpack.c.l.b16 %v2224
        %v2606 = vunpack.c.h.b16 %v2224
        %v2607 = vunpack.c.l.b16 %v2225
        %v2608 = vunpack.c.h.b16 %v2225
        %v2609 = vunpack.c.l.b16 %v2226
        %v2610 = vunpack.c.h.b16 %v2226
        %v2611 = vunpack.c.l.b16 %v2227
        %v2612 = vunpack.c.h.b16 %v2227
        %v2613 = vunpack.c.l.b16 %v2228
        %v2614 = vunpack.c.h.b16 %v2228
        %v2615 = vunpack.c.l.b16 %v2229
        %v2616 = vunpack.c.h.b16 %v2229
        %v2617 = vunpack.c.l.b16 %v2230
        %v2618 = vunpack.c.h.b16 %v2230
        %v2619 = vunpack.c.l.b16 %v2231
        %v2620 = vunpack.c.h.b16 %v2231
        %v2621 = vunpack.c.l.b16 %v2232
        %v2622 = vunpack.c.h.b16 %v2232
        %v2623 = vunpack.c.l.b16 %v2233
        %v2624 = vunpack.c.h.b16 %v2233
        %v2625 = vunpack.c.l.b16 %v2234
        %v2626 = vunpack.c.h.b16 %v2234
        %v2627 = vunpack.c.l.b16 %v2235
        %v2628 = vunpack.c.h.b16 %v2235
        %v2629 = vunpack.c.l.b16 %v2236
        %v2630 = vunpack.c.h.b16 %v2236
        %v2631 = vunpack.c.l.b16 %v2237
        %v2632 = vunpack.c.h.b16 %v2237
        %v2633 = vunpack.c.l.b16 %v2238
        %v2634 = vunpack.c.h.b16 %v2238
        %v2635 = vunpack.c.l.b16 %v2239
        %v2636 = vunpack.c.h.b16 %v2239
        %v2637 = vunpack.c.l.b16 %v2240
        %v2638 = vunpack.c.h.b16 %v2240
        %v2639 = vunpack.c.l.b16 %v2241
        %v2640 = vunpack.c.h.b16 %v2241
        %v2641 = vunpack.c.l.b16 %v2242
        %v2642 = vunpack.c.h.b16 %v2242
        %v2643 = vunpack.c.l.b16 %v2243
        %v2644 = vunpack.c.h.b16 %v2243
        %v2645 = vunpack.c.l.b16 %v2244
        %v2646 = vunpack.c.h.b16 %v2244
        %v2647 = vunpack.c.l.b16 %v2245
        %v2648 = vunpack.c.h.b16 %v2245
        %v2649 = vunpack.c.l.b16 %v2246
        %v2650 = vunpack.c.h.b16 %v2246
        %v2651 = vunpack.c.l.b16 %v2247
        %v2652 = vunpack.c.h.b16 %v2247
        %v2653 = vunpack.c.l.b16 %v2248
        %v2654 = vunpack.c.h.b16 %v2248
        %v2655 = vunpack.c.l.b16 %v2249
        %v2656 = vunpack.c.h.b16 %v2249
        %v2657 = vunpack.c.l.b16 %v2250
        %v2658 = vunpack.c.h.b16 %v2250
        %v2659 = vunpack.c.l.b16 %v2251
        %v2660 = vunpack.c.h.b16 %v2251
        %v2661 = vunpack.c.l.b16 %v2252
        %v2662 = vunpack.c.h.b16 %v2252
        %v2663 = vunpack.c.l.b16 %v2253
        %v2664 = vunpack.c.h.b16 %v2253
        %v2665 = vunpack.c.l.b16 %v2254
        %v2666 = vunpack.c.h.b16 %v2254
        %v2667 = vunpack.c.l.b16 %v2255
        %v2668 = vunpack.c.h.b16 %v2255
        %v2669 = vunpack.c.l.b16 %v2256
        %v2670 = vunpack.c.h.b16 %v2256
        %v2671 = vunpack.c.l.b16 %v2257
        %v2672 = vunpack.c.h.b16 %v2257
        %v2673 = vunpack.c.l.b16 %v2258
        %v2674 = vunpack.c.h.b16 %v2258
        %v2675 = vunpack.c.l.b16 %v2259
        %v2676 = vunpack.c.h.b16 %v2259
        %v2677 = vunpack.c.l.b16 %v2260
        %v2678 = vunpack.c.h.b16 %v2260
        %v2679 = vunpack.c.l.b16 %v2261
        %v2680 = vunpack.c.h.b16 %v2261
        %v2681 = vunpack.c.l.b16 %v2262
        %v2682 = vunpack.c.h.b16 %v2262
        %v2683 = vunpack.c.l.b16 %v2263
        %v2684 = vunpack.c.h.b16 %v2263
        %v2685 = vunpack.c.l.b16 %v2264
        %v2686 = vunpack.c.h.b16 %v2264
        %v2687 = vunpack.c.l.b16 %v2265
        %v2688 = vunpack.c.h.b16 %v2265
        %v2689 = vunpack.c.l.b16 %v2266
        %v2690 = vunpack.c.h.b16 %v2266
        %v2691 = vunpack.c.l.b16 %v2267
        %v2692 = vunpack.c.h.b16 %v2267
        %v2693 = vunpack.c.l.b16 %v2268
        %v2694 = vunpack.c.h.b16 %v2268
        %v2695 = vpack.c.b16 %v2447, %v2439
        %v2696 = vpack.c.b16 %v2448, %v2440
        %v2697 = vpack.c.b16 %v2449, %v2441
        %v2698 = vpack.c.b16 %v2450, %v2442
        %v2699 = vpack.c.b16 %v2451, %v2443
        %v2700 = vpack.c.b16 %v2452, %v2444
        %v2701 = vpack.c.b16 %v2453, %v2445
        %v2702 = vpack.c.b16 %v2454, %v2446
        %v2703 = vpack.c.b16 %v2463, %v2455
        %v2704 = vpack.c.b16 %v2464, %v2456
        %v2705 = vpack.c.b16 %v2465, %v2457
        %v2706 = vpack.c.b16 %v2466, %v2458
        %v2707 = vpack.c.b16 %v2467, %v2459
        %v2708 = vpack.c.b16 %v2468, %v2460
        %v2709 = vpack.c.b16 %v2469, %v2461
        %v2710 = vpack.c.b16 %v2470, %v2462
        %v2711 = vpack.c.b16 %v2479, %v2471
        %v2712 = vpack.c.b16 %v2480, %v2472
        %v2713 = vpack.c.b16 %v2481, %v2473
        %v2714 = vpack.c.b16 %v2482, %v2474
        %v2715 = vpack.c.b16 %v2483, %v2475
        %v2716 = vpack.c.b16 %v2484, %v2476
        %v2717 = vpack.c.b16 %v2485, %v2477
        %v2718 = vpack.c.b16 %v2486, %v2478
        %v2719 = vpack.c.b16 %v2495, %v2487
        %v2720 = vpack.c.b16 %v2496, %v2488
        %v2721 = vpack.c.b16 %v2497, %v2489
        %v2722 = vpack.c.b16 %v2498, %v2490
        %v2723 = vpack.c.b16 %v2499, %v2491
        %v2724 = vpack.c.b16 %v2500, %v2492
        %v2725 = vpack.c.b16 %v2501, %v2493
        %v2726 = vpack.c.b16 %v2502, %v2494
        %v2727 = vpack.c.b16 %v2511, %v2503
        %v2728 = vpack.c.b16 %v2512, %v2504
        %v2729 = vpack.c.b16 %v2513, %v2505
        %v2730 = vpack.c.b16 %v2514, %v2506
        %v2731 = vpack.c.b16 %v2515, %v2507
        %v2732 = vpack.c.b16 %v2516, %v2508
        %v2733 = vpack.c.b16 %v2517, %v2509
        %v2734 = vpack.c.b16 %v2518, %v2510
        %v2735 = vpack.c.b16 %v2527, %v2519
        %v2736 = vpack.c.b16 %v2528, %v2520
        %v2737 = vpack.c.b16 %v2529, %v2521
        %v2738 = vpack.c.b16 %v2530, %v2522
        %v2739 = vpack.c.b16 %v2531, %v2523
        %v2740 = vpack.c.b16 %v2532, %v2524
        %v2741 = vpack.c.b16 %v2533, %v2525
        %v2742 = vpack.c.b16 %v2534, %v2526
        %v2743 = vpack.c.b16 %v2543, %v2535
        %v2744 = vpack.c.b16 %v2544, %v2536
        %v2745 = vpack.c.b16 %v2545, %v2537
        %v2746 = vpack.c.b16 %v2546, %v2538
        %v2747 = vpack.c.b16 %v2547, %v2539
        %v2748 = vpack.c.b16 %v2548, %v2540
        %v2749 = vpack.c.b16 %v2549, %v2541
        %v2750 = vpack.c.b16 %v2550, %v2542
        %v2751 = vpack.c.b16 %v2559, %v2551
        %v2752 = vpack.c.b16 %v2560, %v2552
        %v2753 = vpack.c.b16 %v2561, %v2553
        %v2754 = vpack.c.b16 %v2562, %v2554
        %v2755 = vpack.c.b16 %v2563, %v2555
        %v2756 = vpack.c.b16 %v2564, %v2556
        %v2757 = vpack.c.b16 %v2565, %v2557
        %v2758 = vpack.c.b16 %v2566, %v2558
        %v2759 = vpack.c.b16 %v2575, %v2567
        %v2760 = vpack.c.b16 %v2576, %v2568
        %v2761 = vpack.c.b16 %v2577, %v2569
        %v2762 = vpack.c.b16 %v2578, %v2570
        %v2763 = vpack.c.b16 %v2579, %v2571
        %v2764 = vpack.c.b16 %v2580, %v2572
        %v2765 = vpack.c.b16 %v2581, %v2573
        %v2766 = vpack.c.b16 %v2582, %v2574
        %v2767 = vpack.c.b16 %v2591, %v2583
        %v2768 = vpack.c.b16 %v2592, %v2584
        %v2769 = vpack.c.b16 %v2593, %v2585
        %v2770 = vpack.c.b16 %v2594, %v2586
        %v2771 = vpack.c.b16 %v2595, %v2587
        %v2772 = vpack.c.b16 %v2596, %v2588
        %v2773 = vpack.c.b16 %v2597, %v2589
        %v2774 = vpack.c.b16 %v2598, %v2590
        %v2775 = vpack.c.b16 %v2607, %v2599
        %v2776 = vpack.c.b16 %v2608, %v2600
        %v2777 = vpack.c.b16 %v2609, %v2601
        %v2778 = vpack.c.b16 %v2610, %v2602
        %v2779 = vpack.c.b16 %v2611, %v2603
        %v2780 = vpack.c.b16 %v2612, %v2604
        %v2781 = vpack.c.b16 %v2613, %v2605
        %v2782 = vpack.c.b16 %v2614, %v2606
        %v2783 = vpack.c.b16 %v2623, %v2615
        %v2784 = vpack.c.b16 %v2624, %v2616
        %v2785 = vpack.c.b16 %v2625, %v2617
        %v2786 = vpack.c.b16 %v2626, %v2618
        %v2787 = vpack.c.b16 %v2627, %v2619
        %v2788 = vpack.c.b16 %v2628, %v2620
        %v2789 = vpack.c.b16 %v2629, %v2621
        %v2790 = vpack.c.b16 %v2630, %v2622
        %v2791 = vpack.c.b16 %v2639, %v2631
        %v2792 = vpack.c.b16 %v2640, %v2632
        %v2793 = vpack.c.b16 %v2641, %v2633
        %v2794 = vpack.c.b16 %v2642, %v2634
        %v2795 = vpack.c.b16 %v2643, %v2635
        %v2796 = vpack.c.b16 %v2644, %v2636
        %v2797 = vpack.c.b16 %v2645, %v2637
        %v2798 = vpack.c.b16 %v2646, %v2638
        %v2799 = vpack.c.b16 %v2655, %v2647
        %v2800 = vpack.c.b16 %v2656, %v2648
        %v2801 = vpack.c.b16 %v2657, %v2649
        %v2802 = vpack.c.b16 %v2658, %v2650
        %v2803 = vpack.c.b16 %v2659, %v2651
        %v2804 = vpack.c.b16 %v2660, %v2652
        %v2805 = vpack.c.b16 %v2661, %v2653
        %v2806 = vpack.c.b16 %v2662, %v2654
        %v2807 = vpack.c.b16 %v2671, %v2663
        %v2808 = vpack.c.b16 %v2672, %v2664
        %v2809 = vpack.c.b16 %v2673, %v2665
        %v2810 = vpack.c.b16 %v2674, %v2666
        %v2811 = vpack.c.b16 %v2675, %v2667
        %v2812 = vpack.c.b16 %v2676, %v2668
        %v2813 = vpack.c.b16 %v2677, %v2669
        %v2814 = vpack.c.b16 %v2678, %v2670
        %v2815 = vpack.c.b16 %v2687, %v2679
        %v2816 = vpack.c.b16 %v2688, %v2680
        %v2817 = vpack.c.b16 %v2689, %v2681
        %v2818 = vpack.c.b16 %v2690, %v2682
        %v2819 = vpack.c.b16 %v2691, %v2683
        %v2820 = vpack.c.b16 %v2692, %v2684
        %v2821 = vpack.c.b16 %v2693, %v2685
        %v2822 = vpack.c.b16 %v2694, %v2686
        %2951 = vmatprep.subr.bf16.mxu0 %v2696
        %2952 = vmatpush1.bf16.msra.mxu0 %v2695
        %2953 = vmatprep.subr.bf16.mxu0 %v2704
        %2954 = vmatpush1.bf16.msra.mxu0 %v2703
        %2955 = vmatprep.subr.bf16.mxu0 %v2712
        %2956 = vmatpush1.bf16.msra.mxu0 %v2711
        %2957 = vmatprep.subr.bf16.mxu0 %v2720
        %2958 = vmatpush1.bf16.msra.mxu0 %v2719
        %2959 = vmatprep.subr.bf16.mxu0 %v2728
        %2960 = vmatpush1.bf16.msra.mxu0 %v2727
        %2961 = vmatprep.subr.bf16.mxu0 %v2736
        %2962 = vmatpush1.bf16.msra.mxu0 %v2735
        %2963 = vmatprep.subr.bf16.mxu0 %v2744
        %2964 = vmatpush1.bf16.msra.mxu0 %v2743
        %2965 = vmatprep.subr.bf16.mxu0 %v2752
        %2966 = vmatpush1.bf16.msra.mxu0 %v2751
        %2967 = vmatprep.subr.bf16.mxu0 %v2760
        %2968 = vmatpush1.bf16.msra.mxu0 %v2759
        %2969 = vmatprep.subr.bf16.mxu0 %v2768
        %2970 = vmatpush1.bf16.msra.mxu0 %v2767
        %2971 = vmatprep.subr.bf16.mxu0 %v2776
        %2972 = vmatpush1.bf16.msra.mxu0 %v2775
        %2973 = vmatprep.subr.bf16.mxu0 %v2784
        %2974 = vmatpush1.bf16.msra.mxu0 %v2783
        %2975 = vmatprep.subr.bf16.mxu0 %v2792
        %2976 = vmatpush1.bf16.msra.mxu0 %v2791
        %2977 = vmatprep.subr.bf16.mxu0 %v2800
        %2978 = vmatpush1.bf16.msra.mxu0 %v2799
        %2979 = vmatprep.subr.bf16.mxu0 %v2808
        %2980 = vmatpush1.bf16.msra.mxu0 %v2807
        %2981 = vmatprep.subr.bf16.mxu0 %v2816
        %2982 = vmatpush1.bf16.msra.mxu0 %v2815
        %2983 = vmatprep.mubr.bf16.mxu0 %v2140
        %2984 = vmatmul.mubr.bf16.gmra.mrb[0].mxu0 %v2139
        %v2985 = vpop.f32.mrb[0].mxu0
        %v2986 = vadd.f32 %v2274, %v2985
        %v2987 = vpop.f32.mrb[0].mxu0
        %v2988 = vadd.f32 %v2278, %v2987
        %v2989 = vpop.f32.mrb[0].mxu0
        %v2990 = vpop.f32.mrb[0].mxu0
        %2991 = vdwg.mxu0
        %2992 = vmatprep.subr.bf16.mxu0 %v2698
        %2993 = vmatpush1.bf16.msra.mxu0 %v2697
        %2994 = vmatprep.subr.bf16.mxu0 %v2706
        %2995 = vmatpush1.bf16.msra.mxu0 %v2705
        %2996 = vmatprep.subr.bf16.mxu0 %v2714
        %2997 = vmatpush1.bf16.msra.mxu0 %v2713
        %2998 = vmatprep.subr.bf16.mxu0 %v2722
        %2999 = vmatpush1.bf16.msra.mxu0 %v2721
        %3000 = vmatprep.subr.bf16.mxu0 %v2730
        %3001 = vmatpush1.bf16.msra.mxu0 %v2729
        %3002 = vmatprep.subr.bf16.mxu0 %v2738
        %3003 = vmatpush1.bf16.msra.mxu0 %v2737
        %3004 = vmatprep.subr.bf16.mxu0 %v2746
        %3005 = vmatpush1.bf16.msra.mxu0 %v2745
        %3006 = vmatprep.subr.bf16.mxu0 %v2754
        %3007 = vmatpush1.bf16.msra.mxu0 %v2753
        %3008 = vmatprep.subr.bf16.mxu0 %v2762
        %3009 = vmatpush1.bf16.msra.mxu0 %v2761
        %3010 = vmatprep.subr.bf16.mxu0 %v2770
        %3011 = vmatpush1.bf16.msra.mxu0 %v2769
        %3012 = vmatprep.subr.bf16.mxu0 %v2778
        %3013 = vmatpush1.bf16.msra.mxu0 %v2777
        %3014 = vmatprep.subr.bf16.mxu0 %v2786
        %3015 = vmatpush1.bf16.msra.mxu0 %v2785
        %3016 = vmatprep.subr.bf16.mxu0 %v2794
        %3017 = vmatpush1.bf16.msra.mxu0 %v2793
        %3018 = vmatprep.subr.bf16.mxu0 %v2802
        %3019 = vmatpush1.bf16.msra.mxu0 %v2801
        %3020 = vmatprep.subr.bf16.mxu0 %v2810
        %3021 = vmatpush1.bf16.msra.mxu0 %v2809
        %3022 = vmatprep.subr.bf16.mxu0 %v2818
        %3023 = vmatpush1.bf16.msra.mxu0 %v2817
        %3024 = vmatprep.mubr.bf16.mxu0 %v2140
        %3025 = vmatmul.mubr.bf16.gmra.mrb[0].mxu0 %v2139
        %v3026 = vpop.f32.mrb[0].mxu0
        %v3027 = vadd.f32 %v2282, %v3026
        %v3028 = vpop.f32.mrb[0].mxu0
        %v3029 = vadd.f32 %v2286, %v3028
        %v3030 = vpop.f32.mrb[0].mxu0
        %v3031 = vpop.f32.mrb[0].mxu0
        %3032 = vdwg.mxu0
        %3033 = vmatprep.subr.bf16.mxu0 %v2700
        %3034 = vmatpush1.bf16.msra.mxu0 %v2699
        %3035 = vmatprep.subr.bf16.mxu0 %v2708
        %3036 = vmatpush1.bf16.msra.mxu0 %v2707
        %3037 = vmatprep.subr.bf16.mxu0 %v2716
        %3038 = vmatpush1.bf16.msra.mxu0 %v2715
        %3039 = vmatprep.subr.bf16.mxu0 %v2724
        %3040 = vmatpush1.bf16.msra.mxu0 %v2723
        %3041 = vmatprep.subr.bf16.mxu0 %v2732
        %3042 = vmatpush1.bf16.msra.mxu0 %v2731
        %3043 = vmatprep.subr.bf16.mxu0 %v2740
        %3044 = vmatpush1.bf16.msra.mxu0 %v2739
        %3045 = vmatprep.subr.bf16.mxu0 %v2748
        %3046 = vmatpush1.bf16.msra.mxu0 %v2747
        %3047 = vmatprep.subr.bf16.mxu0 %v2756
        %3048 = vmatpush1.bf16.msra.mxu0 %v2755
        %3049 = vmatprep.subr.bf16.mxu0 %v2764
        %3050 = vmatpush1.bf16.msra.mxu0 %v2763
        %3051 = vmatprep.subr.bf16.mxu0 %v2772
        %3052 = vmatpush1.bf16.msra.mxu0 %v2771
        %3053 = vmatprep.subr.bf16.mxu0 %v2780
        %3054 = vmatpush1.bf16.msra.mxu0 %v2779
        %3055 = vmatprep.subr.bf16.mxu0 %v2788
        %3056 = vmatpush1.bf16.msra.mxu0 %v2787
        %3057 = vmatprep.subr.bf16.mxu0 %v2796
        %3058 = vmatpush1.bf16.msra.mxu0 %v2795
        %3059 = vmatprep.subr.bf16.mxu0 %v2804
        %3060 = vmatpush1.bf16.msra.mxu0 %v2803
        %3061 = vmatprep.subr.bf16.mxu0 %v2812
        %3062 = vmatpush1.bf16.msra.mxu0 %v2811
        %3063 = vmatprep.subr.bf16.mxu0 %v2820
        %3064 = vmatpush1.bf16.msra.mxu0 %v2819
        %3065 = vmatprep.mubr.bf16.mxu0 %v2140
        %3066 = vmatmul.mubr.bf16.gmra.mrb[0].mxu0 %v2139
        %v3067 = vpop.f32.mrb[0].mxu0
        %v3068 = vadd.f32 %v2290, %v3067
        %v3069 = vpop.f32.mrb[0].mxu0
        %v3070 = vadd.f32 %v2294, %v3069
        %v3071 = vpop.f32.mrb[0].mxu0
        %v3072 = vpop.f32.mrb[0].mxu0
        %3073 = vdwg.mxu0
        %3074 = vmatprep.subr.bf16.mxu0 %v2702
        %3075 = vmatpush1.bf16.msra.mxu0 %v2701
        %3076 = vmatprep.subr.bf16.mxu0 %v2710
        %3077 = vmatpush1.bf16.msra.mxu0 %v2709
        %3078 = vmatprep.subr.bf16.mxu0 %v2718
        %3079 = vmatpush1.bf16.msra.mxu0 %v2717
        %3080 = vmatprep.subr.bf16.mxu0 %v2726
        %3081 = vmatpush1.bf16.msra.mxu0 %v2725
        %3082 = vmatprep.subr.bf16.mxu0 %v2734
        %3083 = vmatpush1.bf16.msra.mxu0 %v2733
        %3084 = vmatprep.subr.bf16.mxu0 %v2742
        %3085 = vmatpush1.bf16.msra.mxu0 %v2741
        %3086 = vmatprep.subr.bf16.mxu0 %v2750
        %3087 = vmatpush1.bf16.msra.mxu0 %v2749
        %3088 = vmatprep.subr.bf16.mxu0 %v2758
        %3089 = vmatpush1.bf16.msra.mxu0 %v2757
        %3090 = vmatprep.subr.bf16.mxu0 %v2766
        %3091 = vmatpush1.bf16.msra.mxu0 %v2765
        %3092 = vmatprep.subr.bf16.mxu0 %v2774
        %3093 = vmatpush1.bf16.msra.mxu0 %v2773
        %3094 = vmatprep.subr.bf16.mxu0 %v2782
        %3095 = vmatpush1.bf16.msra.mxu0 %v2781
        %3096 = vmatprep.subr.bf16.mxu0 %v2790
        %3097 = vmatpush1.bf16.msra.mxu0 %v2789
        %3098 = vmatprep.subr.bf16.mxu0 %v2798
        %3099 = vmatpush1.bf16.msra.mxu0 %v2797
        %3100 = vmatprep.subr.bf16.mxu0 %v2806
        %3101 = vmatpush1.bf16.msra.mxu0 %v2805
        %3102 = vmatprep.subr.bf16.mxu0 %v2814
        %3103 = vmatpush1.bf16.msra.mxu0 %v2813
        %3104 = vmatprep.subr.bf16.mxu0 %v2822
        %3105 = vmatpush1.bf16.msra.mxu0 %v2821
        %3106 = vmatprep.mubr.bf16.mxu0 %v2140
        %3107 = vmatmul.mubr.bf16.gmra.mrb[0].mxu0 %v2139
        %v3108 = vpop.f32.mrb[0].mxu0
        %v3109 = vadd.f32 %v2298, %v3108
        %v3110 = vpop.f32.mrb[0].mxu0
        %v3111 = vadd.f32 %v2302, %v3110
        %v3112 = vpop.f32.mrb[0].mxu0
        %v3113 = vpop.f32.mrb[0].mxu0
        %3114 = vdwg.mxu0
        %v3115 = vmul.f32 %v2986, 0.5
        %v3116 = vmul.f32 %v2988, 0.5
        %v3117 = vmul.f32 %v3027, 0.5
        %v3118 = vmul.f32 %v3029, 0.5
        %v3119 = vmul.f32 %v3068, 0.5
        %v3120 = vmul.f32 %v3070, 0.5
        %v3121 = vmul.f32 %v3109, 0.5
        %v3122 = vmul.f32 %v3111, 0.5
        %v3123 = vmul.f32 %v2986, 0.70710677
        %v3124 = vmul.f32 %v2988, 0.70710677
        %v3125 = vmul.f32 %v3027, 0.70710677
        %v3126 = vmul.f32 %v3029, 0.70710677
        %v3127 = vmul.f32 %v3068, 0.70710677
        %v3128 = vmul.f32 %v3070, 0.70710677
        %v3129 = vmul.f32 %v3109, 0.70710677
        %v3130 = vmul.f32 %v3111, 0.70710677
        %v3131 = verf.f32.pop %v3123
        %v3132 = verf.f32.pop %v3124
        %v3133 = verf.f32.pop %v3125
        %v3134 = verf.f32.pop %v3126
        %v3135 = verf.f32.pop %v3127
        %v3136 = verf.f32.pop %v3128
        %v3137 = verf.f32.pop %v3129
        %v3138 = verf.f32.pop %v3130
        %v3139 = vadd.f32 %v3131, 1.0
        %v3140 = vadd.f32 %v3132, 1.0
        %v3141 = vadd.f32 %v3133, 1.0
        %v3142 = vadd.f32 %v3134, 1.0
        %v3143 = vadd.f32 %v3135, 1.0
        %v3144 = vadd.f32 %v3136, 1.0
        %v3145 = vadd.f32 %v3137, 1.0
        %v3146 = vadd.f32 %v3138, 1.0
        %v3147 = vmul.f32 %v3115, %v3139
        %v3148 = vmul.f32 %v3116, %v3140
        %v3149 = vmul.f32 %v3117, %v3141
        %v3150 = vmul.f32 %v3118, %v3142
        %v3151 = vmul.f32 %v3119, %v3143
        %v3152 = vmul.f32 %v3120, %v3144
        %v3153 = vmul.f32 %v3121, %v3145
        %v3154 = vmul.f32 %v3122, %v3146
        %v3155 = vpack.c.bf16 %v3147, %v3147
        %v3156 = vpack.c.bf16 %v3148, %v3148
        %v3157 = vpack.c.bf16 %v3149, %v3149
        %v3158 = vpack.c.bf16 %v3150, %v3150
        %v3159 = vpack.c.bf16 %v3151, %v3151
        %v3160 = vpack.c.bf16 %v3152, %v3152
        %v3161 = vpack.c.bf16 %v3153, %v3153
        %v3162 = vpack.c.bf16 %v3154, %v3154
        %v3163 = vld [vmem:[#allocation15] sm:$0xff]
        %v3164 = vld [vmem:[#allocation15 + $0x8] sm:$0xff]
        %v3165 = vld [vmem:[#allocation15 + $0x10] sm:$0xff]
        %v3166 = vld [vmem:[#allocation15 + $0x18] sm:$0xff]
        %v3167 = vld [vmem:[#allocation15 + $0x20] sm:$0xff]
        %v3168 = vld [vmem:[#allocation15 + $0x28] sm:$0xff]
        %v3169 = vld [vmem:[#allocation15 + $0x30] sm:$0xff]
        %v3170 = vld [vmem:[#allocation15 + $0x38] sm:$0xff]
        %v3171 = vld [vmem:[#allocation15 + $0x40] sm:$0xff]
        %v3172 = vld [vmem:[#allocation15 + $0x48] sm:$0xff]
        %v3173 = vld [vmem:[#allocation15 + $0x50] sm:$0xff]
        %v3174 = vld [vmem:[#allocation15 + $0x58] sm:$0xff]
        %v3175 = vld [vmem:[#allocation15 + $0x60] sm:$0xff]
        %v3176 = vld [vmem:[#allocation15 + $0x68] sm:$0xff]
        %v3177 = vld [vmem:[#allocation15 + $0x70] sm:$0xff]
        %v3178 = vld [vmem:[#allocation15 + $0x78] sm:$0xff]
        %v3179 = vld [vmem:[#allocation15 + $0x80] sm:$0xff]
        %v3180 = vld [vmem:[#allocation15 + $0x88] sm:$0xff]
        %v3181 = vld [vmem:[#allocation15 + $0x90] sm:$0xff]
        %v3182 = vld [vmem:[#allocation15 + $0x98] sm:$0xff]
        %v3183 = vld [vmem:[#allocation15 + $0xa0] sm:$0xff]
        %v3184 = vld [vmem:[#allocation15 + $0xa8] sm:$0xff]
        %v3185 = vld [vmem:[#allocation15 + $0xb0] sm:$0xff]
        %v3186 = vld [vmem:[#allocation15 + $0xb8] sm:$0xff]
        %v3187 = vld [vmem:[#allocation15 + $0xc0] sm:$0xff]
        %v3188 = vld [vmem:[#allocation15 + $0xc8] sm:$0xff]
        %v3189 = vld [vmem:[#allocation15 + $0xd0] sm:$0xff]
        %v3190 = vld [vmem:[#allocation15 + $0xd8] sm:$0xff]
        %v3191 = vld [vmem:[#allocation15 + $0xe0] sm:$0xff]
        %v3192 = vld [vmem:[#allocation15 + $0xe8] sm:$0xff]
        %v3193 = vld [vmem:[#allocation15 + $0xf0] sm:$0xff]
        %v3194 = vld [vmem:[#allocation15 + $0xf8] sm:$0xff]
        %v3195 = vld [vmem:[#allocation15 + $0x100] sm:$0xff]
        %v3196 = vld [vmem:[#allocation15 + $0x108] sm:$0xff]
        %v3197 = vld [vmem:[#allocation15 + $0x110] sm:$0xff]
        %v3198 = vld [vmem:[#allocation15 + $0x118] sm:$0xff]
        %v3199 = vld [vmem:[#allocation15 + $0x120] sm:$0xff]
        %v3200 = vld [vmem:[#allocation15 + $0x128] sm:$0xff]
        %v3201 = vld [vmem:[#allocation15 + $0x130] sm:$0xff]
        %v3202 = vld [vmem:[#allocation15 + $0x138] sm:$0xff]
        %v3203 = vld [vmem:[#allocation15 + $0x140] sm:$0xff]
        %v3204 = vld [vmem:[#allocation15 + $0x148] sm:$0xff]
        %v3205 = vld [vmem:[#allocation15 + $0x150] sm:$0xff]
        %v3206 = vld [vmem:[#allocation15 + $0x158] sm:$0xff]
        %v3207 = vld [vmem:[#allocation15 + $0x160] sm:$0xff]
        %v3208 = vld [vmem:[#allocation15 + $0x168] sm:$0xff]
        %v3209 = vld [vmem:[#allocation15 + $0x170] sm:$0xff]
        %v3210 = vld [vmem:[#allocation15 + $0x178] sm:$0xff]
        %v3211 = vld [vmem:[#allocation15 + $0x180] sm:$0xff]
        %v3212 = vld [vmem:[#allocation15 + $0x188] sm:$0xff]
        %v3213 = vld [vmem:[#allocation15 + $0x190] sm:$0xff]
        %v3214 = vld [vmem:[#allocation15 + $0x198] sm:$0xff]
        %v3215 = vld [vmem:[#allocation15 + $0x1a0] sm:$0xff]
        %v3216 = vld [vmem:[#allocation15 + $0x1a8] sm:$0xff]
        %v3217 = vld [vmem:[#allocation15 + $0x1b0] sm:$0xff]
        %v3218 = vld [vmem:[#allocation15 + $0x1b8] sm:$0xff]
        %v3219 = vld [vmem:[#allocation15 + $0x1c0] sm:$0xff]
        %v3220 = vld [vmem:[#allocation15 + $0x1c8] sm:$0xff]
        %v3221 = vld [vmem:[#allocation15 + $0x1d0] sm:$0xff]
        %v3222 = vld [vmem:[#allocation15 + $0x1d8] sm:$0xff]
        %v3223 = vld [vmem:[#allocation15 + $0x1e0] sm:$0xff]
        %v3224 = vld [vmem:[#allocation15 + $0x1e8] sm:$0xff]
        %v3225 = vld [vmem:[#allocation15 + $0x1f0] sm:$0xff]
        %v3226 = vld [vmem:[#allocation15 + $0x1f8] sm:$0xff]
        %v3227 = vld [vmem:[#allocation15 + $0x200] sm:$0xff]
        %v3228 = vld [vmem:[#allocation15 + $0x208] sm:$0xff]
        %v3229 = vld [vmem:[#allocation15 + $0x210] sm:$0xff]
        %v3230 = vld [vmem:[#allocation15 + $0x218] sm:$0xff]
        %v3231 = vld [vmem:[#allocation15 + $0x220] sm:$0xff]
        %v3232 = vld [vmem:[#allocation15 + $0x228] sm:$0xff]
        %v3233 = vld [vmem:[#allocation15 + $0x230] sm:$0xff]
        %v3234 = vld [vmem:[#allocation15 + $0x238] sm:$0xff]
        %v3235 = vld [vmem:[#allocation15 + $0x240] sm:$0xff]
        %v3236 = vld [vmem:[#allocation15 + $0x248] sm:$0xff]
        %v3237 = vld [vmem:[#allocation15 + $0x250] sm:$0xff]
        %v3238 = vld [vmem:[#allocation15 + $0x258] sm:$0xff]
        %v3239 = vld [vmem:[#allocation15 + $0x260] sm:$0xff]
        %v3240 = vld [vmem:[#allocation15 + $0x268] sm:$0xff]
        %v3241 = vld [vmem:[#allocation15 + $0x270] sm:$0xff]
        %v3242 = vld [vmem:[#allocation15 + $0x278] sm:$0xff]
        %v3243 = vld [vmem:[#allocation15 + $0x280] sm:$0xff]
        %v3244 = vld [vmem:[#allocation15 + $0x288] sm:$0xff]
        %v3245 = vld [vmem:[#allocation15 + $0x290] sm:$0xff]
        %v3246 = vld [vmem:[#allocation15 + $0x298] sm:$0xff]
        %v3247 = vld [vmem:[#allocation15 + $0x2a0] sm:$0xff]
        %v3248 = vld [vmem:[#allocation15 + $0x2a8] sm:$0xff]
        %v3249 = vld [vmem:[#allocation15 + $0x2b0] sm:$0xff]
        %v3250 = vld [vmem:[#allocation15 + $0x2b8] sm:$0xff]
        %v3251 = vld [vmem:[#allocation15 + $0x2c0] sm:$0xff]
        %v3252 = vld [vmem:[#allocation15 + $0x2c8] sm:$0xff]
        %v3253 = vld [vmem:[#allocation15 + $0x2d0] sm:$0xff]
        %v3254 = vld [vmem:[#allocation15 + $0x2d8] sm:$0xff]
        %v3255 = vld [vmem:[#allocation15 + $0x2e0] sm:$0xff]
        %v3256 = vld [vmem:[#allocation15 + $0x2e8] sm:$0xff]
        %v3257 = vld [vmem:[#allocation15 + $0x2f0] sm:$0xff]
        %v3258 = vld [vmem:[#allocation15 + $0x2f8] sm:$0xff]
        %v3259 = vld [vmem:[#allocation15 + $0x300] sm:$0xff]
        %v3260 = vld [vmem:[#allocation15 + $0x308] sm:$0xff]
        %v3261 = vld [vmem:[#allocation15 + $0x310] sm:$0xff]
        %v3262 = vld [vmem:[#allocation15 + $0x318] sm:$0xff]
        %v3263 = vld [vmem:[#allocation15 + $0x320] sm:$0xff]
        %v3264 = vld [vmem:[#allocation15 + $0x328] sm:$0xff]
        %v3265 = vld [vmem:[#allocation15 + $0x330] sm:$0xff]
        %v3266 = vld [vmem:[#allocation15 + $0x338] sm:$0xff]
        %v3267 = vld [vmem:[#allocation15 + $0x340] sm:$0xff]
        %v3268 = vld [vmem:[#allocation15 + $0x348] sm:$0xff]
        %v3269 = vld [vmem:[#allocation15 + $0x350] sm:$0xff]
        %v3270 = vld [vmem:[#allocation15 + $0x358] sm:$0xff]
        %v3271 = vld [vmem:[#allocation15 + $0x360] sm:$0xff]
        %v3272 = vld [vmem:[#allocation15 + $0x368] sm:$0xff]
        %v3273 = vld [vmem:[#allocation15 + $0x370] sm:$0xff]
        %v3274 = vld [vmem:[#allocation15 + $0x378] sm:$0xff]
        %v3275 = vld [vmem:[#allocation15 + $0x380] sm:$0xff]
        %v3276 = vld [vmem:[#allocation15 + $0x388] sm:$0xff]
        %v3277 = vld [vmem:[#allocation15 + $0x390] sm:$0xff]
        %v3278 = vld [vmem:[#allocation15 + $0x398] sm:$0xff]
        %v3279 = vld [vmem:[#allocation15 + $0x3a0] sm:$0xff]
        %v3280 = vld [vmem:[#allocation15 + $0x3a8] sm:$0xff]
        %v3281 = vld [vmem:[#allocation15 + $0x3b0] sm:$0xff]
        %v3282 = vld [vmem:[#allocation15 + $0x3b8] sm:$0xff]
        %v3283 = vld [vmem:[#allocation15 + $0x3c0] sm:$0xff]
        %v3284 = vld [vmem:[#allocation15 + $0x3c8] sm:$0xff]
        %v3285 = vld [vmem:[#allocation15 + $0x3d0] sm:$0xff]
        %v3286 = vld [vmem:[#allocation15 + $0x3d8] sm:$0xff]
        %v3287 = vld [vmem:[#allocation15 + $0x3e0] sm:$0xff]
        %v3288 = vld [vmem:[#allocation15 + $0x3e8] sm:$0xff]
        %v3289 = vld [vmem:[#allocation15 + $0x3f0] sm:$0xff]
        %v3290 = vld [vmem:[#allocation15 + $0x3f8] sm:$0xff]
        %v3291 = vld [vmem:[#allocation16] sm:$0x3]
        %v3293 = vlaneseq
        %v3294 = vshrl.u32 %v3293, 7
        %v3295 = vsub.s32 0, %v3294
        %v3296 = vrot.slane %v3291, %v3295
        %v3297 = vlaneseq
        %v3298 = vshrl.u32 %v3297, 7
        %v3299 = vsub.s32 1, %v3298
        %v3300 = vrot.slane %v3291, %v3299
        %v3431 = vunpack.c.l.b16 %v3163
        %v3432 = vunpack.c.h.b16 %v3163
        %v3433 = vunpack.c.l.b16 %v3164
        %v3434 = vunpack.c.h.b16 %v3164
        %v3435 = vunpack.c.l.b16 %v3165
        %v3436 = vunpack.c.h.b16 %v3165
        %v3437 = vunpack.c.l.b16 %v3166
        %v3438 = vunpack.c.h.b16 %v3166
        %v3439 = vunpack.c.l.b16 %v3167
        %v3440 = vunpack.c.h.b16 %v3167
        %v3441 = vunpack.c.l.b16 %v3168
        %v3442 = vunpack.c.h.b16 %v3168
        %v3443 = vunpack.c.l.b16 %v3169
        %v3444 = vunpack.c.h.b16 %v3169
        %v3445 = vunpack.c.l.b16 %v3170
        %v3446 = vunpack.c.h.b16 %v3170
        %v3447 = vunpack.c.l.b16 %v3171
        %v3448 = vunpack.c.h.b16 %v3171
        %v3449 = vunpack.c.l.b16 %v3172
        %v3450 = vunpack.c.h.b16 %v3172
        %v3451 = vunpack.c.l.b16 %v3173
        %v3452 = vunpack.c.h.b16 %v3173
        %v3453 = vunpack.c.l.b16 %v3174
        %v3454 = vunpack.c.h.b16 %v3174
        %v3455 = vunpack.c.l.b16 %v3175
        %v3456 = vunpack.c.h.b16 %v3175
        %v3457 = vunpack.c.l.b16 %v3176
        %v3458 = vunpack.c.h.b16 %v3176
        %v3459 = vunpack.c.l.b16 %v3177
        %v3460 = vunpack.c.h.b16 %v3177
        %v3461 = vunpack.c.l.b16 %v3178
        %v3462 = vunpack.c.h.b16 %v3178
        %v3463 = vunpack.c.l.b16 %v3179
        %v3464 = vunpack.c.h.b16 %v3179
        %v3465 = vunpack.c.l.b16 %v3180
        %v3466 = vunpack.c.h.b16 %v3180
        %v3467 = vunpack.c.l.b16 %v3181
        %v3468 = vunpack.c.h.b16 %v3181
        %v3469 = vunpack.c.l.b16 %v3182
        %v3470 = vunpack.c.h.b16 %v3182
        %v3471 = vunpack.c.l.b16 %v3183
        %v3472 = vunpack.c.h.b16 %v3183
        %v3473 = vunpack.c.l.b16 %v3184
        %v3474 = vunpack.c.h.b16 %v3184
        %v3475 = vunpack.c.l.b16 %v3185
        %v3476 = vunpack.c.h.b16 %v3185
        %v3477 = vunpack.c.l.b16 %v3186
        %v3478 = vunpack.c.h.b16 %v3186
        %v3479 = vunpack.c.l.b16 %v3187
        %v3480 = vunpack.c.h.b16 %v3187
        %v3481 = vunpack.c.l.b16 %v3188
        %v3482 = vunpack.c.h.b16 %v3188
        %v3483 = vunpack.c.l.b16 %v3189
        %v3484 = vunpack.c.h.b16 %v3189
        %v3485 = vunpack.c.l.b16 %v3190
        %v3486 = vunpack.c.h.b16 %v3190
        %v3487 = vunpack.c.l.b16 %v3191
        %v3488 = vunpack.c.h.b16 %v3191
        %v3489 = vunpack.c.l.b16 %v3192
        %v3490 = vunpack.c.h.b16 %v3192
        %v3491 = vunpack.c.l.b16 %v3193
        %v3492 = vunpack.c.h.b16 %v3193
        %v3493 = vunpack.c.l.b16 %v3194
        %v3494 = vunpack.c.h.b16 %v3194
        %v3495 = vunpack.c.l.b16 %v3195
        %v3496 = vunpack.c.h.b16 %v3195
        %v3497 = vunpack.c.l.b16 %v3196
        %v3498 = vunpack.c.h.b16 %v3196
        %v3499 = vunpack.c.l.b16 %v3197
        %v3500 = vunpack.c.h.b16 %v3197
        %v3501 = vunpack.c.l.b16 %v3198
        %v3502 = vunpack.c.h.b16 %v3198
        %v3503 = vunpack.c.l.b16 %v3199
        %v3504 = vunpack.c.h.b16 %v3199
        %v3505 = vunpack.c.l.b16 %v3200
        %v3506 = vunpack.c.h.b16 %v3200
        %v3507 = vunpack.c.l.b16 %v3201
        %v3508 = vunpack.c.h.b16 %v3201
        %v3509 = vunpack.c.l.b16 %v3202
        %v3510 = vunpack.c.h.b16 %v3202
        %v3511 = vunpack.c.l.b16 %v3203
        %v3512 = vunpack.c.h.b16 %v3203
        %v3513 = vunpack.c.l.b16 %v3204
        %v3514 = vunpack.c.h.b16 %v3204
        %v3515 = vunpack.c.l.b16 %v3205
        %v3516 = vunpack.c.h.b16 %v3205
        %v3517 = vunpack.c.l.b16 %v3206
        %v3518 = vunpack.c.h.b16 %v3206
        %v3519 = vunpack.c.l.b16 %v3207
        %v3520 = vunpack.c.h.b16 %v3207
        %v3521 = vunpack.c.l.b16 %v3208
        %v3522 = vunpack.c.h.b16 %v3208
        %v3523 = vunpack.c.l.b16 %v3209
        %v3524 = vunpack.c.h.b16 %v3209
        %v3525 = vunpack.c.l.b16 %v3210
        %v3526 = vunpack.c.h.b16 %v3210
        %v3527 = vunpack.c.l.b16 %v3211
        %v3528 = vunpack.c.h.b16 %v3211
        %v3529 = vunpack.c.l.b16 %v3212
        %v3530 = vunpack.c.h.b16 %v3212
        %v3531 = vunpack.c.l.b16 %v3213
        %v3532 = vunpack.c.h.b16 %v3213
        %v3533 = vunpack.c.l.b16 %v3214
        %v3534 = vunpack.c.h.b16 %v3214
        %v3535 = vunpack.c.l.b16 %v3215
        %v3536 = vunpack.c.h.b16 %v3215
        %v3537 = vunpack.c.l.b16 %v3216
        %v3538 = vunpack.c.h.b16 %v3216
        %v3539 = vunpack.c.l.b16 %v3217
        %v3540 = vunpack.c.h.b16 %v3217
        %v3541 = vunpack.c.l.b16 %v3218
        %v3542 = vunpack.c.h.b16 %v3218
        %v3543 = vunpack.c.l.b16 %v3219
        %v3544 = vunpack.c.h.b16 %v3219
        %v3545 = vunpack.c.l.b16 %v3220
        %v3546 = vunpack.c.h.b16 %v3220
        %v3547 = vunpack.c.l.b16 %v3221
        %v3548 = vunpack.c.h.b16 %v3221
        %v3549 = vunpack.c.l.b16 %v3222
        %v3550 = vunpack.c.h.b16 %v3222
        %v3551 = vunpack.c.l.b16 %v3223
        %v3552 = vunpack.c.h.b16 %v3223
        %v3553 = vunpack.c.l.b16 %v3224
        %v3554 = vunpack.c.h.b16 %v3224
        %v3555 = vunpack.c.l.b16 %v3225
        %v3556 = vunpack.c.h.b16 %v3225
        %v3557 = vunpack.c.l.b16 %v3226
        %v3558 = vunpack.c.h.b16 %v3226
        %v3559 = vunpack.c.l.b16 %v3227
        %v3560 = vunpack.c.h.b16 %v3227
        %v3561 = vunpack.c.l.b16 %v3228
        %v3562 = vunpack.c.h.b16 %v3228
        %v3563 = vunpack.c.l.b16 %v3229
        %v3564 = vunpack.c.h.b16 %v3229
        %v3565 = vunpack.c.l.b16 %v3230
        %v3566 = vunpack.c.h.b16 %v3230
        %v3567 = vunpack.c.l.b16 %v3231
        %v3568 = vunpack.c.h.b16 %v3231
        %v3569 = vunpack.c.l.b16 %v3232
        %v3570 = vunpack.c.h.b16 %v3232
        %v3571 = vunpack.c.l.b16 %v3233
        %v3572 = vunpack.c.h.b16 %v3233
        %v3573 = vunpack.c.l.b16 %v3234
        %v3574 = vunpack.c.h.b16 %v3234
        %v3575 = vunpack.c.l.b16 %v3235
        %v3576 = vunpack.c.h.b16 %v3235
        %v3577 = vunpack.c.l.b16 %v3236
        %v3578 = vunpack.c.h.b16 %v3236
        %v3579 = vunpack.c.l.b16 %v3237
        %v3580 = vunpack.c.h.b16 %v3237
        %v3581 = vunpack.c.l.b16 %v3238
        %v3582 = vunpack.c.h.b16 %v3238
        %v3583 = vunpack.c.l.b16 %v3239
        %v3584 = vunpack.c.h.b16 %v3239
        %v3585 = vunpack.c.l.b16 %v3240
        %v3586 = vunpack.c.h.b16 %v3240
        %v3587 = vunpack.c.l.b16 %v3241
        %v3588 = vunpack.c.h.b16 %v3241
        %v3589 = vunpack.c.l.b16 %v3242
        %v3590 = vunpack.c.h.b16 %v3242
        %v3591 = vunpack.c.l.b16 %v3243
        %v3592 = vunpack.c.h.b16 %v3243
        %v3593 = vunpack.c.l.b16 %v3244
        %v3594 = vunpack.c.h.b16 %v3244
        %v3595 = vunpack.c.l.b16 %v3245
        %v3596 = vunpack.c.h.b16 %v3245
        %v3597 = vunpack.c.l.b16 %v3246
        %v3598 = vunpack.c.h.b16 %v3246
        %v3599 = vunpack.c.l.b16 %v3247
        %v3600 = vunpack.c.h.b16 %v3247
        %v3601 = vunpack.c.l.b16 %v3248
        %v3602 = vunpack.c.h.b16 %v3248
        %v3603 = vunpack.c.l.b16 %v3249
        %v3604 = vunpack.c.h.b16 %v3249
        %v3605 = vunpack.c.l.b16 %v3250
        %v3606 = vunpack.c.h.b16 %v3250
        %v3607 = vunpack.c.l.b16 %v3251
        %v3608 = vunpack.c.h.b16 %v3251
        %v3609 = vunpack.c.l.b16 %v3252
        %v3610 = vunpack.c.h.b16 %v3252
        %v3611 = vunpack.c.l.b16 %v3253
        %v3612 = vunpack.c.h.b16 %v3253
        %v3613 = vunpack.c.l.b16 %v3254
        %v3614 = vunpack.c.h.b16 %v3254
        %v3615 = vunpack.c.l.b16 %v3255
        %v3616 = vunpack.c.h.b16 %v3255
        %v3617 = vunpack.c.l.b16 %v3256
        %v3618 = vunpack.c.h.b16 %v3256
        %v3619 = vunpack.c.l.b16 %v3257
        %v3620 = vunpack.c.h.b16 %v3257
        %v3621 = vunpack.c.l.b16 %v3258
        %v3622 = vunpack.c.h.b16 %v3258
        %v3623 = vunpack.c.l.b16 %v3259
        %v3624 = vunpack.c.h.b16 %v3259
        %v3625 = vunpack.c.l.b16 %v3260
        %v3626 = vunpack.c.h.b16 %v3260
        %v3627 = vunpack.c.l.b16 %v3261
        %v3628 = vunpack.c.h.b16 %v3261
        %v3629 = vunpack.c.l.b16 %v3262
        %v3630 = vunpack.c.h.b16 %v3262
        %v3631 = vunpack.c.l.b16 %v3263
        %v3632 = vunpack.c.h.b16 %v3263
        %v3633 = vunpack.c.l.b16 %v3264
        %v3634 = vunpack.c.h.b16 %v3264
        %v3635 = vunpack.c.l.b16 %v3265
        %v3636 = vunpack.c.h.b16 %v3265
        %v3637 = vunpack.c.l.b16 %v3266
        %v3638 = vunpack.c.h.b16 %v3266
        %v3639 = vunpack.c.l.b16 %v3267
        %v3640 = vunpack.c.h.b16 %v3267
        %v3641 = vunpack.c.l.b16 %v3268
        %v3642 = vunpack.c.h.b16 %v3268
        %v3643 = vunpack.c.l.b16 %v3269
        %v3644 = vunpack.c.h.b16 %v3269
        %v3645 = vunpack.c.l.b16 %v3270
        %v3646 = vunpack.c.h.b16 %v3270
        %v3647 = vunpack.c.l.b16 %v3271
        %v3648 = vunpack.c.h.b16 %v3271
        %v3649 = vunpack.c.l.b16 %v3272
        %v3650 = vunpack.c.h.b16 %v3272
        %v3651 = vunpack.c.l.b16 %v3273
        %v3652 = vunpack.c.h.b16 %v3273
        %v3653 = vunpack.c.l.b16 %v3274
        %v3654 = vunpack.c.h.b16 %v3274
        %v3655 = vunpack.c.l.b16 %v3275
        %v3656 = vunpack.c.h.b16 %v3275
        %v3657 = vunpack.c.l.b16 %v3276
        %v3658 = vunpack.c.h.b16 %v3276
        %v3659 = vunpack.c.l.b16 %v3277
        %v3660 = vunpack.c.h.b16 %v3277
        %v3661 = vunpack.c.l.b16 %v3278
        %v3662 = vunpack.c.h.b16 %v3278
        %v3663 = vunpack.c.l.b16 %v3279
        %v3664 = vunpack.c.h.b16 %v3279
        %v3665 = vunpack.c.l.b16 %v3280
        %v3666 = vunpack.c.h.b16 %v3280
        %v3667 = vunpack.c.l.b16 %v3281
        %v3668 = vunpack.c.h.b16 %v3281
        %v3669 = vunpack.c.l.b16 %v3282
        %v3670 = vunpack.c.h.b16 %v3282
        %v3671 = vunpack.c.l.b16 %v3283
        %v3672 = vunpack.c.h.b16 %v3283
        %v3673 = vunpack.c.l.b16 %v3284
        %v3674 = vunpack.c.h.b16 %v3284
        %v3675 = vunpack.c.l.b16 %v3285
        %v3676 = vunpack.c.h.b16 %v3285
        %v3677 = vunpack.c.l.b16 %v3286
        %v3678 = vunpack.c.h.b16 %v3286
        %v3679 = vunpack.c.l.b16 %v3287
        %v3680 = vunpack.c.h.b16 %v3287
        %v3681 = vunpack.c.l.b16 %v3288
        %v3682 = vunpack.c.h.b16 %v3288
        %v3683 = vunpack.c.l.b16 %v3289
        %v3684 = vunpack.c.h.b16 %v3289
        %v3685 = vunpack.c.l.b16 %v3290
        %v3686 = vunpack.c.h.b16 %v3290
        %v3687 = vpack.c.b16 %v3433, %v3431
        %v3688 = vpack.c.b16 %v3434, %v3432
        %v3689 = vpack.c.b16 %v3437, %v3435
        %v3690 = vpack.c.b16 %v3438, %v3436
        %v3691 = vpack.c.b16 %v3441, %v3439
        %v3692 = vpack.c.b16 %v3442, %v3440
        %v3693 = vpack.c.b16 %v3445, %v3443
        %v3694 = vpack.c.b16 %v3446, %v3444
        %v3695 = vpack.c.b16 %v3449, %v3447
        %v3696 = vpack.c.b16 %v3450, %v3448
        %v3697 = vpack.c.b16 %v3453, %v3451
        %v3698 = vpack.c.b16 %v3454, %v3452
        %v3699 = vpack.c.b16 %v3457, %v3455
        %v3700 = vpack.c.b16 %v3458, %v3456
        %v3701 = vpack.c.b16 %v3461, %v3459
        %v3702 = vpack.c.b16 %v3462, %v3460
        %v3703 = vpack.c.b16 %v3465, %v3463
        %v3704 = vpack.c.b16 %v3466, %v3464
        %v3705 = vpack.c.b16 %v3469, %v3467
        %v3706 = vpack.c.b16 %v3470, %v3468
        %v3707 = vpack.c.b16 %v3473, %v3471
        %v3708 = vpack.c.b16 %v3474, %v3472
        %v3709 = vpack.c.b16 %v3477, %v3475
        %v3710 = vpack.c.b16 %v3478, %v3476
        %v3711 = vpack.c.b16 %v3481, %v3479
        %v3712 = vpack.c.b16 %v3482, %v3480
        %v3713 = vpack.c.b16 %v3485, %v3483
        %v3714 = vpack.c.b16 %v3486, %v3484
        %v3715 = vpack.c.b16 %v3489, %v3487
        %v3716 = vpack.c.b16 %v3490, %v3488
        %v3717 = vpack.c.b16 %v3493, %v3491
        %v3718 = vpack.c.b16 %v3494, %v3492
        %v3719 = vpack.c.b16 %v3497, %v3495
        %v3720 = vpack.c.b16 %v3498, %v3496
        %v3721 = vpack.c.b16 %v3501, %v3499
        %v3722 = vpack.c.b16 %v3502, %v3500
        %v3723 = vpack.c.b16 %v3505, %v3503
        %v3724 = vpack.c.b16 %v3506, %v3504
        %v3725 = vpack.c.b16 %v3509, %v3507
        %v3726 = vpack.c.b16 %v3510, %v3508
        %v3727 = vpack.c.b16 %v3513, %v3511
        %v3728 = vpack.c.b16 %v3514, %v3512
        %v3729 = vpack.c.b16 %v3517, %v3515
        %v3730 = vpack.c.b16 %v3518, %v3516
        %v3731 = vpack.c.b16 %v3521, %v3519
        %v3732 = vpack.c.b16 %v3522, %v3520
        %v3733 = vpack.c.b16 %v3525, %v3523
        %v3734 = vpack.c.b16 %v3526, %v3524
        %v3735 = vpack.c.b16 %v3529, %v3527
        %v3736 = vpack.c.b16 %v3530, %v3528
        %v3737 = vpack.c.b16 %v3533, %v3531
        %v3738 = vpack.c.b16 %v3534, %v3532
        %v3739 = vpack.c.b16 %v3537, %v3535
        %v3740 = vpack.c.b16 %v3538, %v3536
        %v3741 = vpack.c.b16 %v3541, %v3539
        %v3742 = vpack.c.b16 %v3542, %v3540
        %v3743 = vpack.c.b16 %v3545, %v3543
        %v3744 = vpack.c.b16 %v3546, %v3544
        %v3745 = vpack.c.b16 %v3549, %v3547
        %v3746 = vpack.c.b16 %v3550, %v3548
        %v3747 = vpack.c.b16 %v3553, %v3551
        %v3748 = vpack.c.b16 %v3554, %v3552
        %v3749 = vpack.c.b16 %v3557, %v3555
        %v3750 = vpack.c.b16 %v3558, %v3556
        %v3751 = vpack.c.b16 %v3561, %v3559
        %v3752 = vpack.c.b16 %v3562, %v3560
        %v3753 = vpack.c.b16 %v3565, %v3563
        %v3754 = vpack.c.b16 %v3566, %v3564
        %v3755 = vpack.c.b16 %v3569, %v3567
        %v3756 = vpack.c.b16 %v3570, %v3568
        %v3757 = vpack.c.b16 %v3573, %v3571
        %v3758 = vpack.c.b16 %v3574, %v3572
        %v3759 = vpack.c.b16 %v3577, %v3575
        %v3760 = vpack.c.b16 %v3578, %v3576
        %v3761 = vpack.c.b16 %v3581, %v3579
        %v3762 = vpack.c.b16 %v3582, %v3580
        %v3763 = vpack.c.b16 %v3585, %v3583
        %v3764 = vpack.c.b16 %v3586, %v3584
        %v3765 = vpack.c.b16 %v3589, %v3587
        %v3766 = vpack.c.b16 %v3590, %v3588
        %v3767 = vpack.c.b16 %v3593, %v3591
        %v3768 = vpack.c.b16 %v3594, %v3592
        %v3769 = vpack.c.b16 %v3597, %v3595
        %v3770 = vpack.c.b16 %v3598, %v3596
        %v3771 = vpack.c.b16 %v3601, %v3599
        %v3772 = vpack.c.b16 %v3602, %v3600
        %v3773 = vpack.c.b16 %v3605, %v3603
        %v3774 = vpack.c.b16 %v3606, %v3604
        %v3775 = vpack.c.b16 %v3609, %v3607
        %v3776 = vpack.c.b16 %v3610, %v3608
        %v3777 = vpack.c.b16 %v3613, %v3611
        %v3778 = vpack.c.b16 %v3614, %v3612
        %v3779 = vpack.c.b16 %v3617, %v3615
        %v3780 = vpack.c.b16 %v3618, %v3616
        %v3781 = vpack.c.b16 %v3621, %v3619
        %v3782 = vpack.c.b16 %v3622, %v3620
        %v3783 = vpack.c.b16 %v3625, %v3623
        %v3784 = vpack.c.b16 %v3626, %v3624
        %v3785 = vpack.c.b16 %v3629, %v3627
        %v3786 = vpack.c.b16 %v3630, %v3628
        %v3787 = vpack.c.b16 %v3633, %v3631
        %v3788 = vpack.c.b16 %v3634, %v3632
        %v3789 = vpack.c.b16 %v3637, %v3635
        %v3790 = vpack.c.b16 %v3638, %v3636
        %v3791 = vpack.c.b16 %v3641, %v3639
        %v3792 = vpack.c.b16 %v3642, %v3640
        %v3793 = vpack.c.b16 %v3645, %v3643
        %v3794 = vpack.c.b16 %v3646, %v3644
        %v3795 = vpack.c.b16 %v3649, %v3647
        %v3796 = vpack.c.b16 %v3650, %v3648
        %v3797 = vpack.c.b16 %v3653, %v3651
        %v3798 = vpack.c.b16 %v3654, %v3652
        %v3799 = vpack.c.b16 %v3657, %v3655
        %v3800 = vpack.c.b16 %v3658, %v3656
        %v3801 = vpack.c.b16 %v3661, %v3659
        %v3802 = vpack.c.b16 %v3662, %v3660
        %v3803 = vpack.c.b16 %v3665, %v3663
        %v3804 = vpack.c.b16 %v3666, %v3664
        %v3805 = vpack.c.b16 %v3669, %v3667
        %v3806 = vpack.c.b16 %v3670, %v3668
        %v3807 = vpack.c.b16 %v3673, %v3671
        %v3808 = vpack.c.b16 %v3674, %v3672
        %v3809 = vpack.c.b16 %v3677, %v3675
        %v3810 = vpack.c.b16 %v3678, %v3676
        %v3811 = vpack.c.b16 %v3681, %v3679
        %v3812 = vpack.c.b16 %v3682, %v3680
        %v3813 = vpack.c.b16 %v3685, %v3683
        %v3814 = vpack.c.b16 %v3686, %v3684
        %3943 = vmatprep.subr.bf16.mxu0 %v3688
        %3944 = vmatpush1.bf16.msra.mxu0 %v3687
        %3945 = vmatprep.subr.bf16.mxu0 %v3690
        %3946 = vmatpush1.bf16.msra.mxu0 %v3689
        %3947 = vmatprep.subr.bf16.mxu0 %v3692
        %3948 = vmatpush1.bf16.msra.mxu0 %v3691
        %3949 = vmatprep.subr.bf16.mxu0 %v3694
        %3950 = vmatpush1.bf16.msra.mxu0 %v3693
        %3951 = vmatprep.subr.bf16.mxu0 %v3696
        %3952 = vmatpush1.bf16.msra.mxu0 %v3695
        %3953 = vmatprep.subr.bf16.mxu0 %v3698
        %3954 = vmatpush1.bf16.msra.mxu0 %v3697
        %3955 = vmatprep.subr.bf16.mxu0 %v3700
        %3956 = vmatpush1.bf16.msra.mxu0 %v3699
        %3957 = vmatprep.subr.bf16.mxu0 %v3702
        %3958 = vmatpush1.bf16.msra.mxu0 %v3701
        %3959 = vmatprep.subr.bf16.mxu0 %v3704
        %3960 = vmatpush1.bf16.msra.mxu0 %v3703
        %3961 = vmatprep.subr.bf16.mxu0 %v3706
        %3962 = vmatpush1.bf16.msra.mxu0 %v3705
        %3963 = vmatprep.subr.bf16.mxu0 %v3708
        %3964 = vmatpush1.bf16.msra.mxu0 %v3707
        %3965 = vmatprep.subr.bf16.mxu0 %v3710
        %3966 = vmatpush1.bf16.msra.mxu0 %v3709
        %3967 = vmatprep.subr.bf16.mxu0 %v3712
        %3968 = vmatpush1.bf16.msra.mxu0 %v3711
        %3969 = vmatprep.subr.bf16.mxu0 %v3714
        %3970 = vmatpush1.bf16.msra.mxu0 %v3713
        %3971 = vmatprep.subr.bf16.mxu0 %v3716
        %3972 = vmatpush1.bf16.msra.mxu0 %v3715
        %3973 = vmatprep.subr.bf16.mxu0 %v3718
        %3974 = vmatpush1.bf16.msra.mxu0 %v3717
        %3975 = vmatprep.mubr.bf16.mxu0 %v3156
        %3976 = vmatmul.mubr.bf16.gmra.mrb[0].mxu0 %v3155
        %v3977 = vpop.f32.mrb[0].mxu0
        %v3978 = vadd.f32 %v3296, %v3977
        %v3979 = vpop.f32.mrb[0].mxu0
        %v3980 = vadd.f32 %v3300, %v3979
        %v3981 = vpop.f32.mrb[0].mxu0
        %v3982 = vpop.f32.mrb[0].mxu0
        %3983 = vdwg.mxu0
        %3984 = vmatprep.subr.bf16.mxu0 %v3720
        %3985 = vmatpush1.bf16.msra.mxu0 %v3719
        %3986 = vmatprep.subr.bf16.mxu0 %v3722
        %3987 = vmatpush1.bf16.msra.mxu0 %v3721
        %3988 = vmatprep.subr.bf16.mxu0 %v3724
        %3989 = vmatpush1.bf16.msra.mxu0 %v3723
        %3990 = vmatprep.subr.bf16.mxu0 %v3726
        %3991 = vmatpush1.bf16.msra.mxu0 %v3725
        %3992 = vmatprep.subr.bf16.mxu0 %v3728
        %3993 = vmatpush1.bf16.msra.mxu0 %v3727
        %3994 = vmatprep.subr.bf16.mxu0 %v3730
        %3995 = vmatpush1.bf16.msra.mxu0 %v3729
        %3996 = vmatprep.subr.bf16.mxu0 %v3732
        %3997 = vmatpush1.bf16.msra.mxu0 %v3731
        %3998 = vmatprep.subr.bf16.mxu0 %v3734
        %3999 = vmatpush1.bf16.msra.mxu0 %v3733
        %4000 = vmatprep.subr.bf16.mxu0 %v3736
        %4001 = vmatpush1.bf16.msra.mxu0 %v3735
        %4002 = vmatprep.subr.bf16.mxu0 %v3738
        %4003 = vmatpush1.bf16.msra.mxu0 %v3737
        %4004 = vmatprep.subr.bf16.mxu0 %v3740
        %4005 = vmatpush1.bf16.msra.mxu0 %v3739
        %4006 = vmatprep.subr.bf16.mxu0 %v3742
        %4007 = vmatpush1.bf16.msra.mxu0 %v3741
        %4008 = vmatprep.subr.bf16.mxu0 %v3744
        %4009 = vmatpush1.bf16.msra.mxu0 %v3743
        %4010 = vmatprep.subr.bf16.mxu0 %v3746
        %4011 = vmatpush1.bf16.msra.mxu0 %v3745
        %4012 = vmatprep.subr.bf16.mxu0 %v3748
        %4013 = vmatpush1.bf16.msra.mxu0 %v3747
        %4014 = vmatprep.subr.bf16.mxu0 %v3750
        %4015 = vmatpush1.bf16.msra.mxu0 %v3749
        %4016 = vmatprep.mubr.bf16.mxu0 %v3158
        %4017 = vmatmul.mubr.bf16.gmra.mrb[0].mxu0 %v3157
        %v4018 = vpop.f32.mrb[0].mxu0
        %v4019 = vadd.f32 %v3978, %v4018
        %v4020 = vpop.f32.mrb[0].mxu0
        %v4021 = vadd.f32 %v3980, %v4020
        %v4022 = vpop.f32.mrb[0].mxu0
        %v4023 = vpop.f32.mrb[0].mxu0
        %4024 = vdwg.mxu0
        %4025 = vmatprep.subr.bf16.mxu0 %v3752
        %4026 = vmatpush1.bf16.msra.mxu0 %v3751
        %4027 = vmatprep.subr.bf16.mxu0 %v3754
        %4028 = vmatpush1.bf16.msra.mxu0 %v3753
        %4029 = vmatprep.subr.bf16.mxu0 %v3756
        %4030 = vmatpush1.bf16.msra.mxu0 %v3755
        %4031 = vmatprep.subr.bf16.mxu0 %v3758
        %4032 = vmatpush1.bf16.msra.mxu0 %v3757
        %4033 = vmatprep.subr.bf16.mxu0 %v3760
        %4034 = vmatpush1.bf16.msra.mxu0 %v3759
        %4035 = vmatprep.subr.bf16.mxu0 %v3762
        %4036 = vmatpush1.bf16.msra.mxu0 %v3761
        %4037 = vmatprep.subr.bf16.mxu0 %v3764
        %4038 = vmatpush1.bf16.msra.mxu0 %v3763
        %4039 = vmatprep.subr.bf16.mxu0 %v3766
        %4040 = vmatpush1.bf16.msra.mxu0 %v3765
        %4041 = vmatprep.subr.bf16.mxu0 %v3768
        %4042 = vmatpush1.bf16.msra.mxu0 %v3767
        %4043 = vmatprep.subr.bf16.mxu0 %v3770
        %4044 = vmatpush1.bf16.msra.mxu0 %v3769
        %4045 = vmatprep.subr.bf16.mxu0 %v3772
        %4046 = vmatpush1.bf16.msra.mxu0 %v3771
        %4047 = vmatprep.subr.bf16.mxu0 %v3774
        %4048 = vmatpush1.bf16.msra.mxu0 %v3773
        %4049 = vmatprep.subr.bf16.mxu0 %v3776
        %4050 = vmatpush1.bf16.msra.mxu0 %v3775
        %4051 = vmatprep.subr.bf16.mxu0 %v3778
        %4052 = vmatpush1.bf16.msra.mxu0 %v3777
        %4053 = vmatprep.subr.bf16.mxu0 %v3780
        %4054 = vmatpush1.bf16.msra.mxu0 %v3779
        %4055 = vmatprep.subr.bf16.mxu0 %v3782
        %4056 = vmatpush1.bf16.msra.mxu0 %v3781
        %4057 = vmatprep.mubr.bf16.mxu0 %v3160
        %4058 = vmatmul.mubr.bf16.gmra.mrb[0].mxu0 %v3159
        %v4059 = vpop.f32.mrb[0].mxu0
        %v4060 = vadd.f32 %v4019, %v4059
        %v4061 = vpop.f32.mrb[0].mxu0
        %v4062 = vadd.f32 %v4021, %v4061
        %v4063 = vpop.f32.mrb[0].mxu0
        %v4064 = vpop.f32.mrb[0].mxu0
        %4065 = vdwg.mxu0
        %4066 = vmatprep.subr.bf16.mxu0 %v3784
        %4067 = vmatpush1.bf16.msra.mxu0 %v3783
        %4068 = vmatprep.subr.bf16.mxu0 %v3786
        %4069 = vmatpush1.bf16.msra.mxu0 %v3785
        %4070 = vmatprep.subr.bf16.mxu0 %v3788
        %4071 = vmatpush1.bf16.msra.mxu0 %v3787
        %4072 = vmatprep.subr.bf16.mxu0 %v3790
        %4073 = vmatpush1.bf16.msra.mxu0 %v3789
        %4074 = vmatprep.subr.bf16.mxu0 %v3792
        %4075 = vmatpush1.bf16.msra.mxu0 %v3791
        %4076 = vmatprep.subr.bf16.mxu0 %v3794
        %4077 = vmatpush1.bf16.msra.mxu0 %v3793
        %4078 = vmatprep.subr.bf16.mxu0 %v3796
        %4079 = vmatpush1.bf16.msra.mxu0 %v3795
        %4080 = vmatprep.subr.bf16.mxu0 %v3798
        %4081 = vmatpush1.bf16.msra.mxu0 %v3797
        %4082 = vmatprep.subr.bf16.mxu0 %v3800
        %4083 = vmatpush1.bf16.msra.mxu0 %v3799
        %4084 = vmatprep.subr.bf16.mxu0 %v3802
        %4085 = vmatpush1.bf16.msra.mxu0 %v3801
        %4086 = vmatprep.subr.bf16.mxu0 %v3804
        %4087 = vmatpush1.bf16.msra.mxu0 %v3803
        %4088 = vmatprep.subr.bf16.mxu0 %v3806
        %4089 = vmatpush1.bf16.msra.mxu0 %v3805
        %4090 = vmatprep.subr.bf16.mxu0 %v3808
        %4091 = vmatpush1.bf16.msra.mxu0 %v3807
        %4092 = vmatprep.subr.bf16.mxu0 %v3810
        %4093 = vmatpush1.bf16.msra.mxu0 %v3809
        %4094 = vmatprep.subr.bf16.mxu0 %v3812
        %4095 = vmatpush1.bf16.msra.mxu0 %v3811
        %4096 = vmatprep.subr.bf16.mxu0 %v3814
        %4097 = vmatpush1.bf16.msra.mxu0 %v3813
        %4098 = vmatprep.mubr.bf16.mxu0 %v3162
        %4099 = vmatmul.mubr.bf16.gmra.mrb[0].mxu0 %v3161
        %v4100 = vpop.f32.mrb[0].mxu0
        %v4101 = vadd.f32 %v4060, %v4100
        %v4102 = vpop.f32.mrb[0].mxu0
        %v4103 = vadd.f32 %v4062, %v4102
        %v4104 = vpop.f32.mrb[0].mxu0
        %v4105 = vpop.f32.mrb[0].mxu0
        %4106 = vdwg.mxu0
        %v4107 = vadd.f32 %v4101, %v2137
        %v4108 = vadd.f32 %v4103, %v2138
        %v4109 = vld [vmem:[#allocation18] sm:$0x3]
        %v4110 = vld [vmem:[#allocation19] sm:$0x3]
        %v4111 = vadd.f32 %v4107, %v4108
        %4112 = vadd.xlane.f32.xlu0 %v4111
        %v4113 = vpop.xlane.xlu0 %4112
        %v4114 = vmul.f32 %v4113, %v2099
        %v4115 = vsub.f32 %v4107, %v4114
        %v4116 = vsub.f32 %v4108, %v4114
        %v4117 = vmul.f32 %v4115, %v4115
        %v4118 = vmul.f32 %v4116, %v4116
        %v4119 = vadd.f32 %v4117, %v4118
        %4120 = vadd.xlane.f32.xlu0 %v4119
        %v4121 = vpop.xlane.xlu0 %4120
        %v4122 = vmul.f32 %v4121, %v2099
        %v4123 = vadd.f32 %v4122, 1e-07
        %v4124 = vrsqrt.pop %v4123
        %v4125 = vmul.f32 %v4115, %v4124
        %v4126 = vmul.f32 %v4116, %v4124
        %v4128 = vlaneseq
        %v4129 = vshrl.u32 %v4128, 7
        %v4130 = vsub.s32 0, %v4129
        %v4131 = vrot.slane %v4109, %v4130
        %v4132 = vlaneseq
        %v4133 = vshrl.u32 %v4132, 7
        %v4134 = vsub.s32 1, %v4133
        %v4135 = vrot.slane %v4109, %v4134
        %v4138 = vmul.f32 %v4125, %v4131
        %v4139 = vmul.f32 %v4126, %v4135
        %v4141 = vlaneseq
        %v4142 = vshrl.u32 %v4141, 7
        %v4143 = vsub.s32 0, %v4142
        %v4144 = vrot.slane %v4110, %v4143
        %v4145 = vlaneseq
        %v4146 = vshrl.u32 %v4145, 7
        %v4147 = vsub.s32 1, %v4146
        %v4148 = vrot.slane %v4110, %v4147
        %v4151 = vadd.f32 %v4138, %v4144
        %v4152 = vadd.f32 %v4139, %v4148
        %4153 = vst [vmem:[%s640] sm:$0xff] %v4151
        %4154 = vst [vmem:[%s640 + $0x8] sm:$0xff] %v4152
        %p4155 = scmp.lt.s32.totalorder %s32, 1
        %s4156 = scalar_select %p4155, %s32, 1
        %s4157 = smul.addr %s4156, 2
        %s4158 = smul.addr %s4157, 8
        %s4159 = scalar_lea.vmem %s14, %s4158
        // Predicated region
        $region125: #{bert_classifier.5} parent=75 // pred_check
          %p4160 = pneg %p354
        $region126: #{bert_classifier.5} parent=75 // pred_check_branch
          %4162 = sbr.rel (%p4160) target = $region128
        $region127: #{bert_classifier.5} parent=75 // pred_region
          _
        $region128: #{bert_classifier.5} parent=75 // pred_fallthru
          _
      $region76: #{bert_classifier.5} parent=5 // pred_fallthru
        _
      %p4163 = scmp.le.s32.totalorder 2, %s27
      // Predicated region
      $region129: #{bert_classifier.5} parent=5 // pred_check
        %p4164 = pneg %p4163
      $region130: #{bert_classifier.5} parent=5 // pred_check_branch
        %4166 = sbr.rel (%p4164) target = $region132
      $region131: #{bert_classifier.5} parent=5 // pred_region
        %s4167 = ssub.s32 %s27, 2
        // Predicated region
        $region133: #{bert_classifier.5} parent=131 // pred_check
          %p4168 = pneg %p360
        $region134: #{bert_classifier.5} parent=131 // pred_check_branch
          %4170 = sbr.rel (%p4168) target = $region136
        $region135: #{bert_classifier.5} parent=131 // pred_region
          %p4171 = scmp.lt.s32.totalorder %s33, 1
          %s4172 = scalar_select %p4171, %s33, 1
          %s4173 = smul.addr %s4172, 2
          %s4174 = smul.addr %s4173, 8
          %s4175 = scalar_lea.vmem %s14, %s4174
        $region136: #{bert_classifier.5} parent=131 // pred_fallthru
          _
      $region132: #{bert_classifier.5} parent=5 // pred_fallthru
        _
    $region6: #{bert_classifier.5} parent=1 // loop_footer
      %s31 = sadd.s32 1, %s27
    $region7: #{bert_classifier.5} parent=1 // loop_footer_branch
      %26 = sbr.rel target = $region3
    $region8: #{bert_classifier.5} parent=1 // loop_exit
      _
    %4176 = vsyncpa [#allocation3], 1
    %s4177 = scalar_lea.sflag [#allocation3], 1
    %4178 = vsyncpa %s4177, 1
    %4179 = vsyncpa [#allocation5], 1
    %4180 = vsyncpa [#allocation8], 1
    %4181 = vsyncpa [#allocation11], 1
    %4182 = vsyncpa [#allocation14], 1
    %4183 = vsyncpa [#allocation17], 1
    %4184 = vsyncpa [#allocation20], 1

</llo_original>
